<compile_context>
chip_gen: v7x
topology: tpu7x:2x2x1
jax: 0.10.0
libtpu: 0.0.40
codegen_flags: <defaults>
</compile_context>

<pallas_src>
import functools

import jax
import jax.numpy as jnp
from jax.experimental import pallas as pl
from jax.experimental.pallas import tpu as pltpu


# ---------------------------------------------------------------- helpers ---

def _layernorm(x, gamma, beta, eps=1e-5):
    # PyTorch nn.LayerNorm: biased variance (divide by N), eps inside rsqrt.
    mean = jnp.mean(x, axis=-1, keepdims=True)
    var = jnp.mean((x - mean) ** 2, axis=-1, keepdims=True)
    return (x - mean) * jax.lax.rsqrt(var + eps) * gamma + beta


def _tpu_info():
    """(physical VMEM bytes per core, TensorCores per chip).

    Falls back to v7x-safe values (64 MiB, 2 cores) if the query is
    unavailable, so a tile sized here never overruns the smallest part.
    """
    vmem_phys = 64 << 20
    num_cores = 2
    try:
        info = pltpu.get_tpu_info()
        vmem_phys = int(getattr(info, "vmem_capacity_bytes", vmem_phys))
        num_cores = int(
            getattr(info, "num_cores",
                    getattr(info, "tensorcore_count",
                            getattr(info, "num_tensorcores", num_cores))))
    except Exception:  # pragma: no cover - query not supported everywhere
        pass
    return vmem_phys, max(1, num_cores)


def _estimate_vmem_bytes(bt, n_src, n_ltn, dim, dim_emb, in_bytes, mxu_bytes):
    """Rough per-grid-step VMEM footprint, including Pallas double-buffering
    of the src/ltn/out blocks and the in-kernel f32 temporaries."""
    f32 = 4
    n_ctx = n_src + n_ltn
    # src + ltn + out blocks, each double-buffered by the BlockSpec pipeline.
    io = 2 * bt * (n_src + 2 * n_ltn) * dim * in_bytes
    # Weights + LayerNorm params (double-buffered, but tiny).
    weights = 2 * ((5 * dim_emb) * dim * mxu_bytes + 4 * dim * f32)
    # f32 working slabs: raw + LayerNormed src/ltn, plus their MXU copies.
    slabs = 2 * bt * n_ctx * dim * f32 + bt * n_ctx * dim * mxu_bytes
    # Projection outputs (f32 accumulation) + MXU-dtype copies.
    qkv = bt * (3 * n_ltn + 2 * n_src) * dim_emb * (f32 + mxu_bytes)
    # Score / prob tiles (a few live at once across the unrolled head loop).
    scores = 4 * bt * n_ltn * n_ctx * f32
    # f32 output accumulator + store staging.
    acc = 2 * bt * n_ltn * dim * f32
    return io + weights + slabs + qkv + scores + acc


def _pick_bt_tile(bt_total, n_src, n_ltn, dim, dim_emb, in_bytes, mxu_bytes,
                  vmem_budget, num_cores):
    """Largest divisor of BT whose footprint fits the VMEM budget, keeping
    the grid length divisible by the TensorCore count when possible."""
    best = 1
    for t in range(1, bt_total + 1):
        if bt_total % t:
            continue
        if t > 1 and _estimate_vmem_bytes(t, n_src, n_ltn, dim, dim_emb,
                                          in_bytes, mxu_bytes) > vmem_budget:
            continue
        g = bt_total // t
        # Balanced 'parallel' grid across TensorCores (v7x megacore);
        # t == 1 is always a legal fallback.
        if num_cores > 1 and t > 1 and g % num_cores != 0:
            continue
        best = t
    return best


# ---------------------------------------------------------------- kernel ----

def perceiver_attention_kernel(
    src_ref, ltn_ref,
    g_src_ref, b_src_ref, g_ltn_ref, b_ltn_ref,
    w_ltn_ref, w_src_ref, wo_ref,
    out_ref,
    *, num_heads, dim_head,
):
    bt, n_src, dim = src_ref.shape
    n_ltn = ltn_ref.shape[1]
    dim_emb = num_heads * dim_head
    mxu_dtype = w_ltn_ref.dtype          # weights arrive pre-cast (bf16/f32)

    # Leading-dim merge only (no lane/sublane repack): (bt, N, D) -> (bt*N, D)
    src = src_ref[...].reshape(bt * n_src, dim).astype(jnp.float32)
    ltn = ltn_ref[...].reshape(bt * n_ltn, dim).astype(jnp.float32)

    # LayerNorm in f32 on the whole slab (v5e-safe elementwise math).
    src_n = _layernorm(src, g_src_ref[...].astype(jnp.float32),
                       b_src_ref[...].astype(jnp.float32))
    ltn_n = _layernorm(ltn, g_ltn_ref[...].astype(jnp.float32),
                       b_ltn_ref[...].astype(jnp.float32))

    # Fused slab projections: ONE dot per slab.
    #   latent slab: [q | k_ltn | v_ltn]  (softmax scale folded into Wq)
    #   src slab:    [k_src | v_src]      (the module's fused to_kv weight)
    proj_ltn = jnp.dot(ltn_n.astype(mxu_dtype), w_ltn_ref[...],
                       preferred_element_type=jnp.float32)   # (bt*Nl, 3E)
    proj_src = jnp.dot(src_n.astype(mxu_dtype), w_src_ref[...],
                       preferred_element_type=jnp.float32)   # (bt*Ns, 2E)

    # Cast once to the MXU dtype (hoisted out of the head loop) and re-expose
    # the super-slice axis as a batch dim (leading-dim split only).
    qkv_ltn = proj_ltn.astype(mxu_dtype).reshape(bt, n_ltn, 3 * dim_emb)
    kv_src = proj_src.astype(mxu_dtype).reshape(bt, n_src, 2 * dim_emb)

    # Wo arrives pre-split per head: (H, dh, D). Load + use once.
    wo_all = wo_ref[...]

    out = jnp.zeros((bt * n_ltn, dim), jnp.float32)

    # Static per-head loop (unrolled at trace time).
    for h in range(num_heads):
        lo = h * dim_head
        qh = qkv_ltn[:, :, lo:lo + dim_head]
        klh = qkv_ltn[:, :, dim_emb + lo:dim_emb + lo + dim_head]
        vlh = qkv_ltn[:, :, 2 * dim_emb + lo:2 * dim_emb + lo + dim_head]
        ksh = kv_src[:, :, lo:lo + dim_head]
        vsh = kv_src[:, :, dim_emb + lo:dim_emb + lo + dim_head]

        s_src = jnp.einsum('bid,bjd->bij', qh, ksh,
                           preferred_element_type=jnp.float32)
        s_ltn = jnp.einsum('bid,bjd->bij', qh, klh,
                           preferred_element_type=jnp.float32)

        # Joint softmax over [src ; ltn] keys without lane-axis concatenation.
        m = jnp.maximum(jnp.max(s_src, axis=-1, keepdims=True),
                        jnp.max(s_ltn, axis=-1, keepdims=True))
        p_src = jnp.exp(s_src - m)
        p_ltn = jnp.exp(s_ltn - m)
        denom = (jnp.sum(p_src, axis=-1, keepdims=True)
                 + jnp.sum(p_ltn, axis=-1, keepdims=True))
        inv = pl.reciprocal(denom, approx=True)            # EUP slot (~free)

        o_h = (jnp.einsum('bij,bjd->bid', p_src.astype(mxu_dtype), vsh,
                          preferred_element_type=jnp.float32)
               + jnp.einsum('bij,bjd->bid', p_ltn.astype(mxu_dtype), vlh,
                            preferred_element_type=jnp.float32))
        o_h = o_h * inv                                     # (bt, Nl, dh)

        # Fold the output projection per head: sum_h o_h @ Wo[h]  ==
        # concat_h(o_h) @ Wo, with Wo[h] a free leading-dim index.
        out = out + jnp.dot(
            o_h.reshape(bt * n_ltn, dim_head).astype(mxu_dtype), wo_all[h],
            preferred_element_type=jnp.float32)

    # Store in the same layout as the inputs (leading-dim split only); the
    # previous lane-dense repack was a per-step sublane->lane relayout.
    out_ref[...] = out.reshape(bt, n_ltn, dim).astype(out_ref.dtype)


# --------------------------------------------------------------- wrapper ----

def perceiver_attention(src, ltn, params, *, num_heads, dim_head,
                        bt_tile=None, mxu_dtype=jnp.bfloat16):
    B, T, n_src, dim = src.shape
    _, _, n_ltn, _ = ltn.shape
    dim_emb = num_heads * dim_head
    bt_total = B * T

    vmem_phys, num_cores = _tpu_info()
    in_bytes = jnp.dtype(src.dtype).itemsize
    mxu_bytes = jnp.dtype(mxu_dtype).itemsize

    # Per-generation tile budget: large tiles amortize the ~0.35 us/step
    # pipeline overhead; cap well below physical VMEM (64 MiB/TC on v7x).
    vmem_budget = min(int(0.4 * vmem_phys), 40 << 20)

    if bt_tile is None:
        bt_tile = _pick_bt_tile(bt_total, n_src, n_ltn, dim, dim_emb,
                                in_bytes, mxu_bytes, vmem_budget, num_cores)
    assert bt_total % bt_tile == 0
    grid_len = bt_total // bt_tile

    est = _estimate_vmem_bytes(bt_tile, n_src, n_ltn, dim, dim_emb,
                               in_bytes, mxu_bytes)
    vmem_limit = int(min(0.85 * vmem_phys,
                         max(32 << 20, est + est // 4 + (8 << 20))))

    src_f = src.reshape(bt_total, n_src, dim)
    ltn_f = ltn.reshape(bt_total, n_ltn, dim)

    # Host-side, one-time weight prep (all in the MXU dtype so the kernel
    # never re-casts weights per grid step):
    #   * fold the softmax scale into Wq,
    #   * fuse [Wq*scale | Wk | Wv] for the latent slab; keep the module's
    #     fused to_kv weight for the src slab,
    #   * split Wo per head so the kernel indexes a leading dim.
    scale = dim_head ** (-0.5)
    wq_scaled = params["wq"].astype(jnp.float32) * scale
    wk = params["wkv"][:, :dim_emb].astype(jnp.float32)
    wv = params["wkv"][:, dim_emb:].astype(jnp.float32)
    w_ltn = jnp.concatenate([wq_scaled, wk, wv], axis=1).astype(mxu_dtype)
    w_src = params["wkv"].astype(mxu_dtype)
    wo_heads = params["wo"].astype(mxu_dtype).reshape(num_heads, dim_head, dim)

    g_src = params["g_src"].astype(jnp.float32)
    b_src = params["b_src"].astype(jnp.float32)
    g_ltn = params["g_ltn"].astype(jnp.float32)
    b_ltn = params["b_ltn"].astype(jnp.float32)

    kernel = functools.partial(perceiver_attention_kernel,
                               num_heads=num_heads, dim_head=dim_head)

    def full_spec(shape):
        nd = len(shape)
        return pl.BlockSpec(shape, lambda i, _nd=nd: (0,) * _nd)

    # TODO(synk): on v7x, if profiling shows exposed DMA, bump the src/ltn
    # BlockSpecs to pipeline_mode=pl.Buffered(3) (counts against 64 MiB/TC).
    out = pl.pallas_call(
        kernel,
        out_shape=jax.ShapeDtypeStruct((bt_total, n_ltn, dim), src.dtype),
        grid=(grid_len,),
        in_specs=[
            pl.BlockSpec((bt_tile, n_src, dim), lambda i: (i, 0, 0)),  # src
            pl.BlockSpec((bt_tile, n_ltn, dim), lambda i: (i, 0, 0)),  # ltn
            full_spec(g_src.shape),
            full_spec(b_src.shape),
            full_spec(g_ltn.shape),
            full_spec(b_ltn.shape),
            full_spec(w_ltn.shape),
            full_spec(w_src.shape),
            full_spec(wo_heads.shape),
        ],
        out_specs=pl.BlockSpec((bt_tile, n_ltn, dim), lambda i: (i, 0, 0)),
        compiler_params=pltpu.CompilerParams(
            dimension_semantics=("parallel",),
            vmem_limit_bytes=vmem_limit),
    )(src_f, ltn_f, g_src, b_src, g_ltn, b_ltn, w_ltn, w_src, wo_heads)

    return out.reshape(B, T, n_ltn, dim)


# ------------------------------------------------------ pure-JAX reference --

def perceiver_attention_ref(src, ltn, params, *, num_heads, dim_head):
    scale = dim_head ** (-0.5)

    src_n = _layernorm(src, params["g_src"][0], params["b_src"][0])
    ltn_n = _layernorm(ltn, params["g_ltn"][0], params["b_ltn"][0])

    q = jnp.einsum('btnd,de->btne', ltn_n, params["wq"])
    ctx = jnp.concatenate([src_n, ltn_n], axis=-2)
    kv = jnp.einsum('btnd,de->btne', ctx, params["wkv"])
    k, v = jnp.split(kv, 2, axis=-1)

    def heads(x):
        b, t, n, _ = x.shape
        return x.reshape(b, t, n, num_heads, dim_head).transpose(0, 3, 1, 2, 4)

    qh, kh, vh = heads(q), heads(k), heads(v)
    attn = jnp.einsum('bhtid,bhtjd->bhtij', qh, kh) * scale
    attn = attn - jnp.max(attn, axis=-1, keepdims=True)
    attn = jax.nn.softmax(attn, axis=-1)
    o = jnp.einsum('bhtij,bhtjd->bhtid', attn, vh)
    b, h, t, n, d = o.shape
    o = o.transpose(0, 2, 3, 1, 4).reshape(b, t, n, h * d)
    return jnp.einsum('btne,ed->btnd', o, params["wo"])


# ------------------------------------------------------------------ main ----

if __name__ == "__main__":
    B, T = 2, 2
    N_SRC, N_LTN = 16, 8
    DIM_LTN = 32
    DIM_HEAD = 8
    NUM_HEADS = 4
    DIM_EMB = DIM_HEAD * NUM_HEADS

    key = jax.random.PRNGKey(0)
    ks = jax.random.split(key, 9)

    src = jax.random.normal(ks[0], (B, T, N_SRC, DIM_LTN), dtype=jnp.float32)
    ltn = jax.random.normal(ks[1], (B, T, N_LTN, DIM_LTN), dtype=jnp.float32)

    # Weights stored as (in, out) (transpose of nn.Linear.weight); y = x @ W.
    params = {
        "g_src": 1.0 + 0.1 * jax.random.normal(ks[2], (1, DIM_LTN), jnp.float32),
        "b_src": 0.1 * jax.random.normal(ks[3], (1, DIM_LTN), jnp.float32),
        "g_ltn": 1.0 + 0.1 * jax.random.normal(ks[4], (1, DIM_LTN), jnp.float32),
        "b_ltn": 0.1 * jax.random.normal(ks[5], (1, DIM_LTN), jnp.float32),
        "wq":  0.05 * jax.random.normal(ks[6], (DIM_LTN, DIM_EMB), jnp.float32),
        "wkv": 0.05 * jax.random.normal(ks[7], (DIM_LTN, 2 * DIM_EMB), jnp.float32),
        "wo":  0.05 * jax.random.normal(ks[8], (DIM_EMB, DIM_LTN), jnp.float32),
    }

    out = perceiver_attention(src, ltn, params,
                              num_heads=NUM_HEADS, dim_head=DIM_HEAD)
    out = jax.block_until_ready(out)

    ref = perceiver_attention_ref(src, ltn, params,
                                  num_heads=NUM_HEADS, dim_head=DIM_HEAD)
    ref = jax.block_until_ready(ref)

    assert out.shape == (B, T, N_LTN, DIM_LTN), out.shape
    # Tolerance covers bf16 MXU operands (f32 accumulation) and the EUP
    # approximate reciprocal in the softmax normalization.
    assert jnp.allclose(out, ref, rtol=5e-2, atol=5e-3), (
        float(jnp.max(jnp.abs(out - ref))))

    print("KERNEL_OK")
</pallas_src>

<mosaic_0001>
module attributes {stable_mosaic.version = 11 : i64} {
  func.func @perceiver_attention_kernel(%arg0: i32, %arg1: memref<2x16x32xf32, #tpu.memory_space<vmem>>, %arg2: memref<2x8x32xf32, #tpu.memory_space<vmem>>, %arg3: memref<1x32xf32, #tpu.memory_space<vmem>>, %arg4: memref<1x32xf32, #tpu.memory_space<vmem>>, %arg5: memref<1x32xf32, #tpu.memory_space<vmem>>, %arg6: memref<1x32xf32, #tpu.memory_space<vmem>>, %arg7: memref<32x96xbf16, #tpu.memory_space<vmem>>, %arg8: memref<32x64xbf16, #tpu.memory_space<vmem>>, %arg9: memref<4x8x32xbf16, #tpu.memory_space<vmem>>, %arg10: memref<2x8x32xf32, #tpu.memory_space<vmem>>) attributes {dimension_semantics = [#tpu.dimension_semantics<parallel>], iteration_bounds = array<i64: 2>, scalar_prefetch = 0 : i64, scratch_operands = 0 : i64, tpu.core_type = #tpu.core_type<tc>, window_params = [{transform_indices = @transform_0, window_bounds = array<i64: 2, 16, 32>}, {transform_indices = @transform_1, window_bounds = array<i64: 2, 8, 32>}, {pipeline_mode = #tpu.pipeline_mode<synchronous>, transform_indices = @transform_2, window_bounds = array<i64: 1, 32>}, {pipeline_mode = #tpu.pipeline_mode<synchronous>, transform_indices = @transform_3, window_bounds = array<i64: 1, 32>}, {pipeline_mode = #tpu.pipeline_mode<synchronous>, transform_indices = @transform_4, window_bounds = array<i64: 1, 32>}, {pipeline_mode = #tpu.pipeline_mode<synchronous>, transform_indices = @transform_5, window_bounds = array<i64: 1, 32>}, {pipeline_mode = #tpu.pipeline_mode<synchronous>, transform_indices = @transform_6, window_bounds = array<i64: 32, 96>}, {pipeline_mode = #tpu.pipeline_mode<synchronous>, transform_indices = @transform_7, window_bounds = array<i64: 32, 64>}, {pipeline_mode = #tpu.pipeline_mode<synchronous>, transform_indices = @transform_8, window_bounds = array<i64: 4, 8, 32>}, {transform_indices = @transform_9, window_bounds = array<i64: 2, 8, 32>}]} {
    %c0 = arith.constant 0 : index
    %c0_0 = arith.constant 0 : index
    %c0_1 = arith.constant 0 : index
    %0 = vector.load %arg1[%c0, %c0_0, %c0_1] : memref<2x16x32xf32, #tpu.memory_space<vmem>>, vector<2x16x32xf32>
    %1 = vector.shape_cast %0 : vector<2x16x32xf32> to vector<32x32xf32>
    %c0_2 = arith.constant 0 : index
    %c0_3 = arith.constant 0 : index
    %c0_4 = arith.constant 0 : index
    %2 = vector.load %arg2[%c0_2, %c0_3, %c0_4] : memref<2x8x32xf32, #tpu.memory_space<vmem>>, vector<2x8x32xf32>
    %3 = vector.shape_cast %2 : vector<2x8x32xf32> to vector<16x32xf32>
    %c0_5 = arith.constant 0 : index
    %c0_6 = arith.constant 0 : index
    %4 = vector.load %arg3[%c0_5, %c0_6] : memref<1x32xf32, #tpu.memory_space<vmem>>, vector<1x32xf32>
    %c0_7 = arith.constant 0 : index
    %c0_8 = arith.constant 0 : index
    %5 = vector.load %arg4[%c0_7, %c0_8] : memref<1x32xf32, #tpu.memory_space<vmem>>, vector<1x32xf32>
    %cst = arith.constant dense<0.000000e+00> : vector<32xf32>
    %6 = vector.multi_reduction <add>, %1, %cst [1] : vector<32x32xf32> to vector<32xf32>
    %7 = vector.shape_cast %6 : vector<32xf32> to vector<32x1xf32>
    %cst_9 = arith.constant 3.200000e+01 : f32
    %8 = vector.broadcast %cst_9 : f32 to vector<32x1xf32>
    %9 = arith.divf %7, %8 : vector<32x1xf32>
    %10 = vector.broadcast %9 : vector<32x1xf32> to vector<32x32xf32>
    %11 = arith.subf %1, %10 : vector<32x32xf32>
    %12 = arith.mulf %11, %11 : vector<32x32xf32>
    %cst_10 = arith.constant dense<0.000000e+00> : vector<32xf32>
    %13 = vector.multi_reduction <add>, %12, %cst_10 [1] : vector<32x32xf32> to vector<32xf32>
    %14 = vector.shape_cast %13 : vector<32xf32> to vector<32x1xf32>
    %cst_11 = arith.constant 3.200000e+01 : f32
    %15 = vector.broadcast %cst_11 : f32 to vector<32x1xf32>
    %16 = arith.divf %14, %15 : vector<32x1xf32>
    %17 = vector.broadcast %9 : vector<32x1xf32> to vector<32x32xf32>
    %18 = arith.subf %1, %17 : vector<32x32xf32>
    %cst_12 = arith.constant 9.99999974E-6 : f32
    %19 = vector.broadcast %cst_12 : f32 to vector<32x1xf32>
    %20 = arith.addf %16, %19 : vector<32x1xf32>
    %21 = math.rsqrt %20 : vector<32x1xf32>
    %22 = vector.broadcast %21 : vector<32x1xf32> to vector<32x32xf32>
    %23 = arith.mulf %18, %22 : vector<32x32xf32>
    %24 = vector.broadcast %4 : vector<1x32xf32> to vector<32x32xf32>
    %25 = arith.mulf %23, %24 : vector<32x32xf32>
    %26 = vector.broadcast %5 : vector<1x32xf32> to vector<32x32xf32>
    %27 = arith.addf %25, %26 : vector<32x32xf32>
    %c0_13 = arith.constant 0 : index
    %c0_14 = arith.constant 0 : index
    %28 = vector.load %arg5[%c0_13, %c0_14] : memref<1x32xf32, #tpu.memory_space<vmem>>, vector<1x32xf32>
    %c0_15 = arith.constant 0 : index
    %c0_16 = arith.constant 0 : index
    %29 = vector.load %arg6[%c0_15, %c0_16] : memref<1x32xf32, #tpu.memory_space<vmem>>, vector<1x32xf32>
    %cst_17 = arith.constant dense<0.000000e+00> : vector<16xf32>
    %30 = vector.multi_reduction <add>, %3, %cst_17 [1] : vector<16x32xf32> to vector<16xf32>
    %31 = vector.shape_cast %30 : vector<16xf32> to vector<16x1xf32>
    %cst_18 = arith.constant 3.200000e+01 : f32
    %32 = vector.broadcast %cst_18 : f32 to vector<16x1xf32>
    %33 = arith.divf %31, %32 : vector<16x1xf32>
    %34 = vector.broadcast %33 : vector<16x1xf32> to vector<16x32xf32>
    %35 = arith.subf %3, %34 : vector<16x32xf32>
    %36 = arith.mulf %35, %35 : vector<16x32xf32>
    %cst_19 = arith.constant dense<0.000000e+00> : vector<16xf32>
    %37 = vector.multi_reduction <add>, %36, %cst_19 [1] : vector<16x32xf32> to vector<16xf32>
    %38 = vector.shape_cast %37 : vector<16xf32> to vector<16x1xf32>
    %cst_20 = arith.constant 3.200000e+01 : f32
    %39 = vector.broadcast %cst_20 : f32 to vector<16x1xf32>
    %40 = arith.divf %38, %39 : vector<16x1xf32>
    %41 = vector.broadcast %33 : vector<16x1xf32> to vector<16x32xf32>
    %42 = arith.subf %3, %41 : vector<16x32xf32>
    %cst_21 = arith.constant 9.99999974E-6 : f32
    %43 = vector.broadcast %cst_21 : f32 to vector<16x1xf32>
    %44 = arith.addf %40, %43 : vector<16x1xf32>
    %45 = math.rsqrt %44 : vector<16x1xf32>
    %46 = vector.broadcast %45 : vector<16x1xf32> to vector<16x32xf32>
    %47 = arith.mulf %42, %46 : vector<16x32xf32>
    %48 = vector.broadcast %28 : vector<1x32xf32> to vector<16x32xf32>
    %49 = arith.mulf %47, %48 : vector<16x32xf32>
    %50 = vector.broadcast %29 : vector<1x32xf32> to vector<16x32xf32>
    %51 = arith.addf %49, %50 : vector<16x32xf32>
    %52 = arith.truncf %51 : vector<16x32xf32> to vector<16x32xbf16>
    %c0_22 = arith.constant 0 : index
    %c0_23 = arith.constant 0 : index
    %53 = vector.load %arg7[%c0_22, %c0_23] : memref<32x96xbf16, #tpu.memory_space<vmem>>, vector<32x96xbf16>
    %cst_24 = arith.constant dense<0.000000e+00> : vector<16x96xf32>
    %54 = tpu.matmul %52, %53, %cst_24 {dimension_numbers = #tpu.dot_dimension_numbers<[1], [0], [0], [1], [0, 0, 1, 1], [], []>} : vector<16x32xbf16>, vector<32x96xbf16>, vector<16x96xf32> -> vector<16x96xf32>
    %55 = arith.truncf %27 : vector<32x32xf32> to vector<32x32xbf16>
    %c0_25 = arith.constant 0 : index
    %c0_26 = arith.constant 0 : index
    %56 = vector.load %arg8[%c0_25, %c0_26] : memref<32x64xbf16, #tpu.memory_space<vmem>>, vector<32x64xbf16>
    %cst_27 = arith.constant dense<0.000000e+00> : vector<32x64xf32>
    %57 = tpu.matmul %55, %56, %cst_27 {dimension_numbers = #tpu.dot_dimension_numbers<[1], [0], [0], [1], [0, 0, 1, 1], [], []>} : vector<32x32xbf16>, vector<32x64xbf16>, vector<32x64xf32> -> vector<32x64xf32>
    %58 = arith.truncf %54 : vector<16x96xf32> to vector<16x96xbf16>
    %59 = vector.shape_cast %58 : vector<16x96xbf16> to vector<2x8x96xbf16>
    %60 = arith.truncf %57 : vector<32x64xf32> to vector<32x64xbf16>
    %61 = vector.shape_cast %60 : vector<32x64xbf16> to vector<2x16x64xbf16>
    %c0_28 = arith.constant 0 : index
    %c0_29 = arith.constant 0 : index
    %c0_30 = arith.constant 0 : index
    %62 = vector.load %arg9[%c0_28, %c0_29, %c0_30] : memref<4x8x32xbf16, #tpu.memory_space<vmem>>, vector<4x8x32xbf16>
    %cst_31 = arith.constant 0.000000e+00 : f32
    %63 = vector.broadcast %cst_31 : f32 to vector<16x32xf32>
    %64 = vector.extract_strided_slice %59 {offsets = [0, 0, 0], sizes = [2, 8, 8], strides = [1, 1, 1]} : vector<2x8x96xbf16> to vector<2x8x8xbf16>
    %65 = vector.extract_strided_slice %59 {offsets = [0, 0, 32], sizes = [2, 8, 8], strides = [1, 1, 1]} : vector<2x8x96xbf16> to vector<2x8x8xbf16>
    %66 = vector.extract_strided_slice %59 {offsets = [0, 0, 64], sizes = [2, 8, 8], strides = [1, 1, 1]} : vector<2x8x96xbf16> to vector<2x8x8xbf16>
    %67 = vector.extract_strided_slice %61 {offsets = [0, 0, 0], sizes = [2, 16, 8], strides = [1, 1, 1]} : vector<2x16x64xbf16> to vector<2x16x8xbf16>
    %68 = vector.extract_strided_slice %61 {offsets = [0, 0, 32], sizes = [2, 16, 8], strides = [1, 1, 1]} : vector<2x16x64xbf16> to vector<2x16x8xbf16>
    "tpu.trace_start"() <{level = 10 : i32, message = "bid,bjd->bij"}> : () -> ()
    %cst_32 = arith.constant dense<0.000000e+00> : vector<2x8x16xf32>
    %69 = tpu.matmul %64, %67, %cst_32 {dimension_numbers = #tpu.dot_dimension_numbers<[2], [2], [1], [1], [0, 0, 0, 1, 1, 1], [0], [0]>} : vector<2x8x8xbf16>, vector<2x16x8xbf16>, vector<2x8x16xf32> -> vector<2x8x16xf32>
    %cst_33 = arith.constant dense<0.000000e+00> : vector<2x8x8xf32>
    %70 = tpu.matmul %64, %65, %cst_33 {dimension_numbers = #tpu.dot_dimension_numbers<[2], [2], [1], [1], [0, 0, 0, 1, 1, 1], [0], [0]>} : vector<2x8x8xbf16>, vector<2x8x8xbf16>, vector<2x8x8xf32> -> vector<2x8x8xf32>
    "tpu.trace_stop"() : () -> ()
    %cst_34 = arith.constant dense<0xFF800000> : vector<2x8xf32>
    %71 = vector.multi_reduction <maximumf>, %69, %cst_34 [2] : vector<2x8x16xf32> to vector<2x8xf32>
    %72 = vector.shape_cast %71 : vector<2x8xf32> to vector<2x8x1xf32>
    %cst_35 = arith.constant dense<0xFF800000> : vector<2x8xf32>
    %73 = vector.multi_reduction <maximumf>, %70, %cst_35 [2] : vector<2x8x8xf32> to vector<2x8xf32>
    %74 = vector.shape_cast %73 : vector<2x8xf32> to vector<2x8x1xf32>
    %75 = arith.maximumf %72, %74 : vector<2x8x1xf32>
    %76 = vector.broadcast %75 : vector<2x8x1xf32> to vector<2x8x16xf32>
    %77 = arith.subf %69, %76 : vector<2x8x16xf32>
    %78 = math.exp %77 : vector<2x8x16xf32>
    %79 = vector.broadcast %75 : vector<2x8x1xf32> to vector<2x8x8xf32>
    %80 = arith.subf %70, %79 : vector<2x8x8xf32>
    %81 = math.exp %80 : vector<2x8x8xf32>
    %cst_36 = arith.constant dense<0.000000e+00> : vector<2x8xf32>
    %82 = vector.multi_reduction <add>, %78, %cst_36 [2] : vector<2x8x16xf32> to vector<2x8xf32>
    %83 = vector.shape_cast %82 : vector<2x8xf32> to vector<2x8x1xf32>
    %cst_37 = arith.constant dense<0.000000e+00> : vector<2x8xf32>
    %84 = vector.multi_reduction <add>, %81, %cst_37 [2] : vector<2x8x8xf32> to vector<2x8xf32>
    %85 = vector.shape_cast %84 : vector<2x8xf32> to vector<2x8x1xf32>
    %86 = arith.addf %83, %85 : vector<2x8x1xf32>
    %87 = tpu.reciprocal %86 {approx = true} : vector<2x8x1xf32> -> vector<2x8x1xf32>
    %88 = arith.truncf %78 : vector<2x8x16xf32> to vector<2x8x16xbf16>
    "tpu.trace_start"() <{level = 10 : i32, message = "bij,bjd->bid"}> : () -> ()
    %cst_38 = arith.constant dense<0.000000e+00> : vector<2x8x8xf32>
    %89 = tpu.matmul %88, %68, %cst_38 {dimension_numbers = #tpu.dot_dimension_numbers<[2], [1], [1], [2], [0, 0, 0, 1, 1, 2], [0], [0]>} : vector<2x8x16xbf16>, vector<2x16x8xbf16>, vector<2x8x8xf32> -> vector<2x8x8xf32>
    "tpu.trace_stop"() : () -> ()
    %90 = arith.truncf %81 : vector<2x8x8xf32> to vector<2x8x8xbf16>
    "tpu.trace_start"() <{level = 10 : i32, message = "bij,bjd->bid"}> : () -> ()
    %cst_39 = arith.constant dense<0.000000e+00> : vector<2x8x8xf32>
    %91 = tpu.matmul %90, %66, %cst_39 {dimension_numbers = #tpu.dot_dimension_numbers<[2], [1], [1], [2], [0, 0, 0, 1, 1, 2], [0], [0]>} : vector<2x8x8xbf16>, vector<2x8x8xbf16>, vector<2x8x8xf32> -> vector<2x8x8xf32>
    "tpu.trace_stop"() : () -> ()
    %92 = arith.addf %89, %91 : vector<2x8x8xf32>
    %93 = vector.broadcast %87 : vector<2x8x1xf32> to vector<2x8x8xf32>
    %94 = arith.mulf %92, %93 : vector<2x8x8xf32>
    %95 = vector.shape_cast %94 : vector<2x8x8xf32> to vector<16x8xf32>
    %96 = arith.truncf %95 : vector<16x8xf32> to vector<16x8xbf16>
    %97 = vector.extract_strided_slice %62 {offsets = [0, 0, 0], sizes = [1, 8, 32], strides = [1, 1, 1]} : vector<4x8x32xbf16> to vector<1x8x32xbf16>
    %98 = vector.shape_cast %97 : vector<1x8x32xbf16> to vector<8x32xbf16>
    %cst_40 = arith.constant dense<0.000000e+00> : vector<16x32xf32>
    %99 = tpu.matmul %96, %98, %cst_40 {dimension_numbers = #tpu.dot_dimension_numbers<[1], [0], [0], [1], [0, 0, 1, 1], [], []>} : vector<16x8xbf16>, vector<8x32xbf16>, vector<16x32xf32> -> vector<16x32xf32>
    %100 = arith.addf %63, %99 : vector<16x32xf32>
    %101 = vector.extract_strided_slice %59 {offsets = [0, 0, 8], sizes = [2, 8, 8], strides = [1, 1, 1]} : vector<2x8x96xbf16> to vector<2x8x8xbf16>
    %102 = vector.extract_strided_slice %59 {offsets = [0, 0, 40], sizes = [2, 8, 8], strides = [1, 1, 1]} : vector<2x8x96xbf16> to vector<2x8x8xbf16>
    %103 = vector.extract_strided_slice %59 {offsets = [0, 0, 72], sizes = [2, 8, 8], strides = [1, 1, 1]} : vector<2x8x96xbf16> to vector<2x8x8xbf16>
    %104 = vector.extract_strided_slice %61 {offsets = [0, 0, 8], sizes = [2, 16, 8], strides = [1, 1, 1]} : vector<2x16x64xbf16> to vector<2x16x8xbf16>
    %105 = vector.extract_strided_slice %61 {offsets = [0, 0, 40], sizes = [2, 16, 8], strides = [1, 1, 1]} : vector<2x16x64xbf16> to vector<2x16x8xbf16>
    "tpu.trace_start"() <{level = 10 : i32, message = "bid,bjd->bij"}> : () -> ()
    %cst_41 = arith.constant dense<0.000000e+00> : vector<2x8x16xf32>
    %106 = tpu.matmul %101, %104, %cst_41 {dimension_numbers = #tpu.dot_dimension_numbers<[2], [2], [1], [1], [0, 0, 0, 1, 1, 1], [0], [0]>} : vector<2x8x8xbf16>, vector<2x16x8xbf16>, vector<2x8x16xf32> -> vector<2x8x16xf32>
    %cst_42 = arith.constant dense<0.000000e+00> : vector<2x8x8xf32>
    %107 = tpu.matmul %101, %102, %cst_42 {dimension_numbers = #tpu.dot_dimension_numbers<[2], [2], [1], [1], [0, 0, 0, 1, 1, 1], [0], [0]>} : vector<2x8x8xbf16>, vector<2x8x8xbf16>, vector<2x8x8xf32> -> vector<2x8x8xf32>
    "tpu.trace_stop"() : () -> ()
    %cst_43 = arith.constant dense<0xFF800000> : vector<2x8xf32>
    %108 = vector.multi_reduction <maximumf>, %106, %cst_43 [2] : vector<2x8x16xf32> to vector<2x8xf32>
    %109 = vector.shape_cast %108 : vector<2x8xf32> to vector<2x8x1xf32>
    %cst_44 = arith.constant dense<0xFF800000> : vector<2x8xf32>
    %110 = vector.multi_reduction <maximumf>, %107, %cst_44 [2] : vector<2x8x8xf32> to vector<2x8xf32>
    %111 = vector.shape_cast %110 : vector<2x8xf32> to vector<2x8x1xf32>
    %112 = arith.maximumf %109, %111 : vector<2x8x1xf32>
    %113 = vector.broadcast %112 : vector<2x8x1xf32> to vector<2x8x16xf32>
    %114 = arith.subf %106, %113 : vector<2x8x16xf32>
    %115 = math.exp %114 : vector<2x8x16xf32>
    %116 = vector.broadcast %112 : vector<2x8x1xf32> to vector<2x8x8xf32>
    %117 = arith.subf %107, %116 : vector<2x8x8xf32>
    %118 = math.exp %117 : vector<2x8x8xf32>
    %cst_45 = arith.constant dense<0.000000e+00> : vector<2x8xf32>
    %119 = vector.multi_reduction <add>, %115, %cst_45 [2] : vector<2x8x16xf32> to vector<2x8xf32>
    %120 = vector.shape_cast %119 : vector<2x8xf32> to vector<2x8x1xf32>
    %cst_46 = arith.constant dense<0.000000e+00> : vector<2x8xf32>
    %121 = vector.multi_reduction <add>, %118, %cst_46 [2] : vector<2x8x8xf32> to vector<2x8xf32>
    %122 = vector.shape_cast %121 : vector<2x8xf32> to vector<2x8x1xf32>
    %123 = arith.addf %120, %122 : vector<2x8x1xf32>
    %124 = tpu.reciprocal %123 {approx = true} : vector<2x8x1xf32> -> vector<2x8x1xf32>
    %125 = arith.truncf %115 : vector<2x8x16xf32> to vector<2x8x16xbf16>
    "tpu.trace_start"() <{level = 10 : i32, message = "bij,bjd->bid"}> : () -> ()
    %cst_47 = arith.constant dense<0.000000e+00> : vector<2x8x8xf32>
    %126 = tpu.matmul %125, %105, %cst_47 {dimension_numbers = #tpu.dot_dimension_numbers<[2], [1], [1], [2], [0, 0, 0, 1, 1, 2], [0], [0]>} : vector<2x8x16xbf16>, vector<2x16x8xbf16>, vector<2x8x8xf32> -> vector<2x8x8xf32>
    "tpu.trace_stop"() : () -> ()
    %127 = arith.truncf %118 : vector<2x8x8xf32> to vector<2x8x8xbf16>
    "tpu.trace_start"() <{level = 10 : i32, message = "bij,bjd->bid"}> : () -> ()
    %cst_48 = arith.constant dense<0.000000e+00> : vector<2x8x8xf32>
    %128 = tpu.matmul %127, %103, %cst_48 {dimension_numbers = #tpu.dot_dimension_numbers<[2], [1], [1], [2], [0, 0, 0, 1, 1, 2], [0], [0]>} : vector<2x8x8xbf16>, vector<2x8x8xbf16>, vector<2x8x8xf32> -> vector<2x8x8xf32>
    "tpu.trace_stop"() : () -> ()
    %129 = arith.addf %126, %128 : vector<2x8x8xf32>
    %130 = vector.broadcast %124 : vector<2x8x1xf32> to vector<2x8x8xf32>
    %131 = arith.mulf %129, %130 : vector<2x8x8xf32>
    %132 = vector.shape_cast %131 : vector<2x8x8xf32> to vector<16x8xf32>
    %133 = arith.truncf %132 : vector<16x8xf32> to vector<16x8xbf16>
    %134 = vector.extract_strided_slice %62 {offsets = [1, 0, 0], sizes = [1, 8, 32], strides = [1, 1, 1]} : vector<4x8x32xbf16> to vector<1x8x32xbf16>
    %135 = vector.shape_cast %134 : vector<1x8x32xbf16> to vector<8x32xbf16>
    %cst_49 = arith.constant dense<0.000000e+00> : vector<16x32xf32>
    %136 = tpu.matmul %133, %135, %cst_49 {dimension_numbers = #tpu.dot_dimension_numbers<[1], [0], [0], [1], [0, 0, 1, 1], [], []>} : vector<16x8xbf16>, vector<8x32xbf16>, vector<16x32xf32> -> vector<16x32xf32>
    %137 = arith.addf %100, %136 : vector<16x32xf32>
    %138 = vector.extract_strided_slice %59 {offsets = [0, 0, 16], sizes = [2, 8, 8], strides = [1, 1, 1]} : vector<2x8x96xbf16> to vector<2x8x8xbf16>
    %139 = vector.extract_strided_slice %59 {offsets = [0, 0, 48], sizes = [2, 8, 8], strides = [1, 1, 1]} : vector<2x8x96xbf16> to vector<2x8x8xbf16>
    %140 = vector.extract_strided_slice %59 {offsets = [0, 0, 80], sizes = [2, 8, 8], strides = [1, 1, 1]} : vector<2x8x96xbf16> to vector<2x8x8xbf16>
    %141 = vector.extract_strided_slice %61 {offsets = [0, 0, 16], sizes = [2, 16, 8], strides = [1, 1, 1]} : vector<2x16x64xbf16> to vector<2x16x8xbf16>
    %142 = vector.extract_strided_slice %61 {offsets = [0, 0, 48], sizes = [2, 16, 8], strides = [1, 1, 1]} : vector<2x16x64xbf16> to vector<2x16x8xbf16>
    "tpu.trace_start"() <{level = 10 : i32, message = "bid,bjd->bij"}> : () -> ()
    %cst_50 = arith.constant dense<0.000000e+00> : vector<2x8x16xf32>
    %143 = tpu.matmul %138, %141, %cst_50 {dimension_numbers = #tpu.dot_dimension_numbers<[2], [2], [1], [1], [0, 0, 0, 1, 1, 1], [0], [0]>} : vector<2x8x8xbf16>, vector<2x16x8xbf16>, vector<2x8x16xf32> -> vector<2x8x16xf32>
    %cst_51 = arith.constant dense<0.000000e+00> : vector<2x8x8xf32>
    %144 = tpu.matmul %138, %139, %cst_51 {dimension_numbers = #tpu.dot_dimension_numbers<[2], [2], [1], [1], [0, 0, 0, 1, 1, 1], [0], [0]>} : vector<2x8x8xbf16>, vector<2x8x8xbf16>, vector<2x8x8xf32> -> vector<2x8x8xf32>
    "tpu.trace_stop"() : () -> ()
    %cst_52 = arith.constant dense<0xFF800000> : vector<2x8xf32>
    %145 = vector.multi_reduction <maximumf>, %143, %cst_52 [2] : vector<2x8x16xf32> to vector<2x8xf32>
    %146 = vector.shape_cast %145 : vector<2x8xf32> to vector<2x8x1xf32>
    %cst_53 = arith.constant dense<0xFF800000> : vector<2x8xf32>
    %147 = vector.multi_reduction <maximumf>, %144, %cst_53 [2] : vector<2x8x8xf32> to vector<2x8xf32>
    %148 = vector.shape_cast %147 : vector<2x8xf32> to vector<2x8x1xf32>
    %149 = arith.maximumf %146, %148 : vector<2x8x1xf32>
    %150 = vector.broadcast %149 : vector<2x8x1xf32> to vector<2x8x16xf32>
    %151 = arith.subf %143, %150 : vector<2x8x16xf32>
    %152 = math.exp %151 : vector<2x8x16xf32>
    %153 = vector.broadcast %149 : vector<2x8x1xf32> to vector<2x8x8xf32>
    %154 = arith.subf %144, %153 : vector<2x8x8xf32>
    %155 = math.exp %154 : vector<2x8x8xf32>
    %cst_54 = arith.constant dense<0.000000e+00> : vector<2x8xf32>
    %156 = vector.multi_reduction <add>, %152, %cst_54 [2] : vector<2x8x16xf32> to vector<2x8xf32>
    %157 = vector.shape_cast %156 : vector<2x8xf32> to vector<2x8x1xf32>
    %cst_55 = arith.constant dense<0.000000e+00> : vector<2x8xf32>
    %158 = vector.multi_reduction <add>, %155, %cst_55 [2] : vector<2x8x8xf32> to vector<2x8xf32>
    %159 = vector.shape_cast %158 : vector<2x8xf32> to vector<2x8x1xf32>
    %160 = arith.addf %157, %159 : vector<2x8x1xf32>
    %161 = tpu.reciprocal %160 {approx = true} : vector<2x8x1xf32> -> vector<2x8x1xf32>
    %162 = arith.truncf %152 : vector<2x8x16xf32> to vector<2x8x16xbf16>
    "tpu.trace_start"() <{level = 10 : i32, message = "bij,bjd->bid"}> : () -> ()
    %cst_56 = arith.constant dense<0.000000e+00> : vector<2x8x8xf32>
    %163 = tpu.matmul %162, %142, %cst_56 {dimension_numbers = #tpu.dot_dimension_numbers<[2], [1], [1], [2], [0, 0, 0, 1, 1, 2], [0], [0]>} : vector<2x8x16xbf16>, vector<2x16x8xbf16>, vector<2x8x8xf32> -> vector<2x8x8xf32>
    "tpu.trace_stop"() : () -> ()
    %164 = arith.truncf %155 : vector<2x8x8xf32> to vector<2x8x8xbf16>
    "tpu.trace_start"() <{level = 10 : i32, message = "bij,bjd->bid"}> : () -> ()
    %cst_57 = arith.constant dense<0.000000e+00> : vector<2x8x8xf32>
    %165 = tpu.matmul %164, %140, %cst_57 {dimension_numbers = #tpu.dot_dimension_numbers<[2], [1], [1], [2], [0, 0, 0, 1, 1, 2], [0], [0]>} : vector<2x8x8xbf16>, vector<2x8x8xbf16>, vector<2x8x8xf32> -> vector<2x8x8xf32>
    "tpu.trace_stop"() : () -> ()
    %166 = arith.addf %163, %165 : vector<2x8x8xf32>
    %167 = vector.broadcast %161 : vector<2x8x1xf32> to vector<2x8x8xf32>
    %168 = arith.mulf %166, %167 : vector<2x8x8xf32>
    %169 = vector.shape_cast %168 : vector<2x8x8xf32> to vector<16x8xf32>
    %170 = arith.truncf %169 : vector<16x8xf32> to vector<16x8xbf16>
    %171 = vector.extract_strided_slice %62 {offsets = [2, 0, 0], sizes = [1, 8, 32], strides = [1, 1, 1]} : vector<4x8x32xbf16> to vector<1x8x32xbf16>
    %172 = vector.shape_cast %171 : vector<1x8x32xbf16> to vector<8x32xbf16>
    %cst_58 = arith.constant dense<0.000000e+00> : vector<16x32xf32>
    %173 = tpu.matmul %170, %172, %cst_58 {dimension_numbers = #tpu.dot_dimension_numbers<[1], [0], [0], [1], [0, 0, 1, 1], [], []>} : vector<16x8xbf16>, vector<8x32xbf16>, vector<16x32xf32> -> vector<16x32xf32>
    %174 = arith.addf %137, %173 : vector<16x32xf32>
    %175 = vector.extract_strided_slice %59 {offsets = [0, 0, 24], sizes = [2, 8, 8], strides = [1, 1, 1]} : vector<2x8x96xbf16> to vector<2x8x8xbf16>
    %176 = vector.extract_strided_slice %59 {offsets = [0, 0, 56], sizes = [2, 8, 8], strides = [1, 1, 1]} : vector<2x8x96xbf16> to vector<2x8x8xbf16>
    %177 = vector.extract_strided_slice %59 {offsets = [0, 0, 88], sizes = [2, 8, 8], strides = [1, 1, 1]} : vector<2x8x96xbf16> to vector<2x8x8xbf16>
    %178 = vector.extract_strided_slice %61 {offsets = [0, 0, 24], sizes = [2, 16, 8], strides = [1, 1, 1]} : vector<2x16x64xbf16> to vector<2x16x8xbf16>
    %179 = vector.extract_strided_slice %61 {offsets = [0, 0, 56], sizes = [2, 16, 8], strides = [1, 1, 1]} : vector<2x16x64xbf16> to vector<2x16x8xbf16>
    "tpu.trace_start"() <{level = 10 : i32, message = "bid,bjd->bij"}> : () -> ()
    %cst_59 = arith.constant dense<0.000000e+00> : vector<2x8x16xf32>
    %180 = tpu.matmul %175, %178, %cst_59 {dimension_numbers = #tpu.dot_dimension_numbers<[2], [2], [1], [1], [0, 0, 0, 1, 1, 1], [0], [0]>} : vector<2x8x8xbf16>, vector<2x16x8xbf16>, vector<2x8x16xf32> -> vector<2x8x16xf32>
    %cst_60 = arith.constant dense<0.000000e+00> : vector<2x8x8xf32>
    %181 = tpu.matmul %175, %176, %cst_60 {dimension_numbers = #tpu.dot_dimension_numbers<[2], [2], [1], [1], [0, 0, 0, 1, 1, 1], [0], [0]>} : vector<2x8x8xbf16>, vector<2x8x8xbf16>, vector<2x8x8xf32> -> vector<2x8x8xf32>
    "tpu.trace_stop"() : () -> ()
    %cst_61 = arith.constant dense<0xFF800000> : vector<2x8xf32>
    %182 = vector.multi_reduction <maximumf>, %180, %cst_61 [2] : vector<2x8x16xf32> to vector<2x8xf32>
    %183 = vector.shape_cast %182 : vector<2x8xf32> to vector<2x8x1xf32>
    %cst_62 = arith.constant dense<0xFF800000> : vector<2x8xf32>
    %184 = vector.multi_reduction <maximumf>, %181, %cst_62 [2] : vector<2x8x8xf32> to vector<2x8xf32>
    %185 = vector.shape_cast %184 : vector<2x8xf32> to vector<2x8x1xf32>
    %186 = arith.maximumf %183, %185 : vector<2x8x1xf32>
    %187 = vector.broadcast %186 : vector<2x8x1xf32> to vector<2x8x16xf32>
    %188 = arith.subf %180, %187 : vector<2x8x16xf32>
    %189 = math.exp %188 : vector<2x8x16xf32>
    %190 = vector.broadcast %186 : vector<2x8x1xf32> to vector<2x8x8xf32>
    %191 = arith.subf %181, %190 : vector<2x8x8xf32>
    %192 = math.exp %191 : vector<2x8x8xf32>
    %cst_63 = arith.constant dense<0.000000e+00> : vector<2x8xf32>
    %193 = vector.multi_reduction <add>, %189, %cst_63 [2] : vector<2x8x16xf32> to vector<2x8xf32>
    %194 = vector.shape_cast %193 : vector<2x8xf32> to vector<2x8x1xf32>
    %cst_64 = arith.constant dense<0.000000e+00> : vector<2x8xf32>
    %195 = vector.multi_reduction <add>, %192, %cst_64 [2] : vector<2x8x8xf32> to vector<2x8xf32>
    %196 = vector.shape_cast %195 : vector<2x8xf32> to vector<2x8x1xf32>
    %197 = arith.addf %194, %196 : vector<2x8x1xf32>
    %198 = tpu.reciprocal %197 {approx = true} : vector<2x8x1xf32> -> vector<2x8x1xf32>
    %199 = arith.truncf %189 : vector<2x8x16xf32> to vector<2x8x16xbf16>
    "tpu.trace_start"() <{level = 10 : i32, message = "bij,bjd->bid"}> : () -> ()
    %cst_65 = arith.constant dense<0.000000e+00> : vector<2x8x8xf32>
    %200 = tpu.matmul %199, %179, %cst_65 {dimension_numbers = #tpu.dot_dimension_numbers<[2], [1], [1], [2], [0, 0, 0, 1, 1, 2], [0], [0]>} : vector<2x8x16xbf16>, vector<2x16x8xbf16>, vector<2x8x8xf32> -> vector<2x8x8xf32>
    "tpu.trace_stop"() : () -> ()
    %201 = arith.truncf %192 : vector<2x8x8xf32> to vector<2x8x8xbf16>
    "tpu.trace_start"() <{level = 10 : i32, message = "bij,bjd->bid"}> : () -> ()
    %cst_66 = arith.constant dense<0.000000e+00> : vector<2x8x8xf32>
    %202 = tpu.matmul %201, %177, %cst_66 {dimension_numbers = #tpu.dot_dimension_numbers<[2], [1], [1], [2], [0, 0, 0, 1, 1, 2], [0], [0]>} : vector<2x8x8xbf16>, vector<2x8x8xbf16>, vector<2x8x8xf32> -> vector<2x8x8xf32>
    "tpu.trace_stop"() : () -> ()
    %203 = arith.addf %200, %202 : vector<2x8x8xf32>
    %204 = vector.broadcast %198 : vector<2x8x1xf32> to vector<2x8x8xf32>
    %205 = arith.mulf %203, %204 : vector<2x8x8xf32>
    %206 = vector.shape_cast %205 : vector<2x8x8xf32> to vector<16x8xf32>
    %207 = arith.truncf %206 : vector<16x8xf32> to vector<16x8xbf16>
    %208 = vector.extract_strided_slice %62 {offsets = [3, 0, 0], sizes = [1, 8, 32], strides = [1, 1, 1]} : vector<4x8x32xbf16> to vector<1x8x32xbf16>
    %209 = vector.shape_cast %208 : vector<1x8x32xbf16> to vector<8x32xbf16>
    %cst_67 = arith.constant dense<0.000000e+00> : vector<16x32xf32>
    %210 = tpu.matmul %207, %209, %cst_67 {dimension_numbers = #tpu.dot_dimension_numbers<[1], [0], [0], [1], [0, 0, 1, 1], [], []>} : vector<16x8xbf16>, vector<8x32xbf16>, vector<16x32xf32> -> vector<16x32xf32>
    %211 = arith.addf %174, %210 : vector<16x32xf32>
    %212 = vector.shape_cast %211 : vector<16x32xf32> to vector<2x8x32xf32>
    %c0_68 = arith.constant 0 : index
    %c0_69 = arith.constant 0 : index
    %c0_70 = arith.constant 0 : index
    %213 = vector.load %arg10[%c0_68, %c0_69, %c0_70] : memref<2x8x32xf32, #tpu.memory_space<vmem>>, vector<2x8x32xf32>
    tpu.vector_store %arg10[%c0_68, %c0_69, %c0_70], %212 {strides = array<i32>} : memref<2x8x32xf32, #tpu.memory_space<vmem>>, vector<2x8x32xf32>,
    return
  }
  func.func @transform_0(%arg0: i32) -> (i32, i32, i32) {
    %c0_i32 = arith.constant 0 : i32
    %c0_i32_0 = arith.constant 0 : i32
    %c0_i32_1 = arith.constant 0 : i32
    return %arg0, %c0_i32, %c0_i32_0 : i32, i32, i32
  }
  func.func @transform_1(%arg0: i32) -> (i32, i32, i32) {
    %c0_i32 = arith.constant 0 : i32
    %c0_i32_0 = arith.constant 0 : i32
    %c0_i32_1 = arith.constant 0 : i32
    return %arg0, %c0_i32, %c0_i32_0 : i32, i32, i32
  }
  func.func @transform_2(%arg0: i32) -> (i32, i32) {
    %c0_i32 = arith.constant 0 : i32
    %c0_i32_0 = arith.constant 0 : i32
    %c0_i32_1 = arith.constant 0 : i32
    return %c0_i32, %c0_i32_0 : i32, i32
  }
  func.func @transform_3(%arg0: i32) -> (i32, i32) {
    %c0_i32 = arith.constant 0 : i32
    %c0_i32_0 = arith.constant 0 : i32
    %c0_i32_1 = arith.constant 0 : i32
    return %c0_i32, %c0_i32_0 : i32, i32
  }
  func.func @transform_4(%arg0: i32) -> (i32, i32) {
    %c0_i32 = arith.constant 0 : i32
    %c0_i32_0 = arith.constant 0 : i32
    %c0_i32_1 = arith.constant 0 : i32
    return %c0_i32, %c0_i32_0 : i32, i32
  }
  func.func @transform_5(%arg0: i32) -> (i32, i32) {
    %c0_i32 = arith.constant 0 : i32
    %c0_i32_0 = arith.constant 0 : i32
    %c0_i32_1 = arith.constant 0 : i32
    return %c0_i32, %c0_i32_0 : i32, i32
  }
  func.func @transform_6(%arg0: i32) -> (i32, i32) {
    %c0_i32 = arith.constant 0 : i32
    %c0_i32_0 = arith.constant 0 : i32
    %c0_i32_1 = arith.constant 0 : i32
    return %c0_i32, %c0_i32_0 : i32, i32
  }
  func.func @transform_7(%arg0: i32) -> (i32, i32) {
    %c0_i32 = arith.constant 0 : i32
    %c0_i32_0 = arith.constant 0 : i32
    %c0_i32_1 = arith.constant 0 : i32
    return %c0_i32, %c0_i32_0 : i32, i32
  }
  func.func @transform_8(%arg0: i32) -> (i32, i32, i32) {
    %c0_i32 = arith.constant 0 : i32
    %c0_i32_0 = arith.constant 0 : i32
    %c0_i32_1 = arith.constant 0 : i32
    %c0_i32_2 = arith.constant 0 : i32
    return %c0_i32, %c0_i32_0, %c0_i32_1 : i32, i32, i32
  }
  func.func @transform_9(%arg0: i32) -> (i32, i32, i32) {
    %c0_i32 = arith.constant 0 : i32
    %c0_i32_0 = arith.constant 0 : i32
    %c0_i32_1 = arith.constant 0 : i32
    return %arg0, %c0_i32, %c0_i32_0 : i32, i32, i32
  }
}

</mosaic_0001>

<llo_original>
// kernel: tpu_custom_call.1
$region0: #{tpu_custom_call.1}
  #allocation0 [shape = 'u32[]', space=smem, size = 0x4, offset = 0x4, fixed_abs, tag = 'smem constant byte address 0x4 - core index']
  #allocation1 [shape = 'u32[144,128]{1,0:T(1,128)}', space=vmem, size = 0x12000, scoped, tag = 'internal scratch']
  %s0 = inlined_call_operand.hbm [shape: f32[4,16,32], index: 0, kind: input, shape index: {}]
  %s1 = inlined_call_operand.hbm [shape: f32[4,8,32], index: 1, kind: input, shape index: {}]
  %s2 = inlined_call_operand.vmem [shape: f32[1,32], index: 2, kind: input, shape index: {}]
  %s3 = inlined_call_operand.vmem [shape: f32[1,32], index: 3, kind: input, shape index: {}]
  %s4 = inlined_call_operand.vmem [shape: f32[1,32], index: 4, kind: input, shape index: {}]
  %s5 = inlined_call_operand.vmem [shape: f32[1,32], index: 5, kind: input, shape index: {}]
  %s6 = inlined_call_operand.vmem [shape: bf16[32,96], index: 6, kind: input, shape index: {}]
  %s7 = inlined_call_operand.hbm [shape: bf16[32,64], index: 7, kind: input, shape index: {}]
  %s8 = inlined_call_operand.hbm [shape: bf16[4,8,32], index: 8, kind: input, shape index: {}]
  %s9 = inlined_call_operand.hbm [shape: f32[4,8,32], index: 9, kind: output, shape index: {}]
  %s10 = sld [smem:[#allocation0]]
  $region85: #{tpu_custom_call.1} parent=0
    _
  %s12 = ssub.s32 1, %s10
  %s13 = scalar_select 0, %s12, %s10
  $region1: #{tpu_custom_call.1} parent=0
    #allocation2 [shape = 'u8[32768]{0}', space=vmem, size = 0x8000, scoped, tag = 'input window, operand 0']
    #allocation3 [shape = 's32[2]{0}', space=sflag, size = 0x8, scoped, tag = 'scoped memory for tpu_custom_call.1']
    #allocation4 [shape = 's32[2]{0}', space=sflag, size = 0x8, scoped, tag = 'scoped memory for tpu_custom_call.1']
    #allocation5 [shape = 'u8[16384]{0}', space=vmem, size = 0x4000, scoped, tag = 'input window, operand 1']
    #allocation6 [shape = 's32[2]{0}', space=sflag, size = 0x8, scoped, tag = 'scoped memory for tpu_custom_call.1']
    #allocation7 [shape = 'u8[8192]{0}', space=vmem, size = 0x2000, scoped, tag = 'input window, operand 7, single buffered']
    #allocation8 [shape = 'u8[8192]{0}', space=vmem, size = 0x2000, scoped, tag = 'input window, operand 8, single buffered']
    #allocation9 [shape = 's32[1]{0}', space=sflag, size = 0x4, scoped, tag = 'scoped memory for tpu_custom_call.1']
    #allocation10 [shape = 'u8[16384]{0}', space=vmem, size = 0x4000, scoped, tag = 'output window, operand 0']
    %14 = vsyncpa [#allocation3], 0
    %s15 = scalar_lea.sflag [#allocation3], 1
    %16 = vsyncpa %s15, 0
    %17 = vsyncpa [#allocation6], 0
    %s18 = scalar_lea.sflag [#allocation6], 1
    %19 = vsyncpa %s18, 0
    %20 = vsyncpa [#allocation9], 0
    %21 = vsyncpa [#allocation4], 0
    %s22 = scalar_lea.sflag [#allocation4], 1
    %23 = vsyncpa %s22, 0
    loop: start=0, step=1, limit=4
    $region2: #{tpu_custom_call.1} parent=1 // loop_pre_header
      _
    $region3: #{tpu_custom_call.1} parent=1 // loop_header
      %s25 = sphi 0, %s29
      %p26 = scmp.ge.s32.totalorder %s25, 4
      %s35 = sphi 0, %s37
      %s38 = sphi 0, %s35
      %s39 = sphi 0, %s38
      %s55 = sphi 0, %s39
      %s61 = sphi 0, %s63
      %s64 = sphi 0, %s61
      %s65 = sphi 0, %s64
      %s81 = sphi 0, %s65
      %s85 = sphi 0, %s85
      %s87 = sphi 0, %s85
      %s88 = sphi 0, %s87
      %s102 = sphi 0, %s88
      %s106 = sphi 0, %s106
      %s108 = sphi 0, %s106
      %s109 = sphi 0, %s108
      %s123 = sphi 0, %s109
      %s127 = sphi 0, %s127
      %s129 = sphi 0, %s127
      %s130 = sphi 0, %s129
      %s144 = sphi 0, %s130
      %s148 = sphi 0, %s148
      %s150 = sphi 0, %s148
      %s151 = sphi 0, %s150
      %s165 = sphi 0, %s151
      %s169 = sphi 0, %s169
      %s171 = sphi 0, %s169
      %s172 = sphi 0, %s171
      %s186 = sphi 0, %s172
      %s190 = sphi 0, %s190
      %s192 = sphi 0, %s190
      %s193 = sphi 0, %s192
      %s207 = sphi 0, %s193
      %s211 = sphi 0, %s211
      %s213 = sphi 0, %s211
      %s214 = sphi 0, %s213
      %s228 = sphi 0, %s214
      %s234 = sphi 0, %s236
      %s237 = sphi 0, %s234
      %s238 = sphi 0, %s237
      %s254 = sphi 0, %s238
    $region4: #{tpu_custom_call.1} parent=1 // loop_header_branch
      %28 = sbr.rel (%p26) target = $region8
    $region5: #{tpu_custom_call.1} parent=1 // loop_body
      %s30 = ssub.s32 %s25, 1
      %s31 = ssub.s32 %s25, 2
      %s32 = sadd.s32 %s25, 1
      %s33 = ssub.s32 %s25, %s32
      %p34 = scmp.eq.s32.totalorder %s33, 0
      %s36 = sadd.s32 %s35, 1
      %s37 = scalar_select %p34, %s35, %s36
      %p40 = pneg %p34
      %p41 = scmp.eq.s32.totalorder %s25, 1
      %p42 = por %p40, %p41
      %p43 = scmp.ne.s32.totalorder %s35, %s38
      %p44 = scmp.eq.s32.totalorder %s25, 0
      %p45 = por %p43, %p44
      %p46 = scmp.ne.s32.totalorder %s35, %s38
      %p47 = scmp.eq.s32.totalorder %s30, 1
      %p48 = por %p46, %p47
      %p49 = scmp.ne.s32.totalorder %s38, %s39
      %p50 = scmp.eq.s32.totalorder %s30, 0
      %p51 = por %p49, %p50
      %p52 = scmp.ne.s32.totalorder %s38, %s39
      %p53 = scmp.eq.s32.totalorder %s31, 1
      %p54 = por %p52, %p53
      %p56 = scmp.ne.s32.totalorder %s39, %s55
      %p57 = scmp.eq.s32.totalorder %s31, 0
      %p58 = por %p56, %p57
      %s59 = ssub.s32 %s25, %s32
      %p60 = scmp.eq.s32.totalorder %s59, 0
      %s62 = sadd.s32 %s61, 1
      %s63 = scalar_select %p60, %s61, %s62
      %p66 = pneg %p60
      %p67 = scmp.eq.s32.totalorder %s25, 1
      %p68 = por %p66, %p67
      %p69 = scmp.ne.s32.totalorder %s61, %s64
      %p70 = scmp.eq.s32.totalorder %s25, 0
      %p71 = por %p69, %p70
      %p72 = scmp.ne.s32.totalorder %s61, %s64
      %p73 = scmp.eq.s32.totalorder %s30, 1
      %p74 = por %p72, %p73
      %p75 = scmp.ne.s32.totalorder %s64, %s65
      %p76 = scmp.eq.s32.totalorder %s30, 0
      %p77 = por %p75, %p76
      %p78 = scmp.ne.s32.totalorder %s64, %s65
      %p79 = scmp.eq.s32.totalorder %s31, 1
      %p80 = por %p78, %p79
      %p82 = scmp.ne.s32.totalorder %s65, %s81
      %p83 = scmp.eq.s32.totalorder %s31, 0
      %p84 = por %p82, %p83
      %s86 = sadd.s32 %s85, 1
      %p89 = scmp.eq.s32.totalorder %s25, 1
      %p90 = scmp.ne.s32.totalorder %s85, %s87
      %p91 = scmp.eq.s32.totalorder %s25, 0
      %p92 = por %p90, %p91
      %p93 = scmp.ne.s32.totalorder %s85, %s87
      %p94 = scmp.eq.s32.totalorder %s30, 1
      %p95 = por %p93, %p94
      %p96 = scmp.ne.s32.totalorder %s87, %s88
      %p97 = scmp.eq.s32.totalorder %s30, 0
      %p98 = por %p96, %p97
      %p99 = scmp.ne.s32.totalorder %s87, %s88
      %p100 = scmp.eq.s32.totalorder %s31, 1
      %p101 = por %p99, %p100
      %p103 = scmp.ne.s32.totalorder %s88, %s102
      %p104 = scmp.eq.s32.totalorder %s31, 0
      %p105 = por %p103, %p104
      %s107 = sadd.s32 %s106, 1
      %p110 = scmp.eq.s32.totalorder %s25, 1
      %p111 = scmp.ne.s32.totalorder %s106, %s108
      %p112 = scmp.eq.s32.totalorder %s25, 0
      %p113 = por %p111, %p112
      %p114 = scmp.ne.s32.totalorder %s106, %s108
      %p115 = scmp.eq.s32.totalorder %s30, 1
      %p116 = por %p114, %p115
      %p117 = scmp.ne.s32.totalorder %s108, %s109
      %p118 = scmp.eq.s32.totalorder %s30, 0
      %p119 = por %p117, %p118
      %p120 = scmp.ne.s32.totalorder %s108, %s109
      %p121 = scmp.eq.s32.totalorder %s31, 1
      %p122 = por %p120, %p121
      %p124 = scmp.ne.s32.totalorder %s109, %s123
      %p125 = scmp.eq.s32.totalorder %s31, 0
      %p126 = por %p124, %p125
      %s128 = sadd.s32 %s127, 1
      %p131 = scmp.eq.s32.totalorder %s25, 1
      %p132 = scmp.ne.s32.totalorder %s127, %s129
      %p133 = scmp.eq.s32.totalorder %s25, 0
      %p134 = por %p132, %p133
      %p135 = scmp.ne.s32.totalorder %s127, %s129
      %p136 = scmp.eq.s32.totalorder %s30, 1
      %p137 = por %p135, %p136
      %p138 = scmp.ne.s32.totalorder %s129, %s130
      %p139 = scmp.eq.s32.totalorder %s30, 0
      %p140 = por %p138, %p139
      %p141 = scmp.ne.s32.totalorder %s129, %s130
      %p142 = scmp.eq.s32.totalorder %s31, 1
      %p143 = por %p141, %p142
      %p145 = scmp.ne.s32.totalorder %s130, %s144
      %p146 = scmp.eq.s32.totalorder %s31, 0
      %p147 = por %p145, %p146
      %s149 = sadd.s32 %s148, 1
      %p152 = scmp.eq.s32.totalorder %s25, 1
      %p153 = scmp.ne.s32.totalorder %s148, %s150
      %p154 = scmp.eq.s32.totalorder %s25, 0
      %p155 = por %p153, %p154
      %p156 = scmp.ne.s32.totalorder %s148, %s150
      %p157 = scmp.eq.s32.totalorder %s30, 1
      %p158 = por %p156, %p157
      %p159 = scmp.ne.s32.totalorder %s150, %s151
      %p160 = scmp.eq.s32.totalorder %s30, 0
      %p161 = por %p159, %p160
      %p162 = scmp.ne.s32.totalorder %s150, %s151
      %p163 = scmp.eq.s32.totalorder %s31, 1
      %p164 = por %p162, %p163
      %p166 = scmp.ne.s32.totalorder %s151, %s165
      %p167 = scmp.eq.s32.totalorder %s31, 0
      %p168 = por %p166, %p167
      %s170 = sadd.s32 %s169, 1
      %p173 = scmp.eq.s32.totalorder %s25, 1
      %p174 = scmp.ne.s32.totalorder %s169, %s171
      %p175 = scmp.eq.s32.totalorder %s25, 0
      %p176 = por %p174, %p175
      %p177 = scmp.ne.s32.totalorder %s169, %s171
      %p178 = scmp.eq.s32.totalorder %s30, 1
      %p179 = por %p177, %p178
      %p180 = scmp.ne.s32.totalorder %s171, %s172
      %p181 = scmp.eq.s32.totalorder %s30, 0
      %p182 = por %p180, %p181
      %p183 = scmp.ne.s32.totalorder %s171, %s172
      %p184 = scmp.eq.s32.totalorder %s31, 1
      %p185 = por %p183, %p184
      %p187 = scmp.ne.s32.totalorder %s172, %s186
      %p188 = scmp.eq.s32.totalorder %s31, 0
      %p189 = por %p187, %p188
      %s191 = sadd.s32 %s190, 1
      %p194 = scmp.eq.s32.totalorder %s25, 1
      %p195 = scmp.ne.s32.totalorder %s190, %s192
      %p196 = scmp.eq.s32.totalorder %s25, 0
      %p197 = por %p195, %p196
      %p198 = scmp.ne.s32.totalorder %s190, %s192
      %p199 = scmp.eq.s32.totalorder %s30, 1
      %p200 = por %p198, %p199
      %p201 = scmp.ne.s32.totalorder %s192, %s193
      %p202 = scmp.eq.s32.totalorder %s30, 0
      %p203 = por %p201, %p202
      %p204 = scmp.ne.s32.totalorder %s192, %s193
      %p205 = scmp.eq.s32.totalorder %s31, 1
      %p206 = por %p204, %p205
      %p208 = scmp.ne.s32.totalorder %s193, %s207
      %p209 = scmp.eq.s32.totalorder %s31, 0
      %p210 = por %p208, %p209
      %s212 = sadd.s32 %s211, 1
      %p215 = scmp.eq.s32.totalorder %s25, 1
      %p216 = scmp.ne.s32.totalorder %s211, %s213
      %p217 = scmp.eq.s32.totalorder %s25, 0
      %p218 = por %p216, %p217
      %p219 = scmp.ne.s32.totalorder %s211, %s213
      %p220 = scmp.eq.s32.totalorder %s30, 1
      %p221 = por %p219, %p220
      %p222 = scmp.ne.s32.totalorder %s213, %s214
      %p223 = scmp.eq.s32.totalorder %s30, 0
      %p224 = por %p222, %p223
      %p225 = scmp.ne.s32.totalorder %s213, %s214
      %p226 = scmp.eq.s32.totalorder %s31, 1
      %p227 = por %p225, %p226
      %p229 = scmp.ne.s32.totalorder %s214, %s228
      %p230 = scmp.eq.s32.totalorder %s31, 0
      %p231 = por %p229, %p230
      %s232 = ssub.s32 %s25, %s32
      %p233 = scmp.eq.s32.totalorder %s232, 0
      %s235 = sadd.s32 %s234, 1
      %s236 = scalar_select %p233, %s234, %s235
      %p239 = pneg %p233
      %p240 = scmp.eq.s32.totalorder %s25, 1
      %p241 = por %p239, %p240
      %p242 = scmp.ne.s32.totalorder %s234, %s237
      %p243 = scmp.eq.s32.totalorder %s25, 0
      %p244 = por %p242, %p243
      %p245 = scmp.ne.s32.totalorder %s234, %s237
      %p246 = scmp.eq.s32.totalorder %s30, 1
      %p247 = por %p245, %p246
      %p248 = scmp.ne.s32.totalorder %s237, %s238
      %p249 = scmp.eq.s32.totalorder %s30, 0
      %p250 = por %p248, %p249
      %p251 = scmp.ne.s32.totalorder %s237, %s238
      %p252 = scmp.eq.s32.totalorder %s31, 1
      %p253 = por %p251, %p252
      %p255 = scmp.ne.s32.totalorder %s238, %s254
      %p256 = scmp.eq.s32.totalorder %s31, 0
      %p257 = por %p255, %p256
      %p258 = scmp.le.s32.totalorder 1, %s25
      %p259 = scmp.lt.s32.totalorder %s25, 3
      %p260 = pnand %p258, %p259
      %p261 = pneg %p260
      // Predicated region
      $region9: #{tpu_custom_call.1} parent=5 // pred_check
        _
      $region10: #{tpu_custom_call.1} parent=5 // pred_check_branch
        %263 = sbr.rel (%p260) target = $region12
      $region11: #{tpu_custom_call.1} parent=5 // pred_region
        %s264 = ssub.s32 %s25, 1
        // Predicated region
        $region13: #{tpu_custom_call.1} parent=11 // pred_check
          %p265 = pneg %p98
        $region14: #{tpu_custom_call.1} parent=11 // pred_check_branch
          %267 = sbr.rel (%p265) target = $region16
        $region15: #{tpu_custom_call.1} parent=11 // pred_region
          _
        $region16: #{tpu_custom_call.1} parent=11 // pred_fallthru
          _
        // Predicated region
        $region17: #{tpu_custom_call.1} parent=11 // pred_check
          %p268 = pneg %p119
        $region18: #{tpu_custom_call.1} parent=11 // pred_check_branch
          %270 = sbr.rel (%p268) target = $region20
        $region19: #{tpu_custom_call.1} parent=11 // pred_region
          _
        $region20: #{tpu_custom_call.1} parent=11 // pred_fallthru
          _
        // Predicated region
        $region21: #{tpu_custom_call.1} parent=11 // pred_check
          %p271 = pneg %p140
        $region22: #{tpu_custom_call.1} parent=11 // pred_check_branch
          %273 = sbr.rel (%p271) target = $region24
        $region23: #{tpu_custom_call.1} parent=11 // pred_region
          _
        $region24: #{tpu_custom_call.1} parent=11 // pred_fallthru
          _
        // Predicated region
        $region25: #{tpu_custom_call.1} parent=11 // pred_check
          %p274 = pneg %p161
        $region26: #{tpu_custom_call.1} parent=11 // pred_check_branch
          %276 = sbr.rel (%p274) target = $region28
        $region27: #{tpu_custom_call.1} parent=11 // pred_region
          _
        $region28: #{tpu_custom_call.1} parent=11 // pred_fallthru
          _
        // Predicated region
        $region29: #{tpu_custom_call.1} parent=11 // pred_check
          %p277 = pneg %p182
        $region30: #{tpu_custom_call.1} parent=11 // pred_check_branch
          %279 = sbr.rel (%p277) target = $region32
        $region31: #{tpu_custom_call.1} parent=11 // pred_region
          _
        $region32: #{tpu_custom_call.1} parent=11 // pred_fallthru
          _
        // Predicated region
        $region33: #{tpu_custom_call.1} parent=11 // pred_check
          %p280 = pneg %p203
        $region34: #{tpu_custom_call.1} parent=11 // pred_check_branch
          %282 = sbr.rel (%p280) target = $region36
        $region35: #{tpu_custom_call.1} parent=11 // pred_region
          %s284 = ssub.s32 256, 256
          %285 = vsyncadd [#allocation6], %s284
          %s286 = sshll.u32 [#allocation7], 4
          %s287 = int_to_ptr.vmem [resolvable:$true] %s286
          %292 = dma.hbm_to_vmem [thread:$0]  %s7, 256, %s287, [#allocation6], 64, 64, 4
        $region36: #{tpu_custom_call.1} parent=11 // pred_fallthru
          _
        // Predicated region
        $region37: #{tpu_custom_call.1} parent=11 // pred_check
          %p293 = pneg %p224
        $region38: #{tpu_custom_call.1} parent=11 // pred_check_branch
          %295 = sbr.rel (%p293) target = $region40
        $region39: #{tpu_custom_call.1} parent=11 // pred_region
          %s297 = ssub.s32 256, 256
          %298 = vsyncadd [#allocation9], %s297
          %s299 = sshll.u32 [#allocation8], 4
          %s300 = int_to_ptr.vmem [resolvable:$true] %s299
          %305 = dma.hbm_to_vmem [thread:$0]  %s8, 256, %s300, [#allocation9], 64, 64, 4
        $region40: #{tpu_custom_call.1} parent=11 // pred_fallthru
          _
      $region12: #{tpu_custom_call.1} parent=5 // pred_fallthru
        _
      %p306 = scmp.lt.s32.totalorder %s25, 2
      // Predicated region
      $region41: #{tpu_custom_call.1} parent=5 // pred_check
        %p307 = pneg %p306
      $region42: #{tpu_custom_call.1} parent=5 // pred_check_branch
        %309 = sbr.rel (%p307) target = $region44
      $region43: #{tpu_custom_call.1} parent=5 // pred_region
        // Predicated region
        $region45: #{tpu_custom_call.1} parent=43 // pred_check
          %p310 = pneg %p45
        $region46: #{tpu_custom_call.1} parent=43 // pred_check_branch
          %312 = sbr.rel (%p310) target = $region48
        $region47: #{tpu_custom_call.1} parent=43 // pred_region
          %s313 = sand.u32 %s35, 1
          %s314 = scalar_lea.sflag [#allocation3], %s313
          %s315 = sand.u32 %s35, 1
          %s316 = smul.addr %s315, 32
          %s317 = scalar_lea.vmem [#allocation2], %s316
          %s318 = smul.u32 2, %s25
          %s320 = ssub.s32 512, 512
          %321 = vsyncadd %s314, %s320
          %s322 = smul.addr %s318, 2
          %s323 = smul.addr %s322, 128
          %s324 = scalar_lea.hbm %s0, %s323
          %s325 = sshll.u32 %s317, 4
          %s326 = int_to_ptr.vmem [resolvable:$true] %s325
          %331 = dma.hbm_to_vmem [thread:$0]  %s324, 512, %s326, %s314, 128, 128, 8
        $region48: #{tpu_custom_call.1} parent=43 // pred_fallthru
          _
        // Predicated region
        $region49: #{tpu_custom_call.1} parent=43 // pred_check
          %p332 = pneg %p71
        $region50: #{tpu_custom_call.1} parent=43 // pred_check_branch
          %334 = sbr.rel (%p332) target = $region52
        $region51: #{tpu_custom_call.1} parent=43 // pred_region
          %s335 = sand.u32 %s25, 1
          %s336 = scalar_lea.sflag [#allocation6], %s335
          %s337 = sand.u32 %s61, 1
          %s338 = smul.addr %s337, 16
          %s339 = scalar_lea.vmem [#allocation5], %s338
          %s340 = smul.u32 2, %s25
          %s342 = ssub.s32 256, 256
          %343 = vsyncadd %s336, %s342
          %s344 = smul.addr %s340, 128
          %s345 = scalar_lea.hbm %s1, %s344
          %s346 = sshll.u32 %s339, 4
          %s347 = int_to_ptr.vmem [resolvable:$true] %s346
          %352 = dma.hbm_to_vmem [thread:$0]  %s345, 256, %s347, %s336, 128, 128, 8
        $region52: #{tpu_custom_call.1} parent=43 // pred_fallthru
          _
      $region44: #{tpu_custom_call.1} parent=5 // pred_fallthru
        _
      %p353 = scmp.le.s32.totalorder 1, %s25
      %p354 = scmp.lt.s32.totalorder %s25, 3
      %p355 = pnand %p353, %p354
      %p356 = pneg %p355
      // Predicated region
      $region53: #{tpu_custom_call.1} parent=5 // pred_check
        _
      $region54: #{tpu_custom_call.1} parent=5 // pred_check_branch
        %358 = sbr.rel (%p355) target = $region56
      $region55: #{tpu_custom_call.1} parent=5 // pred_region
        %s359 = ssub.s32 %s25, 1
        %s360 = sand.u32 %s38, 1
        %s361 = scalar_lea.sflag [#allocation3], %s360
        %s362 = sand.u32 %s38, 1
        %s363 = smul.addr %s362, 32
        %s364 = scalar_lea.vmem [#allocation2], %s363
        // Predicated region
        $region57: #{tpu_custom_call.1} parent=55 // pred_check
          %p365 = pneg %p51
        $region58: #{tpu_custom_call.1} parent=55 // pred_check_branch
          %367 = sbr.rel (%p365) target = $region60
        $region59: #{tpu_custom_call.1} parent=55 // pred_region
          %368 = dma.done %s361, 512
        $region60: #{tpu_custom_call.1} parent=55 // pred_fallthru
          _
        %s369 = sand.u32 %s30, 1
        %s370 = scalar_lea.sflag [#allocation6], %s369
        %s371 = sand.u32 %s64, 1
        %s372 = smul.addr %s371, 16
        %s373 = scalar_lea.vmem [#allocation5], %s372
        // Predicated region
        $region61: #{tpu_custom_call.1} parent=55 // pred_check
          %p374 = pneg %p77
        $region62: #{tpu_custom_call.1} parent=55 // pred_check_branch
          %376 = sbr.rel (%p374) target = $region64
        $region63: #{tpu_custom_call.1} parent=55 // pred_region
          %377 = dma.done %s370, 256
        $region64: #{tpu_custom_call.1} parent=55 // pred_fallthru
          _
        // Predicated region
        $region65: #{tpu_custom_call.1} parent=55 // pred_check
          %p378 = pneg %p203
        $region66: #{tpu_custom_call.1} parent=55 // pred_check_branch
          %380 = sbr.rel (%p378) target = $region68
        $region67: #{tpu_custom_call.1} parent=55 // pred_region
          %381 = dma.done [#allocation6], 256
        $region68: #{tpu_custom_call.1} parent=55 // pred_fallthru
          _
        // Predicated region
        $region69: #{tpu_custom_call.1} parent=55 // pred_check
          %p382 = pneg %p224
        $region70: #{tpu_custom_call.1} parent=55 // pred_check_branch
          %384 = sbr.rel (%p382) target = $region72
        $region71: #{tpu_custom_call.1} parent=55 // pred_region
          %385 = dma.done [#allocation9], 256
        $region72: #{tpu_custom_call.1} parent=55 // pred_fallthru
          _
        %s386 = sand.u32 %s38, 1
        %s387 = scalar_lea.sflag [#allocation3], %s386
        %s388 = sand.u32 %s38, 1
        %s389 = smul.addr %s388, 32
        %s390 = scalar_lea.vmem [#allocation2], %s389
        %p391 = pneg %p51
        %p392 = pneg %p48
        %s393 = sand.u32 %s30, 1
        %s394 = scalar_lea.sflag [#allocation6], %s393
        %s395 = sand.u32 %s64, 1
        %s396 = smul.addr %s395, 16
        %s397 = scalar_lea.vmem [#allocation5], %s396
        %p398 = pneg %p77
        %p399 = pneg %p74
        %p400 = pneg %p98
        %p401 = pneg %p95
        %p402 = pneg %p119
        %p403 = pneg %p116
        %p404 = pneg %p140
        %p405 = pneg %p137
        %p406 = pneg %p161
        %p407 = pneg %p158
        %p408 = pneg %p182
        %p409 = pneg %p179
        %p410 = pneg %p203
        %p411 = pneg %p200
        %p412 = pneg %p224
        %p413 = pneg %p221
        %p414 = pneg %p250
        %p415 = pneg %p247
        %s416 = sand.u32 %s237, 1
        %s417 = scalar_lea.sflag [#allocation4], %s416
        %s418 = sand.u32 %s237, 1
        %s419 = smul.addr %s418, 16
        %s420 = scalar_lea.vmem [#allocation10], %s419
        %s421 = smul.u32 2, %s30
        %s422 = smul.u32 2, %s30
        %s423 = smul.u32 2, %s30
        %v425 = vld [vmem:[%s364] sm:$0xff]
        %v426 = vld [vmem:[%s364 + $0x8] sm:$0xff]
        %v427 = vld [vmem:[%s364 + $0x10] sm:$0xff]
        %v428 = vld [vmem:[%s364 + $0x18] sm:$0xff]
        %v429 = vld [vmem:[%s373] sm:$0xff]
        %v430 = vld [vmem:[%s373 + $0x8] sm:$0xff]
        %v431 = vld [vmem:[%s2] sm:$0x1]
        %v432 = vld [vmem:[%s3] sm:$0x1]
        %vm433 = vcmask 261120
        %v434 = vsel %vm433, %v425, 0.0
        %435 = vadd.xlane.f32.xlu0 %v434
        %v436 = vpop.xlane.xlu0 %435
        %v437 = vsel %vm433, %v426, 0.0
        %438 = vadd.xlane.f32.xlu0 %v437
        %v439 = vpop.xlane.xlu0 %438
        %v440 = vsel %vm433, %v427, 0.0
        %441 = vadd.xlane.f32.xlu0 %v440
        %v442 = vpop.xlane.xlu0 %441
        %v443 = vsel %vm433, %v428, 0.0
        %444 = vadd.xlane.f32.xlu0 %v443
        %v445 = vpop.xlane.xlu0 %444
        %v446 = vrcp.pop 32.0
        %v447 = vmul.f32 %v436, %v446
        %v448 = vmul.f32 %v439, %v446
        %v449 = vmul.f32 %v442, %v446
        %v450 = vmul.f32 %v445, %v446
        %v451 = vsub.f32 %v425, %v447
        %v452 = vsub.f32 %v426, %v448
        %v453 = vsub.f32 %v427, %v449
        %v454 = vsub.f32 %v428, %v450
        %v455 = vmul.f32 %v451, %v451
        %v456 = vmul.f32 %v452, %v452
        %v457 = vmul.f32 %v453, %v453
        %v458 = vmul.f32 %v454, %v454
        %v459 = vsel %vm433, %v455, 0.0
        %460 = vadd.xlane.f32.xlu0 %v459
        %v461 = vpop.xlane.xlu0 %460
        %v462 = vsel %vm433, %v456, 0.0
        %463 = vadd.xlane.f32.xlu0 %v462
        %v464 = vpop.xlane.xlu0 %463
        %v465 = vsel %vm433, %v457, 0.0
        %466 = vadd.xlane.f32.xlu0 %v465
        %v467 = vpop.xlane.xlu0 %466
        %v468 = vsel %vm433, %v458, 0.0
        %469 = vadd.xlane.f32.xlu0 %v468
        %v470 = vpop.xlane.xlu0 %469
        %v471 = vmul.f32 %v461, %v446
        %v472 = vmul.f32 %v464, %v446
        %v473 = vmul.f32 %v467, %v446
        %v474 = vmul.f32 %v470, %v446
        %v475 = vadd.f32 %v471, 1e-05
        %v476 = vadd.f32 %v472, 1e-05
        %v477 = vadd.f32 %v473, 1e-05
        %v478 = vadd.f32 %v474, 1e-05
        %v479 = vrsqrt.pop %v475
        %v480 = vrsqrt.pop %v476
        %v481 = vrsqrt.pop %v477
        %v482 = vrsqrt.pop %v478
        %v483 = vmul.f32 %v451, %v479
        %v484 = vmul.f32 %v452, %v480
        %v485 = vmul.f32 %v453, %v481
        %v486 = vmul.f32 %v454, %v482
        %v488 = vlaneseq
        %v489 = vshrl.u32 %v488, 7
        %v490 = vsub.s32 0, %v489
        %v491 = vrot.slane %v431, %v490
        %v493 = vmul.f32 %v483, %v491
        %v494 = vmul.f32 %v484, %v491
        %v495 = vmul.f32 %v485, %v491
        %v496 = vmul.f32 %v486, %v491
        %v498 = vlaneseq
        %v499 = vshrl.u32 %v498, 7
        %v500 = vsub.s32 0, %v499
        %v501 = vrot.slane %v432, %v500
        %v503 = vadd.f32 %v493, %v501
        %v504 = vadd.f32 %v494, %v501
        %v505 = vadd.f32 %v495, %v501
        %v506 = vadd.f32 %v496, %v501
        %v507 = vld [vmem:[%s4] sm:$0x1]
        %v508 = vld [vmem:[%s5] sm:$0x1]
        %v509 = vsel %vm433, %v429, 0.0
        %510 = vadd.xlane.f32.xlu0 %v509
        %v511 = vpop.xlane.xlu0 %510
        %v512 = vsel %vm433, %v430, 0.0
        %513 = vadd.xlane.f32.xlu0 %v512
        %v514 = vpop.xlane.xlu0 %513
        %v515 = vmul.f32 %v511, %v446
        %v516 = vmul.f32 %v514, %v446
        %v517 = vsub.f32 %v429, %v515
        %v518 = vsub.f32 %v430, %v516
        %v519 = vmul.f32 %v517, %v517
        %v520 = vmul.f32 %v518, %v518
        %v521 = vsel %vm433, %v519, 0.0
        %522 = vadd.xlane.f32.xlu0 %v521
        %v523 = vpop.xlane.xlu0 %522
        %v524 = vsel %vm433, %v520, 0.0
        %525 = vadd.xlane.f32.xlu0 %v524
        %v526 = vpop.xlane.xlu0 %525
        %v527 = vmul.f32 %v523, %v446
        %v528 = vmul.f32 %v526, %v446
        %v529 = vadd.f32 %v527, 1e-05
        %v530 = vadd.f32 %v528, 1e-05
        %v531 = vrsqrt.pop %v529
        %v532 = vrsqrt.pop %v530
        %v533 = vmul.f32 %v517, %v531
        %v534 = vmul.f32 %v518, %v532
        %v536 = vlaneseq
        %v537 = vshrl.u32 %v536, 7
        %v538 = vsub.s32 0, %v537
        %v539 = vrot.slane %v507, %v538
        %v541 = vmul.f32 %v533, %v539
        %v542 = vmul.f32 %v534, %v539
        %v544 = vlaneseq
        %v545 = vshrl.u32 %v544, 7
        %v546 = vsub.s32 0, %v545
        %v547 = vrot.slane %v508, %v546
        %v549 = vadd.f32 %v541, %v547
        %v550 = vadd.f32 %v542, %v547
        %v551 = vpack.c.bf16 %v550, %v549
        %v552 = vld [vmem:[%s6] sm:$0xf]
        %v553 = vld [vmem:[%s6 + $0x4] sm:$0xf]
        %v554 = vld [vmem:[%s6 + $0x8] sm:$0xf]
        %v555 = vld [vmem:[%s6 + $0xc] sm:$0xf]
        %v560 = vunpack.c.l.b16 %v552
        %v561 = vunpack.c.l.b16 %v553
        %v562 = vunpack.c.l.b16 %v554
        %v563 = vunpack.c.l.b16 %v555
        %v564 = vpack.c.b16 %v561, %v560
        %v565 = vpack.c.b16 %v563, %v562
        %v569 = vsel %vm433, %v551, 0
        %571 = vmatprep.subr.bf16.mxu0 0
        %572 = vmatpush1.bf16.msra.mxu0 %v564
        %573 = vmatprep.subr.bf16.mxu0 0
        %574 = vmatpush1.bf16.msra.mxu0 %v565
        %575 = vmatprep.subr.bf16.mxu0 0
        %576 = vmatpush1.bf16.msra.mxu0 0
        %577 = vmatprep.subr.bf16.mxu0 0
        %578 = vmatpush1.bf16.msra.mxu0 0
        %579 = vmatprep.subr.bf16.mxu0 0
        %580 = vmatpush1.bf16.msra.mxu0 0
        %581 = vmatprep.subr.bf16.mxu0 0
        %582 = vmatpush1.bf16.msra.mxu0 0
        %583 = vmatprep.subr.bf16.mxu0 0
        %584 = vmatpush1.bf16.msra.mxu0 0
        %585 = vmatprep.subr.bf16.mxu0 0
        %586 = vmatpush1.bf16.msra.mxu0 0
        %587 = vmatprep.subr.bf16.mxu0 0
        %588 = vmatpush1.bf16.msra.mxu0 0
        %589 = vmatprep.subr.bf16.mxu0 0
        %590 = vmatpush1.bf16.msra.mxu0 0
        %591 = vmatprep.subr.bf16.mxu0 0
        %592 = vmatpush1.bf16.msra.mxu0 0
        %593 = vmatprep.subr.bf16.mxu0 0
        %594 = vmatpush1.bf16.msra.mxu0 0
        %595 = vmatprep.subr.bf16.mxu0 0
        %596 = vmatpush1.bf16.msra.mxu0 0
        %597 = vmatprep.subr.bf16.mxu0 0
        %598 = vmatpush1.bf16.msra.mxu0 0
        %599 = vmatprep.subr.bf16.mxu0 0
        %600 = vmatpush1.bf16.msra.mxu0 0
        %601 = vmatprep.subr.bf16.mxu0 0
        %602 = vmatpush1.bf16.msra.mxu0 0
        %603 = vmatprep.mubr.bf16.mxu0 0
        %604 = vmatmul.mubr.bf16.gmra.mrb[0].mxu0 %v569
        %v605 = vpop.f32.mrb[0].mxu0
        %v606 = vadd.f32 0.0, %v605
        %v607 = vpop.f32.mrb[0].mxu0
        %v608 = vpop.f32.mrb[0].mxu0
        %v609 = vadd.f32 0.0, %v608
        %v610 = vpop.f32.mrb[0].mxu0
        %611 = vdwg.mxu0
        %v612 = vpack.c.bf16 %v504, %v503
        %v613 = vpack.c.bf16 %v506, %v505
        %v614 = vld [vmem:[#allocation7] sm:$0xf]
        %v615 = vld [vmem:[#allocation7 + $0x4] sm:$0xf]
        %v616 = vld [vmem:[#allocation7 + $0x8] sm:$0xf]
        %v617 = vld [vmem:[#allocation7 + $0xc] sm:$0xf]
        %v622 = vunpack.c.l.b16 %v614
        %v623 = vunpack.c.l.b16 %v615
        %v624 = vunpack.c.l.b16 %v616
        %v625 = vunpack.c.l.b16 %v617
        %v626 = vpack.c.b16 %v623, %v622
        %v627 = vpack.c.b16 %v625, %v624
        %v631 = vsel %vm433, %v612, 0
        %v634 = vsel %vm433, %v613, 0
        %636 = vmatprep.subr.bf16.mxu0 0
        %637 = vmatpush1.bf16.msra.mxu0 %v626
        %638 = vmatprep.subr.bf16.mxu0 0
        %639 = vmatpush1.bf16.msra.mxu0 %v627
        %640 = vmatprep.subr.bf16.mxu0 0
        %641 = vmatpush1.bf16.msra.mxu0 0
        %642 = vmatprep.subr.bf16.mxu0 0
        %643 = vmatpush1.bf16.msra.mxu0 0
        %644 = vmatprep.subr.bf16.mxu0 0
        %645 = vmatpush1.bf16.msra.mxu0 0
        %646 = vmatprep.subr.bf16.mxu0 0
        %647 = vmatpush1.bf16.msra.mxu0 0
        %648 = vmatprep.subr.bf16.mxu0 0
        %649 = vmatpush1.bf16.msra.mxu0 0
        %650 = vmatprep.subr.bf16.mxu0 0
        %651 = vmatpush1.bf16.msra.mxu0 0
        %652 = vmatprep.subr.bf16.mxu0 0
        %653 = vmatpush1.bf16.msra.mxu0 0
        %654 = vmatprep.subr.bf16.mxu0 0
        %655 = vmatpush1.bf16.msra.mxu0 0
        %656 = vmatprep.subr.bf16.mxu0 0
        %657 = vmatpush1.bf16.msra.mxu0 0
        %658 = vmatprep.subr.bf16.mxu0 0
        %659 = vmatpush1.bf16.msra.mxu0 0
        %660 = vmatprep.subr.bf16.mxu0 0
        %661 = vmatpush1.bf16.msra.mxu0 0
        %662 = vmatprep.subr.bf16.mxu0 0
        %663 = vmatpush1.bf16.msra.mxu0 0
        %664 = vmatprep.subr.bf16.mxu0 0
        %665 = vmatpush1.bf16.msra.mxu0 0
        %666 = vmatprep.subr.bf16.mxu0 0
        %667 = vmatpush1.bf16.msra.mxu0 0
        %668 = vmatprep.mubr.bf16.mxu0 0
        %669 = vmatmul.mubr.bf16.gmra.mrb[0].mxu0 %v631
        %v670 = vpop.f32.mrb[0].mxu0
        %v671 = vadd.f32 0.0, %v670
        %v672 = vpop.f32.mrb[0].mxu0
        %v673 = vpop.f32.mrb[0].mxu0
        %v674 = vadd.f32 0.0, %v673
        %v675 = vpop.f32.mrb[0].mxu0
        %676 = vmatprep.mubr.bf16.mxu0 0
        %677 = vmatmul.mubr.bf16.gmra.mrb[0].mxu0 %v634
        %v678 = vpop.f32.mrb[0].mxu0
        %v679 = vadd.f32 0.0, %v678
        %v680 = vpop.f32.mrb[0].mxu0
        %v681 = vpop.f32.mrb[0].mxu0
        %v682 = vadd.f32 0.0, %v681
        %v683 = vpop.f32.mrb[0].mxu0
        %684 = vdwg.mxu0
        %v685 = vpack.c.bf16 %v609, %v606
        %v687 = vunpack.c.l.b16 %v685
        %v688 = vunpack.c.h.b16 %v685
        %v689 = vpack.c.b16 %v687, %v687
        %v690 = vpack.c.b16 %v688, %v688
        %v691 = vpack.c.bf16 %v674, %v671
        %v692 = vpack.c.bf16 %v682, %v679
        %v693 = vld [vmem:[#allocation8] sm:$0xf]
        %v694 = vld [vmem:[#allocation8 + $0x4] sm:$0xf]
        %v695 = vld [vmem:[#allocation8 + $0x8] sm:$0xf]
        %v696 = vld [vmem:[#allocation8 + $0xc] sm:$0xf]
        %vm697 = vcmask 64512
        %v699 = vsel %vm697, %v689, 0
        %v702 = vsel %vm697, %v691, 0
        %704 = vmatprep.subr.bf16.mxu0 0
        %705 = vmatpush1.bf16.xpose.msra.mxu0 %v702
        %706 = vmatprep.subr.bf16.mxu0 0
        %707 = vmatpush1.bf16.xpose.msra.mxu0 0
        %708 = vmatprep.subr.bf16.mxu0 0
        %709 = vmatpush1.bf16.xpose.msra.mxu0 0
        %710 = vmatprep.subr.bf16.mxu0 0
        %711 = vmatpush1.bf16.xpose.msra.mxu0 0
        %712 = vmatprep.subr.bf16.mxu0 0
        %713 = vmatpush1.bf16.xpose.msra.mxu0 0
        %714 = vmatprep.subr.bf16.mxu0 0
        %715 = vmatpush1.bf16.xpose.msra.mxu0 0
        %716 = vmatprep.subr.bf16.mxu0 0
        %717 = vmatpush1.bf16.xpose.msra.mxu0 0
        %718 = vmatprep.subr.bf16.mxu0 0
        %719 = vmatpush1.bf16.xpose.msra.mxu0 0
        %720 = vmatprep.subr.bf16.mxu0 0
        %721 = vmatpush1.bf16.xpose.msra.mxu0 0
        %722 = vmatprep.subr.bf16.mxu0 0
        %723 = vmatpush1.bf16.xpose.msra.mxu0 0
        %724 = vmatprep.subr.bf16.mxu0 0
        %725 = vmatpush1.bf16.xpose.msra.mxu0 0
        %726 = vmatprep.subr.bf16.mxu0 0
        %727 = vmatpush1.bf16.xpose.msra.mxu0 0
        %728 = vmatprep.subr.bf16.mxu0 0
        %729 = vmatpush1.bf16.xpose.msra.mxu0 0
        %730 = vmatprep.subr.bf16.mxu0 0
        %731 = vmatpush1.bf16.xpose.msra.mxu0 0
        %732 = vmatprep.subr.bf16.mxu0 0
        %733 = vmatpush1.bf16.xpose.msra.mxu0 0
        %734 = vmatprep.subr.bf16.mxu0 0
        %735 = vmatpush1.bf16.xpose.msra.mxu0 0
        %736 = vmatprep.mubr.bf16.mxu0 0
        %737 = vmatmul.mubr.bf16.gmra.mrb[0].mxu0 %v699
        %v738 = vpop.f32.mrb[0].mxu0
        %v739 = vadd.f32 0.0, %v738
        %v740 = vpop.f32.mrb[0].mxu0
        %v741 = vpop.f32.mrb[0].mxu0
        %v742 = vpop.f32.mrb[0].mxu0
        %743 = vdwg.mxu0
        %v745 = vsel %vm697, %v690, 0
        %v748 = vsel %vm697, %v692, 0
        %750 = vmatprep.subr.bf16.mxu0 0
        %751 = vmatpush1.bf16.xpose.msra.mxu0 %v748
        %752 = vmatprep.subr.bf16.mxu0 0
        %753 = vmatpush1.bf16.xpose.msra.mxu0 0
        %754 = vmatprep.subr.bf16.mxu0 0
        %755 = vmatpush1.bf16.xpose.msra.mxu0 0
        %756 = vmatprep.subr.bf16.mxu0 0
        %757 = vmatpush1.bf16.xpose.msra.mxu0 0
        %758 = vmatprep.subr.bf16.mxu0 0
        %759 = vmatpush1.bf16.xpose.msra.mxu0 0
        %760 = vmatprep.subr.bf16.mxu0 0
        %761 = vmatpush1.bf16.xpose.msra.mxu0 0
        %762 = vmatprep.subr.bf16.mxu0 0
        %763 = vmatpush1.bf16.xpose.msra.mxu0 0
        %764 = vmatprep.subr.bf16.mxu0 0
        %765 = vmatpush1.bf16.xpose.msra.mxu0 0
        %766 = vmatprep.subr.bf16.mxu0 0
        %767 = vmatpush1.bf16.xpose.msra.mxu0 0
        %768 = vmatprep.subr.bf16.mxu0 0
        %769 = vmatpush1.bf16.xpose.msra.mxu0 0
        %770 = vmatprep.subr.bf16.mxu0 0
        %771 = vmatpush1.bf16.xpose.msra.mxu0 0
        %772 = vmatprep.subr.bf16.mxu0 0
        %773 = vmatpush1.bf16.xpose.msra.mxu0 0
        %774 = vmatprep.subr.bf16.mxu0 0
        %775 = vmatpush1.bf16.xpose.msra.mxu0 0
        %776 = vmatprep.subr.bf16.mxu0 0
        %777 = vmatpush1.bf16.xpose.msra.mxu0 0
        %778 = vmatprep.subr.bf16.mxu0 0
        %779 = vmatpush1.bf16.xpose.msra.mxu0 0
        %780 = vmatprep.subr.bf16.mxu0 0
        %781 = vmatpush1.bf16.xpose.msra.mxu0 0
        %782 = vmatprep.mubr.bf16.mxu0 0
        %783 = vmatmul.mubr.bf16.gmra.mrb[0].mxu0 %v745
        %v784 = vpop.f32.mrb[0].mxu0
        %v785 = vadd.f32 0.0, %v784
        %v786 = vpop.f32.mrb[0].mxu0
        %v787 = vpop.f32.mrb[0].mxu0
        %v788 = vpop.f32.mrb[0].mxu0
        %789 = vdwg.mxu0
        %790 = vrot.lane.b32.xlu0 %v689, 96
        %v791 = vpop.permute.xlu0 %790
        %v793 = vsel %vm697, %v791, 0
        %795 = vmatprep.subr.bf16.mxu0 0
        %796 = vmatpush1.bf16.xpose.msra.mxu0 %v793
        %797 = vmatprep.subr.bf16.mxu0 0
        %798 = vmatpush1.bf16.xpose.msra.mxu0 0
        %799 = vmatprep.subr.bf16.mxu0 0
        %800 = vmatpush1.bf16.xpose.msra.mxu0 0
        %801 = vmatprep.subr.bf16.mxu0 0
        %802 = vmatpush1.bf16.xpose.msra.mxu0 0
        %803 = vmatprep.subr.bf16.mxu0 0
        %804 = vmatpush1.bf16.xpose.msra.mxu0 0
        %805 = vmatprep.subr.bf16.mxu0 0
        %806 = vmatpush1.bf16.xpose.msra.mxu0 0
        %807 = vmatprep.subr.bf16.mxu0 0
        %808 = vmatpush1.bf16.xpose.msra.mxu0 0
        %809 = vmatprep.subr.bf16.mxu0 0
        %810 = vmatpush1.bf16.xpose.msra.mxu0 0
        %811 = vmatprep.subr.bf16.mxu0 0
        %812 = vmatpush1.bf16.xpose.msra.mxu0 0
        %813 = vmatprep.subr.bf16.mxu0 0
        %814 = vmatpush1.bf16.xpose.msra.mxu0 0
        %815 = vmatprep.subr.bf16.mxu0 0
        %816 = vmatpush1.bf16.xpose.msra.mxu0 0
        %817 = vmatprep.subr.bf16.mxu0 0
        %818 = vmatpush1.bf16.xpose.msra.mxu0 0
        %819 = vmatprep.subr.bf16.mxu0 0
        %820 = vmatpush1.bf16.xpose.msra.mxu0 0
        %821 = vmatprep.subr.bf16.mxu0 0
        %822 = vmatpush1.bf16.xpose.msra.mxu0 0
        %823 = vmatprep.subr.bf16.mxu0 0
        %824 = vmatpush1.bf16.xpose.msra.mxu0 0
        %825 = vmatprep.subr.bf16.mxu0 0
        %826 = vmatpush1.bf16.xpose.msra.mxu0 0
        %827 = vmatprep.mubr.bf16.mxu0 0
        %828 = vmatmul.mubr.bf16.gmra.mrb[0].mxu0 %v699
        %v829 = vpop.f32.mrb[0].mxu0
        %v830 = vadd.f32 0.0, %v829
        %v831 = vpop.f32.mrb[0].mxu0
        %v832 = vpop.f32.mrb[0].mxu0
        %v833 = vpop.f32.mrb[0].mxu0
        %834 = vdwg.mxu0
        %835 = vrot.lane.b32.xlu0 %v690, 96
        %v836 = vpop.permute.xlu0 %835
        %v838 = vsel %vm697, %v836, 0
        %840 = vmatprep.subr.bf16.mxu0 0
        %841 = vmatpush1.bf16.xpose.msra.mxu0 %v838
        %842 = vmatprep.subr.bf16.mxu0 0
        %843 = vmatpush1.bf16.xpose.msra.mxu0 0
        %844 = vmatprep.subr.bf16.mxu0 0
        %845 = vmatpush1.bf16.xpose.msra.mxu0 0
        %846 = vmatprep.subr.bf16.mxu0 0
        %847 = vmatpush1.bf16.xpose.msra.mxu0 0
        %848 = vmatprep.subr.bf16.mxu0 0
        %849 = vmatpush1.bf16.xpose.msra.mxu0 0
        %850 = vmatprep.subr.bf16.mxu0 0
        %851 = vmatpush1.bf16.xpose.msra.mxu0 0
        %852 = vmatprep.subr.bf16.mxu0 0
        %853 = vmatpush1.bf16.xpose.msra.mxu0 0
        %854 = vmatprep.subr.bf16.mxu0 0
        %855 = vmatpush1.bf16.xpose.msra.mxu0 0
        %856 = vmatprep.subr.bf16.mxu0 0
        %857 = vmatpush1.bf16.xpose.msra.mxu0 0
        %858 = vmatprep.subr.bf16.mxu0 0
        %859 = vmatpush1.bf16.xpose.msra.mxu0 0
        %860 = vmatprep.subr.bf16.mxu0 0
        %861 = vmatpush1.bf16.xpose.msra.mxu0 0
        %862 = vmatprep.subr.bf16.mxu0 0
        %863 = vmatpush1.bf16.xpose.msra.mxu0 0
        %864 = vmatprep.subr.bf16.mxu0 0
        %865 = vmatpush1.bf16.xpose.msra.mxu0 0
        %866 = vmatprep.subr.bf16.mxu0 0
        %867 = vmatpush1.bf16.xpose.msra.mxu0 0
        %868 = vmatprep.subr.bf16.mxu0 0
        %869 = vmatpush1.bf16.xpose.msra.mxu0 0
        %870 = vmatprep.subr.bf16.mxu0 0
        %871 = vmatpush1.bf16.xpose.msra.mxu0 0
        %872 = vmatprep.mubr.bf16.mxu0 0
        %873 = vmatmul.mubr.bf16.gmra.mrb[0].mxu0 %v745
        %v874 = vpop.f32.mrb[0].mxu0
        %v875 = vadd.f32 0.0, %v874
        %v876 = vpop.f32.mrb[0].mxu0
        %v877 = vpop.f32.mrb[0].mxu0
        %v878 = vpop.f32.mrb[0].mxu0
        %879 = vdwg.mxu0
        %vm880 = vcmask 130048
        %v881 = vsel %vm880, %v739, -inf
        %882 = vmax.xlane.f32.xlu0 %v881
        %v883 = vpop.xlane.xlu0 %882
        %v884 = vsel %vm880, %v785, -inf
        %885 = vmax.xlane.f32.xlu0 %v884
        %v886 = vpop.xlane.xlu0 %885
        %v887 = vsel %vm697, %v830, -inf
        %888 = vmax.xlane.f32.xlu0 %v887
        %v889 = vpop.xlane.xlu0 %888
        %v890 = vsel %vm697, %v875, -inf
        %891 = vmax.xlane.f32.xlu0 %v890
        %v892 = vpop.xlane.xlu0 %891
        %v893 = vmax.f32 %v883, %v889
        %v894 = vmax.f32 %v886, %v892
        %v895 = vsub.f32 %v739, %v893
        %v896 = vsub.f32 %v785, %v894
        %v897 = vmul.f32 %v895, 1.442695
        %v898 = vpow.pop %v897
        %v899 = vmul.f32 %v896, 1.442695
        %v900 = vpow.pop %v899
        %v901 = vsub.f32 %v830, %v893
        %v902 = vsub.f32 %v875, %v894
        %v903 = vmul.f32 %v901, 1.442695
        %v904 = vpow.pop %v903
        %v905 = vmul.f32 %v902, 1.442695
        %v906 = vpow.pop %v905
        %v907 = vsel %vm880, %v898, 0.0
        %908 = vadd.xlane.f32.xlu0 %v907
        %v909 = vpop.xlane.xlu0 %908
        %v910 = vsel %vm880, %v900, 0.0
        %911 = vadd.xlane.f32.xlu0 %v910
        %v912 = vpop.xlane.xlu0 %911
        %v913 = vsel %vm697, %v904, 0.0
        %914 = vadd.xlane.f32.xlu0 %v913
        %v915 = vpop.xlane.xlu0 %914
        %v916 = vsel %vm697, %v906, 0.0
        %917 = vadd.xlane.f32.xlu0 %v916
        %v918 = vpop.xlane.xlu0 %917
        %v919 = vadd.f32 %v909, %v915
        %v920 = vadd.f32 %v912, %v918
        %v921 = vrcp.pop %v919
        %v922 = vrcp.pop %v920
        %v923 = vpack.c.bf16 %v898, %v898
        %v924 = vpack.c.bf16 %v900, %v900
        %v925 = vpack.c.bf16 %v904, %v904
        %v926 = vpack.c.bf16 %v906, %v906
        %927 = vrot.lane.b32.xlu0 %v689, 64
        %v928 = vpop.permute.xlu0 %927
        %v930 = vsel %vm697, %v925, 0
        %vm932 = vcmask 1043456
        %v934 = vsel %vm932, %v928, 0
        %936 = vmatprep.subr.bf16.mxu0 0
        %937 = vmatpush1.bf16.msra.mxu0 %v934
        %938 = vmatprep.subr.bf16.mxu0 0
        %939 = vmatpush1.bf16.msra.mxu0 0
        %940 = vmatprep.subr.bf16.mxu0 0
        %941 = vmatpush1.bf16.msra.mxu0 0
        %942 = vmatprep.subr.bf16.mxu0 0
        %943 = vmatpush1.bf16.msra.mxu0 0
        %944 = vmatprep.subr.bf16.mxu0 0
        %945 = vmatpush1.bf16.msra.mxu0 0
        %946 = vmatprep.subr.bf16.mxu0 0
        %947 = vmatpush1.bf16.msra.mxu0 0
        %948 = vmatprep.subr.bf16.mxu0 0
        %949 = vmatpush1.bf16.msra.mxu0 0
        %950 = vmatprep.subr.bf16.mxu0 0
        %951 = vmatpush1.bf16.msra.mxu0 0
        %952 = vmatprep.subr.bf16.mxu0 0
        %953 = vmatpush1.bf16.msra.mxu0 0
        %954 = vmatprep.subr.bf16.mxu0 0
        %955 = vmatpush1.bf16.msra.mxu0 0
        %956 = vmatprep.subr.bf16.mxu0 0
        %957 = vmatpush1.bf16.msra.mxu0 0
        %958 = vmatprep.subr.bf16.mxu0 0
        %959 = vmatpush1.bf16.msra.mxu0 0
        %960 = vmatprep.subr.bf16.mxu0 0
        %961 = vmatpush1.bf16.msra.mxu0 0
        %962 = vmatprep.subr.bf16.mxu0 0
        %963 = vmatpush1.bf16.msra.mxu0 0
        %964 = vmatprep.subr.bf16.mxu0 0
        %965 = vmatpush1.bf16.msra.mxu0 0
        %966 = vmatprep.subr.bf16.mxu0 0
        %967 = vmatpush1.bf16.msra.mxu0 0
        %968 = vmatprep.mubr.bf16.mxu0 0
        %969 = vmatmul.mubr.bf16.gmra.mrb[0].mxu0 %v930
        %v970 = vpop.f32.mrb[0].mxu0
        %v971 = vadd.f32 0.0, %v970
        %v972 = vpop.f32.mrb[0].mxu0
        %v973 = vpop.f32.mrb[0].mxu0
        %v974 = vpop.f32.mrb[0].mxu0
        %975 = vdwg.mxu0
        %976 = vrot.lane.b32.xlu0 %v690, 64
        %v977 = vpop.permute.xlu0 %976
        %v979 = vsel %vm697, %v926, 0
        %v982 = vsel %vm932, %v977, 0
        %984 = vmatprep.subr.bf16.mxu0 0
        %985 = vmatpush1.bf16.msra.mxu0 %v982
        %986 = vmatprep.subr.bf16.mxu0 0
        %987 = vmatpush1.bf16.msra.mxu0 0
        %988 = vmatprep.subr.bf16.mxu0 0
        %989 = vmatpush1.bf16.msra.mxu0 0
        %990 = vmatprep.subr.bf16.mxu0 0
        %991 = vmatpush1.bf16.msra.mxu0 0
        %992 = vmatprep.subr.bf16.mxu0 0
        %993 = vmatpush1.bf16.msra.mxu0 0
        %994 = vmatprep.subr.bf16.mxu0 0
        %995 = vmatpush1.bf16.msra.mxu0 0
        %996 = vmatprep.subr.bf16.mxu0 0
        %997 = vmatpush1.bf16.msra.mxu0 0
        %998 = vmatprep.subr.bf16.mxu0 0
        %999 = vmatpush1.bf16.msra.mxu0 0
        %1000 = vmatprep.subr.bf16.mxu0 0
        %1001 = vmatpush1.bf16.msra.mxu0 0
        %1002 = vmatprep.subr.bf16.mxu0 0
        %1003 = vmatpush1.bf16.msra.mxu0 0
        %1004 = vmatprep.subr.bf16.mxu0 0
        %1005 = vmatpush1.bf16.msra.mxu0 0
        %1006 = vmatprep.subr.bf16.mxu0 0
        %1007 = vmatpush1.bf16.msra.mxu0 0
        %1008 = vmatprep.subr.bf16.mxu0 0
        %1009 = vmatpush1.bf16.msra.mxu0 0
        %1010 = vmatprep.subr.bf16.mxu0 0
        %1011 = vmatpush1.bf16.msra.mxu0 0
        %1012 = vmatprep.subr.bf16.mxu0 0
        %1013 = vmatpush1.bf16.msra.mxu0 0
        %1014 = vmatprep.subr.bf16.mxu0 0
        %1015 = vmatpush1.bf16.msra.mxu0 0
        %1016 = vmatprep.mubr.bf16.mxu0 0
        %1017 = vmatmul.mubr.bf16.gmra.mrb[0].mxu0 %v979
        %v1018 = vpop.f32.mrb[0].mxu0
        %v1019 = vadd.f32 0.0, %v1018
        %v1020 = vpop.f32.mrb[0].mxu0
        %v1021 = vpop.f32.mrb[0].mxu0
        %v1022 = vpop.f32.mrb[0].mxu0
        %1023 = vdwg.mxu0
        %1025 = vrot.lane.b32.xlu0 %v691, 96
        %v1026 = vpop.permute.xlu0 %1025
        %v1029 = vsel %vm880, %v923, 0
        %1031 = vmatprep.subr.bf16.mxu0 0
        %1032 = vmatpush1.bf16.msra.mxu0 %v1026
        %1033 = vmatprep.subr.bf16.mxu0 0
        %1034 = vmatpush1.bf16.msra.mxu0 0
        %1035 = vmatprep.subr.bf16.mxu0 0
        %1036 = vmatpush1.bf16.msra.mxu0 0
        %1037 = vmatprep.subr.bf16.mxu0 0
        %1038 = vmatpush1.bf16.msra.mxu0 0
        %1039 = vmatprep.subr.bf16.mxu0 0
        %1040 = vmatpush1.bf16.msra.mxu0 0
        %1041 = vmatprep.subr.bf16.mxu0 0
        %1042 = vmatpush1.bf16.msra.mxu0 0
        %1043 = vmatprep.subr.bf16.mxu0 0
        %1044 = vmatpush1.bf16.msra.mxu0 0
        %1045 = vmatprep.subr.bf16.mxu0 0
        %1046 = vmatpush1.bf16.msra.mxu0 0
        %1047 = vmatprep.subr.bf16.mxu0 0
        %1048 = vmatpush1.bf16.msra.mxu0 0
        %1049 = vmatprep.subr.bf16.mxu0 0
        %1050 = vmatpush1.bf16.msra.mxu0 0
        %1051 = vmatprep.subr.bf16.mxu0 0
        %1052 = vmatpush1.bf16.msra.mxu0 0
        %1053 = vmatprep.subr.bf16.mxu0 0
        %1054 = vmatpush1.bf16.msra.mxu0 0
        %1055 = vmatprep.subr.bf16.mxu0 0
        %1056 = vmatpush1.bf16.msra.mxu0 0
        %1057 = vmatprep.subr.bf16.mxu0 0
        %1058 = vmatpush1.bf16.msra.mxu0 0
        %1059 = vmatprep.subr.bf16.mxu0 0
        %1060 = vmatpush1.bf16.msra.mxu0 0
        %1061 = vmatprep.subr.bf16.mxu0 0
        %1062 = vmatpush1.bf16.msra.mxu0 0
        %1063 = vmatprep.mubr.bf16.mxu0 0
        %1064 = vmatmul.mubr.bf16.gmra.mrb[0].mxu0 %v1029
        %v1065 = vpop.f32.mrb[0].mxu0
        %v1066 = vadd.f32 %v971, %v1065
        %v1067 = vpop.f32.mrb[0].mxu0
        %v1068 = vpop.f32.mrb[0].mxu0
        %v1069 = vpop.f32.mrb[0].mxu0
        %1070 = vdwg.mxu0
        %1072 = vrot.lane.b32.xlu0 %v692, 96
        %v1073 = vpop.permute.xlu0 %1072
        %v1076 = vsel %vm880, %v924, 0
        %1078 = vmatprep.subr.bf16.mxu0 0
        %1079 = vmatpush1.bf16.msra.mxu0 %v1073
        %1080 = vmatprep.subr.bf16.mxu0 0
        %1081 = vmatpush1.bf16.msra.mxu0 0
        %1082 = vmatprep.subr.bf16.mxu0 0
        %1083 = vmatpush1.bf16.msra.mxu0 0
        %1084 = vmatprep.subr.bf16.mxu0 0
        %1085 = vmatpush1.bf16.msra.mxu0 0
        %1086 = vmatprep.subr.bf16.mxu0 0
        %1087 = vmatpush1.bf16.msra.mxu0 0
        %1088 = vmatprep.subr.bf16.mxu0 0
        %1089 = vmatpush1.bf16.msra.mxu0 0
        %1090 = vmatprep.subr.bf16.mxu0 0
        %1091 = vmatpush1.bf16.msra.mxu0 0
        %1092 = vmatprep.subr.bf16.mxu0 0
        %1093 = vmatpush1.bf16.msra.mxu0 0
        %1094 = vmatprep.subr.bf16.mxu0 0
        %1095 = vmatpush1.bf16.msra.mxu0 0
        %1096 = vmatprep.subr.bf16.mxu0 0
        %1097 = vmatpush1.bf16.msra.mxu0 0
        %1098 = vmatprep.subr.bf16.mxu0 0
        %1099 = vmatpush1.bf16.msra.mxu0 0
        %1100 = vmatprep.subr.bf16.mxu0 0
        %1101 = vmatpush1.bf16.msra.mxu0 0
        %1102 = vmatprep.subr.bf16.mxu0 0
        %1103 = vmatpush1.bf16.msra.mxu0 0
        %1104 = vmatprep.subr.bf16.mxu0 0
        %1105 = vmatpush1.bf16.msra.mxu0 0
        %1106 = vmatprep.subr.bf16.mxu0 0
        %1107 = vmatpush1.bf16.msra.mxu0 0
        %1108 = vmatprep.subr.bf16.mxu0 0
        %1109 = vmatpush1.bf16.msra.mxu0 0
        %1110 = vmatprep.mubr.bf16.mxu0 0
        %1111 = vmatmul.mubr.bf16.gmra.mrb[0].mxu0 %v1076
        %v1112 = vpop.f32.mrb[0].mxu0
        %v1113 = vadd.f32 %v1019, %v1112
        %v1114 = vpop.f32.mrb[0].mxu0
        %v1115 = vpop.f32.mrb[0].mxu0
        %v1116 = vpop.f32.mrb[0].mxu0
        %1117 = vdwg.mxu0
        %v1118 = vmul.f32 %v1066, %v921
        %v1119 = vmul.f32 %v1113, %v922
        %v1120 = vpack.c.bf16 %v1119, %v1118
        %1121 = vrot.lane.b32.xlu0 %v689, 120
        %v1122 = vpop.permute.xlu0 %1121
        %1123 = vrot.lane.b32.xlu0 %v691, 120
        %v1124 = vpop.permute.xlu0 %1123
        %v1126 = vsel %vm697, %v1122, 0
        %v1129 = vsel %vm697, %v1124, 0
        %1131 = vmatprep.subr.bf16.mxu0 0
        %1132 = vmatpush1.bf16.xpose.msra.mxu0 %v1129
        %1133 = vmatprep.subr.bf16.mxu0 0
        %1134 = vmatpush1.bf16.xpose.msra.mxu0 0
        %1135 = vmatprep.subr.bf16.mxu0 0
        %1136 = vmatpush1.bf16.xpose.msra.mxu0 0
        %1137 = vmatprep.subr.bf16.mxu0 0
        %1138 = vmatpush1.bf16.xpose.msra.mxu0 0
        %1139 = vmatprep.subr.bf16.mxu0 0
        %1140 = vmatpush1.bf16.xpose.msra.mxu0 0
        %1141 = vmatprep.subr.bf16.mxu0 0
        %1142 = vmatpush1.bf16.xpose.msra.mxu0 0
        %1143 = vmatprep.subr.bf16.mxu0 0
        %1144 = vmatpush1.bf16.xpose.msra.mxu0 0
        %1145 = vmatprep.subr.bf16.mxu0 0
        %1146 = vmatpush1.bf16.xpose.msra.mxu0 0
        %1147 = vmatprep.subr.bf16.mxu0 0
        %1148 = vmatpush1.bf16.xpose.msra.mxu0 0
        %1149 = vmatprep.subr.bf16.mxu0 0
        %1150 = vmatpush1.bf16.xpose.msra.mxu0 0
        %1151 = vmatprep.subr.bf16.mxu0 0
        %1152 = vmatpush1.bf16.xpose.msra.mxu0 0
        %1153 = vmatprep.subr.bf16.mxu0 0
        %1154 = vmatpush1.bf16.xpose.msra.mxu0 0
        %1155 = vmatprep.subr.bf16.mxu0 0
        %1156 = vmatpush1.bf16.xpose.msra.mxu0 0
        %1157 = vmatprep.subr.bf16.mxu0 0
        %1158 = vmatpush1.bf16.xpose.msra.mxu0 0
        %1159 = vmatprep.subr.bf16.mxu0 0
        %1160 = vmatpush1.bf16.xpose.msra.mxu0 0
        %1161 = vmatprep.subr.bf16.mxu0 0
        %1162 = vmatpush1.bf16.xpose.msra.mxu0 0
        %1163 = vmatprep.mubr.bf16.mxu0 0
        %1164 = vmatmul.mubr.bf16.gmra.mrb[0].mxu0 %v1126
        %v1165 = vpop.f32.mrb[0].mxu0
        %v1166 = vadd.f32 0.0, %v1165
        %v1167 = vpop.f32.mrb[0].mxu0
        %v1168 = vpop.f32.mrb[0].mxu0
        %v1169 = vpop.f32.mrb[0].mxu0
        %1170 = vdwg.mxu0
        %1171 = vrot.lane.b32.xlu0 %v690, 120
        %v1172 = vpop.permute.xlu0 %1171
        %1173 = vrot.lane.b32.xlu0 %v692, 120
        %v1174 = vpop.permute.xlu0 %1173
        %v1176 = vsel %vm697, %v1172, 0
        %v1179 = vsel %vm697, %v1174, 0
        %1181 = vmatprep.subr.bf16.mxu0 0
        %1182 = vmatpush1.bf16.xpose.msra.mxu0 %v1179
        %1183 = vmatprep.subr.bf16.mxu0 0
        %1184 = vmatpush1.bf16.xpose.msra.mxu0 0
        %1185 = vmatprep.subr.bf16.mxu0 0
        %1186 = vmatpush1.bf16.xpose.msra.mxu0 0
        %1187 = vmatprep.subr.bf16.mxu0 0
        %1188 = vmatpush1.bf16.xpose.msra.mxu0 0
        %1189 = vmatprep.subr.bf16.mxu0 0
        %1190 = vmatpush1.bf16.xpose.msra.mxu0 0
        %1191 = vmatprep.subr.bf16.mxu0 0
        %1192 = vmatpush1.bf16.xpose.msra.mxu0 0
        %1193 = vmatprep.subr.bf16.mxu0 0
        %1194 = vmatpush1.bf16.xpose.msra.mxu0 0
        %1195 = vmatprep.subr.bf16.mxu0 0
        %1196 = vmatpush1.bf16.xpose.msra.mxu0 0
        %1197 = vmatprep.subr.bf16.mxu0 0
        %1198 = vmatpush1.bf16.xpose.msra.mxu0 0
        %1199 = vmatprep.subr.bf16.mxu0 0
        %1200 = vmatpush1.bf16.xpose.msra.mxu0 0
        %1201 = vmatprep.subr.bf16.mxu0 0
        %1202 = vmatpush1.bf16.xpose.msra.mxu0 0
        %1203 = vmatprep.subr.bf16.mxu0 0
        %1204 = vmatpush1.bf16.xpose.msra.mxu0 0
        %1205 = vmatprep.subr.bf16.mxu0 0
        %1206 = vmatpush1.bf16.xpose.msra.mxu0 0
        %1207 = vmatprep.subr.bf16.mxu0 0
        %1208 = vmatpush1.bf16.xpose.msra.mxu0 0
        %1209 = vmatprep.subr.bf16.mxu0 0
        %1210 = vmatpush1.bf16.xpose.msra.mxu0 0
        %1211 = vmatprep.subr.bf16.mxu0 0
        %1212 = vmatpush1.bf16.xpose.msra.mxu0 0
        %1213 = vmatprep.mubr.bf16.mxu0 0
        %1214 = vmatmul.mubr.bf16.gmra.mrb[0].mxu0 %v1176
        %v1215 = vpop.f32.mrb[0].mxu0
        %v1216 = vadd.f32 0.0, %v1215
        %v1217 = vpop.f32.mrb[0].mxu0
        %v1218 = vpop.f32.mrb[0].mxu0
        %v1219 = vpop.f32.mrb[0].mxu0
        %1220 = vdwg.mxu0
        %1221 = vrot.lane.b32.xlu0 %v689, 88
        %v1222 = vpop.permute.xlu0 %1221
        %v1224 = vsel %vm697, %v1222, 0
        %1226 = vmatprep.subr.bf16.mxu0 0
        %1227 = vmatpush1.bf16.xpose.msra.mxu0 %v1224
        %1228 = vmatprep.subr.bf16.mxu0 0
        %1229 = vmatpush1.bf16.xpose.msra.mxu0 0
        %1230 = vmatprep.subr.bf16.mxu0 0
        %1231 = vmatpush1.bf16.xpose.msra.mxu0 0
        %1232 = vmatprep.subr.bf16.mxu0 0
        %1233 = vmatpush1.bf16.xpose.msra.mxu0 0
        %1234 = vmatprep.subr.bf16.mxu0 0
        %1235 = vmatpush1.bf16.xpose.msra.mxu0 0
        %1236 = vmatprep.subr.bf16.mxu0 0
        %1237 = vmatpush1.bf16.xpose.msra.mxu0 0
        %1238 = vmatprep.subr.bf16.mxu0 0
        %1239 = vmatpush1.bf16.xpose.msra.mxu0 0
        %1240 = vmatprep.subr.bf16.mxu0 0
        %1241 = vmatpush1.bf16.xpose.msra.mxu0 0
        %1242 = vmatprep.subr.bf16.mxu0 0
        %1243 = vmatpush1.bf16.xpose.msra.mxu0 0
        %1244 = vmatprep.subr.bf16.mxu0 0
        %1245 = vmatpush1.bf16.xpose.msra.mxu0 0
        %1246 = vmatprep.subr.bf16.mxu0 0
        %1247 = vmatpush1.bf16.xpose.msra.mxu0 0
        %1248 = vmatprep.subr.bf16.mxu0 0
        %1249 = vmatpush1.bf16.xpose.msra.mxu0 0
        %1250 = vmatprep.subr.bf16.mxu0 0
        %1251 = vmatpush1.bf16.xpose.msra.mxu0 0
        %1252 = vmatprep.subr.bf16.mxu0 0
        %1253 = vmatpush1.bf16.xpose.msra.mxu0 0
        %1254 = vmatprep.subr.bf16.mxu0 0
        %1255 = vmatpush1.bf16.xpose.msra.mxu0 0
        %1256 = vmatprep.subr.bf16.mxu0 0
        %1257 = vmatpush1.bf16.xpose.msra.mxu0 0
        %1258 = vmatprep.mubr.bf16.mxu0 0
        %1259 = vmatmul.mubr.bf16.gmra.mrb[0].mxu0 %v1126
        %v1260 = vpop.f32.mrb[0].mxu0
        %v1261 = vadd.f32 0.0, %v1260
        %v1262 = vpop.f32.mrb[0].mxu0
        %v1263 = vpop.f32.mrb[0].mxu0
        %v1264 = vpop.f32.mrb[0].mxu0
        %1265 = vdwg.mxu0
        %1266 = vrot.lane.b32.xlu0 %v690, 88
        %v1267 = vpop.permute.xlu0 %1266
        %v1269 = vsel %vm697, %v1267, 0
        %1271 = vmatprep.subr.bf16.mxu0 0
        %1272 = vmatpush1.bf16.xpose.msra.mxu0 %v1269
        %1273 = vmatprep.subr.bf16.mxu0 0
        %1274 = vmatpush1.bf16.xpose.msra.mxu0 0
        %1275 = vmatprep.subr.bf16.mxu0 0
        %1276 = vmatpush1.bf16.xpose.msra.mxu0 0
        %1277 = vmatprep.subr.bf16.mxu0 0
        %1278 = vmatpush1.bf16.xpose.msra.mxu0 0
        %1279 = vmatprep.subr.bf16.mxu0 0
        %1280 = vmatpush1.bf16.xpose.msra.mxu0 0
        %1281 = vmatprep.subr.bf16.mxu0 0
        %1282 = vmatpush1.bf16.xpose.msra.mxu0 0
        %1283 = vmatprep.subr.bf16.mxu0 0
        %1284 = vmatpush1.bf16.xpose.msra.mxu0 0
        %1285 = vmatprep.subr.bf16.mxu0 0
        %1286 = vmatpush1.bf16.xpose.msra.mxu0 0
        %1287 = vmatprep.subr.bf16.mxu0 0
        %1288 = vmatpush1.bf16.xpose.msra.mxu0 0
        %1289 = vmatprep.subr.bf16.mxu0 0
        %1290 = vmatpush1.bf16.xpose.msra.mxu0 0
        %1291 = vmatprep.subr.bf16.mxu0 0
        %1292 = vmatpush1.bf16.xpose.msra.mxu0 0
        %1293 = vmatprep.subr.bf16.mxu0 0
        %1294 = vmatpush1.bf16.xpose.msra.mxu0 0
        %1295 = vmatprep.subr.bf16.mxu0 0
        %1296 = vmatpush1.bf16.xpose.msra.mxu0 0
        %1297 = vmatprep.subr.bf16.mxu0 0
        %1298 = vmatpush1.bf16.xpose.msra.mxu0 0
        %1299 = vmatprep.subr.bf16.mxu0 0
        %1300 = vmatpush1.bf16.xpose.msra.mxu0 0
        %1301 = vmatprep.subr.bf16.mxu0 0
        %1302 = vmatpush1.bf16.xpose.msra.mxu0 0
        %1303 = vmatprep.mubr.bf16.mxu0 0
        %1304 = vmatmul.mubr.bf16.gmra.mrb[0].mxu0 %v1176
        %v1305 = vpop.f32.mrb[0].mxu0
        %v1306 = vadd.f32 0.0, %v1305
        %v1307 = vpop.f32.mrb[0].mxu0
        %v1308 = vpop.f32.mrb[0].mxu0
        %v1309 = vpop.f32.mrb[0].mxu0
        %1310 = vdwg.mxu0
        %v1311 = vsel %vm880, %v1166, -inf
        %1312 = vmax.xlane.f32.xlu0 %v1311
        %v1313 = vpop.xlane.xlu0 %1312
        %v1314 = vsel %vm880, %v1216, -inf
        %1315 = vmax.xlane.f32.xlu0 %v1314
        %v1316 = vpop.xlane.xlu0 %1315
        %v1317 = vsel %vm697, %v1261, -inf
        %1318 = vmax.xlane.f32.xlu0 %v1317
        %v1319 = vpop.xlane.xlu0 %1318
        %v1320 = vsel %vm697, %v1306, -inf
        %1321 = vmax.xlane.f32.xlu0 %v1320
        %v1322 = vpop.xlane.xlu0 %1321
        %v1323 = vmax.f32 %v1313, %v1319
        %v1324 = vmax.f32 %v1316, %v1322
        %v1325 = vsub.f32 %v1166, %v1323
        %v1326 = vsub.f32 %v1216, %v1324
        %v1327 = vmul.f32 %v1325, 1.442695
        %v1328 = vpow.pop %v1327
        %v1329 = vmul.f32 %v1326, 1.442695
        %v1330 = vpow.pop %v1329
        %v1331 = vsub.f32 %v1261, %v1323
        %v1332 = vsub.f32 %v1306, %v1324
        %v1333 = vmul.f32 %v1331, 1.442695
        %v1334 = vpow.pop %v1333
        %v1335 = vmul.f32 %v1332, 1.442695
        %v1336 = vpow.pop %v1335
        %v1337 = vsel %vm880, %v1328, 0.0
        %1338 = vadd.xlane.f32.xlu0 %v1337
        %v1339 = vpop.xlane.xlu0 %1338
        %v1340 = vsel %vm880, %v1330, 0.0
        %1341 = vadd.xlane.f32.xlu0 %v1340
        %v1342 = vpop.xlane.xlu0 %1341
        %v1343 = vsel %vm697, %v1334, 0.0
        %1344 = vadd.xlane.f32.xlu0 %v1343
        %v1345 = vpop.xlane.xlu0 %1344
        %v1346 = vsel %vm697, %v1336, 0.0
        %1347 = vadd.xlane.f32.xlu0 %v1346
        %v1348 = vpop.xlane.xlu0 %1347
        %v1349 = vadd.f32 %v1339, %v1345
        %v1350 = vadd.f32 %v1342, %v1348
        %v1351 = vrcp.pop %v1349
        %v1352 = vrcp.pop %v1350
        %v1353 = vpack.c.bf16 %v1328, %v1328
        %v1354 = vpack.c.bf16 %v1330, %v1330
        %v1355 = vpack.c.bf16 %v1334, %v1334
        %v1356 = vpack.c.bf16 %v1336, %v1336
        %1357 = vrot.lane.b32.xlu0 %v689, 56
        %v1358 = vpop.permute.xlu0 %1357
        %v1360 = vsel %vm697, %v1355, 0
        %v1363 = vsel %vm932, %v1358, 0
        %1365 = vmatprep.subr.bf16.mxu0 0
        %1366 = vmatpush1.bf16.msra.mxu0 %v1363
        %1367 = vmatprep.subr.bf16.mxu0 0
        %1368 = vmatpush1.bf16.msra.mxu0 0
        %1369 = vmatprep.subr.bf16.mxu0 0
        %1370 = vmatpush1.bf16.msra.mxu0 0
        %1371 = vmatprep.subr.bf16.mxu0 0
        %1372 = vmatpush1.bf16.msra.mxu0 0
        %1373 = vmatprep.subr.bf16.mxu0 0
        %1374 = vmatpush1.bf16.msra.mxu0 0
        %1375 = vmatprep.subr.bf16.mxu0 0
        %1376 = vmatpush1.bf16.msra.mxu0 0
        %1377 = vmatprep.subr.bf16.mxu0 0
        %1378 = vmatpush1.bf16.msra.mxu0 0
        %1379 = vmatprep.subr.bf16.mxu0 0
        %1380 = vmatpush1.bf16.msra.mxu0 0
        %1381 = vmatprep.subr.bf16.mxu0 0
        %1382 = vmatpush1.bf16.msra.mxu0 0
        %1383 = vmatprep.subr.bf16.mxu0 0
        %1384 = vmatpush1.bf16.msra.mxu0 0
        %1385 = vmatprep.subr.bf16.mxu0 0
        %1386 = vmatpush1.bf16.msra.mxu0 0
        %1387 = vmatprep.subr.bf16.mxu0 0
        %1388 = vmatpush1.bf16.msra.mxu0 0
        %1389 = vmatprep.subr.bf16.mxu0 0
        %1390 = vmatpush1.bf16.msra.mxu0 0
        %1391 = vmatprep.subr.bf16.mxu0 0
        %1392 = vmatpush1.bf16.msra.mxu0 0
        %1393 = vmatprep.subr.bf16.mxu0 0
        %1394 = vmatpush1.bf16.msra.mxu0 0
        %1395 = vmatprep.subr.bf16.mxu0 0
        %1396 = vmatpush1.bf16.msra.mxu0 0
        %1397 = vmatprep.mubr.bf16.mxu0 0
        %1398 = vmatmul.mubr.bf16.gmra.mrb[0].mxu0 %v1360
        %v1399 = vpop.f32.mrb[0].mxu0
        %v1400 = vadd.f32 0.0, %v1399
        %v1401 = vpop.f32.mrb[0].mxu0
        %v1402 = vpop.f32.mrb[0].mxu0
        %v1403 = vpop.f32.mrb[0].mxu0
        %1404 = vdwg.mxu0
        %1405 = vrot.lane.b32.xlu0 %v690, 56
        %v1406 = vpop.permute.xlu0 %1405
        %v1408 = vsel %vm697, %v1356, 0
        %v1411 = vsel %vm932, %v1406, 0
        %1413 = vmatprep.subr.bf16.mxu0 0
        %1414 = vmatpush1.bf16.msra.mxu0 %v1411
        %1415 = vmatprep.subr.bf16.mxu0 0
        %1416 = vmatpush1.bf16.msra.mxu0 0
        %1417 = vmatprep.subr.bf16.mxu0 0
        %1418 = vmatpush1.bf16.msra.mxu0 0
        %1419 = vmatprep.subr.bf16.mxu0 0
        %1420 = vmatpush1.bf16.msra.mxu0 0
        %1421 = vmatprep.subr.bf16.mxu0 0
        %1422 = vmatpush1.bf16.msra.mxu0 0
        %1423 = vmatprep.subr.bf16.mxu0 0
        %1424 = vmatpush1.bf16.msra.mxu0 0
        %1425 = vmatprep.subr.bf16.mxu0 0
        %1426 = vmatpush1.bf16.msra.mxu0 0
        %1427 = vmatprep.subr.bf16.mxu0 0
        %1428 = vmatpush1.bf16.msra.mxu0 0
        %1429 = vmatprep.subr.bf16.mxu0 0
        %1430 = vmatpush1.bf16.msra.mxu0 0
        %1431 = vmatprep.subr.bf16.mxu0 0
        %1432 = vmatpush1.bf16.msra.mxu0 0
        %1433 = vmatprep.subr.bf16.mxu0 0
        %1434 = vmatpush1.bf16.msra.mxu0 0
        %1435 = vmatprep.subr.bf16.mxu0 0
        %1436 = vmatpush1.bf16.msra.mxu0 0
        %1437 = vmatprep.subr.bf16.mxu0 0
        %1438 = vmatpush1.bf16.msra.mxu0 0
        %1439 = vmatprep.subr.bf16.mxu0 0
        %1440 = vmatpush1.bf16.msra.mxu0 0
        %1441 = vmatprep.subr.bf16.mxu0 0
        %1442 = vmatpush1.bf16.msra.mxu0 0
        %1443 = vmatprep.subr.bf16.mxu0 0
        %1444 = vmatpush1.bf16.msra.mxu0 0
        %1445 = vmatprep.mubr.bf16.mxu0 0
        %1446 = vmatmul.mubr.bf16.gmra.mrb[0].mxu0 %v1408
        %v1447 = vpop.f32.mrb[0].mxu0
        %v1448 = vadd.f32 0.0, %v1447
        %v1449 = vpop.f32.mrb[0].mxu0
        %v1450 = vpop.f32.mrb[0].mxu0
        %v1451 = vpop.f32.mrb[0].mxu0
        %1452 = vdwg.mxu0
        %1453 = vrot.lane.b32.xlu0 %v691, 88
        %v1454 = vpop.permute.xlu0 %1453
        %v1457 = vsel %vm880, %v1353, 0
        %1459 = vmatprep.subr.bf16.mxu0 0
        %1460 = vmatpush1.bf16.msra.mxu0 %v1454
        %1461 = vmatprep.subr.bf16.mxu0 0
        %1462 = vmatpush1.bf16.msra.mxu0 0
        %1463 = vmatprep.subr.bf16.mxu0 0
        %1464 = vmatpush1.bf16.msra.mxu0 0
        %1465 = vmatprep.subr.bf16.mxu0 0
        %1466 = vmatpush1.bf16.msra.mxu0 0
        %1467 = vmatprep.subr.bf16.mxu0 0
        %1468 = vmatpush1.bf16.msra.mxu0 0
        %1469 = vmatprep.subr.bf16.mxu0 0
        %1470 = vmatpush1.bf16.msra.mxu0 0
        %1471 = vmatprep.subr.bf16.mxu0 0
        %1472 = vmatpush1.bf16.msra.mxu0 0
        %1473 = vmatprep.subr.bf16.mxu0 0
        %1474 = vmatpush1.bf16.msra.mxu0 0
        %1475 = vmatprep.subr.bf16.mxu0 0
        %1476 = vmatpush1.bf16.msra.mxu0 0
        %1477 = vmatprep.subr.bf16.mxu0 0
        %1478 = vmatpush1.bf16.msra.mxu0 0
        %1479 = vmatprep.subr.bf16.mxu0 0
        %1480 = vmatpush1.bf16.msra.mxu0 0
        %1481 = vmatprep.subr.bf16.mxu0 0
        %1482 = vmatpush1.bf16.msra.mxu0 0
        %1483 = vmatprep.subr.bf16.mxu0 0
        %1484 = vmatpush1.bf16.msra.mxu0 0
        %1485 = vmatprep.subr.bf16.mxu0 0
        %1486 = vmatpush1.bf16.msra.mxu0 0
        %1487 = vmatprep.subr.bf16.mxu0 0
        %1488 = vmatpush1.bf16.msra.mxu0 0
        %1489 = vmatprep.subr.bf16.mxu0 0
        %1490 = vmatpush1.bf16.msra.mxu0 0
        %1491 = vmatprep.mubr.bf16.mxu0 0
        %1492 = vmatmul.mubr.bf16.gmra.mrb[0].mxu0 %v1457
        %v1493 = vpop.f32.mrb[0].mxu0
        %v1494 = vadd.f32 %v1400, %v1493
        %v1495 = vpop.f32.mrb[0].mxu0
        %v1496 = vpop.f32.mrb[0].mxu0
        %v1497 = vpop.f32.mrb[0].mxu0
        %1498 = vdwg.mxu0
        %1499 = vrot.lane.b32.xlu0 %v692, 88
        %v1500 = vpop.permute.xlu0 %1499
        %v1503 = vsel %vm880, %v1354, 0
        %1505 = vmatprep.subr.bf16.mxu0 0
        %1506 = vmatpush1.bf16.msra.mxu0 %v1500
        %1507 = vmatprep.subr.bf16.mxu0 0
        %1508 = vmatpush1.bf16.msra.mxu0 0
        %1509 = vmatprep.subr.bf16.mxu0 0
        %1510 = vmatpush1.bf16.msra.mxu0 0
        %1511 = vmatprep.subr.bf16.mxu0 0
        %1512 = vmatpush1.bf16.msra.mxu0 0
        %1513 = vmatprep.subr.bf16.mxu0 0
        %1514 = vmatpush1.bf16.msra.mxu0 0
        %1515 = vmatprep.subr.bf16.mxu0 0
        %1516 = vmatpush1.bf16.msra.mxu0 0
        %1517 = vmatprep.subr.bf16.mxu0 0
        %1518 = vmatpush1.bf16.msra.mxu0 0
        %1519 = vmatprep.subr.bf16.mxu0 0
        %1520 = vmatpush1.bf16.msra.mxu0 0
        %1521 = vmatprep.subr.bf16.mxu0 0
        %1522 = vmatpush1.bf16.msra.mxu0 0
        %1523 = vmatprep.subr.bf16.mxu0 0
        %1524 = vmatpush1.bf16.msra.mxu0 0
        %1525 = vmatprep.subr.bf16.mxu0 0
        %1526 = vmatpush1.bf16.msra.mxu0 0
        %1527 = vmatprep.subr.bf16.mxu0 0
        %1528 = vmatpush1.bf16.msra.mxu0 0
        %1529 = vmatprep.subr.bf16.mxu0 0
        %1530 = vmatpush1.bf16.msra.mxu0 0
        %1531 = vmatprep.subr.bf16.mxu0 0
        %1532 = vmatpush1.bf16.msra.mxu0 0
        %1533 = vmatprep.subr.bf16.mxu0 0
        %1534 = vmatpush1.bf16.msra.mxu0 0
        %1535 = vmatprep.subr.bf16.mxu0 0
        %1536 = vmatpush1.bf16.msra.mxu0 0
        %1537 = vmatprep.mubr.bf16.mxu0 0
        %1538 = vmatmul.mubr.bf16.gmra.mrb[0].mxu0 %v1503
        %v1539 = vpop.f32.mrb[0].mxu0
        %v1540 = vadd.f32 %v1448, %v1539
        %v1541 = vpop.f32.mrb[0].mxu0
        %v1542 = vpop.f32.mrb[0].mxu0
        %v1543 = vpop.f32.mrb[0].mxu0
        %1544 = vdwg.mxu0
        %v1545 = vmul.f32 %v1494, %v1351
        %v1546 = vmul.f32 %v1540, %v1352
        %v1547 = vpack.c.bf16 %v1546, %v1545
        %v1549 = vsel %vm697, %v1547, 0
        %v1552 = vsel %vm932, %v694, 0
        %1554 = vmatprep.subr.bf16.mxu0 0
        %1555 = vmatpush1.bf16.msra.mxu0 %v1552
        %1556 = vmatprep.subr.bf16.mxu0 0
        %1557 = vmatpush1.bf16.msra.mxu0 0
        %1558 = vmatprep.subr.bf16.mxu0 0
        %1559 = vmatpush1.bf16.msra.mxu0 0
        %1560 = vmatprep.subr.bf16.mxu0 0
        %1561 = vmatpush1.bf16.msra.mxu0 0
        %1562 = vmatprep.subr.bf16.mxu0 0
        %1563 = vmatpush1.bf16.msra.mxu0 0
        %1564 = vmatprep.subr.bf16.mxu0 0
        %1565 = vmatpush1.bf16.msra.mxu0 0
        %1566 = vmatprep.subr.bf16.mxu0 0
        %1567 = vmatpush1.bf16.msra.mxu0 0
        %1568 = vmatprep.subr.bf16.mxu0 0
        %1569 = vmatpush1.bf16.msra.mxu0 0
        %1570 = vmatprep.subr.bf16.mxu0 0
        %1571 = vmatpush1.bf16.msra.mxu0 0
        %1572 = vmatprep.subr.bf16.mxu0 0
        %1573 = vmatpush1.bf16.msra.mxu0 0
        %1574 = vmatprep.subr.bf16.mxu0 0
        %1575 = vmatpush1.bf16.msra.mxu0 0
        %1576 = vmatprep.subr.bf16.mxu0 0
        %1577 = vmatpush1.bf16.msra.mxu0 0
        %1578 = vmatprep.subr.bf16.mxu0 0
        %1579 = vmatpush1.bf16.msra.mxu0 0
        %1580 = vmatprep.subr.bf16.mxu0 0
        %1581 = vmatpush1.bf16.msra.mxu0 0
        %1582 = vmatprep.subr.bf16.mxu0 0
        %1583 = vmatpush1.bf16.msra.mxu0 0
        %1584 = vmatprep.subr.bf16.mxu0 0
        %1585 = vmatpush1.bf16.msra.mxu0 0
        %1586 = vmatprep.mubr.bf16.mxu0 0
        %1587 = vmatmul.mubr.bf16.gmra.mrb[0].mxu0 %v1549
        %v1588 = vpop.f32.mrb[0].mxu0
        %v1589 = vadd.f32 0.0, %v1588
        %v1590 = vpop.f32.mrb[0].mxu0
        %v1591 = vpop.f32.mrb[0].mxu0
        %v1592 = vadd.f32 0.0, %v1591
        %v1593 = vpop.f32.mrb[0].mxu0
        %1594 = vdwg.mxu0
        %v1596 = vsel %vm697, %v1120, 0
        %v1599 = vsel %vm932, %v693, 0
        %1601 = vmatprep.subr.bf16.mxu0 0
        %1602 = vmatpush1.bf16.msra.mxu0 %v1599
        %1603 = vmatprep.subr.bf16.mxu0 0
        %1604 = vmatpush1.bf16.msra.mxu0 0
        %1605 = vmatprep.subr.bf16.mxu0 0
        %1606 = vmatpush1.bf16.msra.mxu0 0
        %1607 = vmatprep.subr.bf16.mxu0 0
        %1608 = vmatpush1.bf16.msra.mxu0 0
        %1609 = vmatprep.subr.bf16.mxu0 0
        %1610 = vmatpush1.bf16.msra.mxu0 0
        %1611 = vmatprep.subr.bf16.mxu0 0
        %1612 = vmatpush1.bf16.msra.mxu0 0
        %1613 = vmatprep.subr.bf16.mxu0 0
        %1614 = vmatpush1.bf16.msra.mxu0 0
        %1615 = vmatprep.subr.bf16.mxu0 0
        %1616 = vmatpush1.bf16.msra.mxu0 0
        %1617 = vmatprep.subr.bf16.mxu0 0
        %1618 = vmatpush1.bf16.msra.mxu0 0
        %1619 = vmatprep.subr.bf16.mxu0 0
        %1620 = vmatpush1.bf16.msra.mxu0 0
        %1621 = vmatprep.subr.bf16.mxu0 0
        %1622 = vmatpush1.bf16.msra.mxu0 0
        %1623 = vmatprep.subr.bf16.mxu0 0
        %1624 = vmatpush1.bf16.msra.mxu0 0
        %1625 = vmatprep.subr.bf16.mxu0 0
        %1626 = vmatpush1.bf16.msra.mxu0 0
        %1627 = vmatprep.subr.bf16.mxu0 0
        %1628 = vmatpush1.bf16.msra.mxu0 0
        %1629 = vmatprep.subr.bf16.mxu0 0
        %1630 = vmatpush1.bf16.msra.mxu0 0
        %1631 = vmatprep.subr.bf16.mxu0 0
        %1632 = vmatpush1.bf16.msra.mxu0 0
        %1633 = vmatprep.mubr.bf16.mxu0 0
        %1634 = vmatmul.mubr.bf16.gmra.mrb[0].mxu0 %v1596
        %v1635 = vpop.f32.mrb[0].mxu0
        %v1636 = vadd.f32 %v1589, %v1635
        %v1637 = vpop.f32.mrb[0].mxu0
        %v1638 = vpop.f32.mrb[0].mxu0
        %v1639 = vadd.f32 %v1592, %v1638
        %v1640 = vpop.f32.mrb[0].mxu0
        %1641 = vdwg.mxu0
        %1642 = vrot.lane.b32.xlu0 %v689, 112
        %v1643 = vpop.permute.xlu0 %1642
        %1644 = vrot.lane.b32.xlu0 %v691, 112
        %v1645 = vpop.permute.xlu0 %1644
        %v1647 = vsel %vm697, %v1643, 0
        %v1650 = vsel %vm697, %v1645, 0
        %1652 = vmatprep.subr.bf16.mxu0 0
        %1653 = vmatpush1.bf16.xpose.msra.mxu0 %v1650
        %1654 = vmatprep.subr.bf16.mxu0 0
        %1655 = vmatpush1.bf16.xpose.msra.mxu0 0
        %1656 = vmatprep.subr.bf16.mxu0 0
        %1657 = vmatpush1.bf16.xpose.msra.mxu0 0
        %1658 = vmatprep.subr.bf16.mxu0 0
        %1659 = vmatpush1.bf16.xpose.msra.mxu0 0
        %1660 = vmatprep.subr.bf16.mxu0 0
        %1661 = vmatpush1.bf16.xpose.msra.mxu0 0
        %1662 = vmatprep.subr.bf16.mxu0 0
        %1663 = vmatpush1.bf16.xpose.msra.mxu0 0
        %1664 = vmatprep.subr.bf16.mxu0 0
        %1665 = vmatpush1.bf16.xpose.msra.mxu0 0
        %1666 = vmatprep.subr.bf16.mxu0 0
        %1667 = vmatpush1.bf16.xpose.msra.mxu0 0
        %1668 = vmatprep.subr.bf16.mxu0 0
        %1669 = vmatpush1.bf16.xpose.msra.mxu0 0
        %1670 = vmatprep.subr.bf16.mxu0 0
        %1671 = vmatpush1.bf16.xpose.msra.mxu0 0
        %1672 = vmatprep.subr.bf16.mxu0 0
        %1673 = vmatpush1.bf16.xpose.msra.mxu0 0
        %1674 = vmatprep.subr.bf16.mxu0 0
        %1675 = vmatpush1.bf16.xpose.msra.mxu0 0
        %1676 = vmatprep.subr.bf16.mxu0 0
        %1677 = vmatpush1.bf16.xpose.msra.mxu0 0
        %1678 = vmatprep.subr.bf16.mxu0 0
        %1679 = vmatpush1.bf16.xpose.msra.mxu0 0
        %1680 = vmatprep.subr.bf16.mxu0 0
        %1681 = vmatpush1.bf16.xpose.msra.mxu0 0
        %1682 = vmatprep.subr.bf16.mxu0 0
        %1683 = vmatpush1.bf16.xpose.msra.mxu0 0
        %1684 = vmatprep.mubr.bf16.mxu0 0
        %1685 = vmatmul.mubr.bf16.gmra.mrb[0].mxu0 %v1647
        %v1686 = vpop.f32.mrb[0].mxu0
        %v1687 = vadd.f32 0.0, %v1686
        %v1688 = vpop.f32.mrb[0].mxu0
        %v1689 = vpop.f32.mrb[0].mxu0
        %v1690 = vpop.f32.mrb[0].mxu0
        %1691 = vdwg.mxu0
        %1692 = vrot.lane.b32.xlu0 %v690, 112
        %v1693 = vpop.permute.xlu0 %1692
        %1694 = vrot.lane.b32.xlu0 %v692, 112
        %v1695 = vpop.permute.xlu0 %1694
        %v1697 = vsel %vm697, %v1693, 0
        %v1700 = vsel %vm697, %v1695, 0
        %1702 = vmatprep.subr.bf16.mxu0 0
        %1703 = vmatpush1.bf16.xpose.msra.mxu0 %v1700
        %1704 = vmatprep.subr.bf16.mxu0 0
        %1705 = vmatpush1.bf16.xpose.msra.mxu0 0
        %1706 = vmatprep.subr.bf16.mxu0 0
        %1707 = vmatpush1.bf16.xpose.msra.mxu0 0
        %1708 = vmatprep.subr.bf16.mxu0 0
        %1709 = vmatpush1.bf16.xpose.msra.mxu0 0
        %1710 = vmatprep.subr.bf16.mxu0 0
        %1711 = vmatpush1.bf16.xpose.msra.mxu0 0
        %1712 = vmatprep.subr.bf16.mxu0 0
        %1713 = vmatpush1.bf16.xpose.msra.mxu0 0
        %1714 = vmatprep.subr.bf16.mxu0 0
        %1715 = vmatpush1.bf16.xpose.msra.mxu0 0
        %1716 = vmatprep.subr.bf16.mxu0 0
        %1717 = vmatpush1.bf16.xpose.msra.mxu0 0
        %1718 = vmatprep.subr.bf16.mxu0 0
        %1719 = vmatpush1.bf16.xpose.msra.mxu0 0
        %1720 = vmatprep.subr.bf16.mxu0 0
        %1721 = vmatpush1.bf16.xpose.msra.mxu0 0
        %1722 = vmatprep.subr.bf16.mxu0 0
        %1723 = vmatpush1.bf16.xpose.msra.mxu0 0
        %1724 = vmatprep.subr.bf16.mxu0 0
        %1725 = vmatpush1.bf16.xpose.msra.mxu0 0
        %1726 = vmatprep.subr.bf16.mxu0 0
        %1727 = vmatpush1.bf16.xpose.msra.mxu0 0
        %1728 = vmatprep.subr.bf16.mxu0 0
        %1729 = vmatpush1.bf16.xpose.msra.mxu0 0
        %1730 = vmatprep.subr.bf16.mxu0 0
        %1731 = vmatpush1.bf16.xpose.msra.mxu0 0
        %1732 = vmatprep.subr.bf16.mxu0 0
        %1733 = vmatpush1.bf16.xpose.msra.mxu0 0
        %1734 = vmatprep.mubr.bf16.mxu0 0
        %1735 = vmatmul.mubr.bf16.gmra.mrb[0].mxu0 %v1697
        %v1736 = vpop.f32.mrb[0].mxu0
        %v1737 = vadd.f32 0.0, %v1736
        %v1738 = vpop.f32.mrb[0].mxu0
        %v1739 = vpop.f32.mrb[0].mxu0
        %v1740 = vpop.f32.mrb[0].mxu0
        %1741 = vdwg.mxu0
        %1742 = vrot.lane.b32.xlu0 %v689, 80
        %v1743 = vpop.permute.xlu0 %1742
        %v1745 = vsel %vm697, %v1743, 0
        %1747 = vmatprep.subr.bf16.mxu0 0
        %1748 = vmatpush1.bf16.xpose.msra.mxu0 %v1745
        %1749 = vmatprep.subr.bf16.mxu0 0
        %1750 = vmatpush1.bf16.xpose.msra.mxu0 0
        %1751 = vmatprep.subr.bf16.mxu0 0
        %1752 = vmatpush1.bf16.xpose.msra.mxu0 0
        %1753 = vmatprep.subr.bf16.mxu0 0
        %1754 = vmatpush1.bf16.xpose.msra.mxu0 0
        %1755 = vmatprep.subr.bf16.mxu0 0
        %1756 = vmatpush1.bf16.xpose.msra.mxu0 0
        %1757 = vmatprep.subr.bf16.mxu0 0
        %1758 = vmatpush1.bf16.xpose.msra.mxu0 0
        %1759 = vmatprep.subr.bf16.mxu0 0
        %1760 = vmatpush1.bf16.xpose.msra.mxu0 0
        %1761 = vmatprep.subr.bf16.mxu0 0
        %1762 = vmatpush1.bf16.xpose.msra.mxu0 0
        %1763 = vmatprep.subr.bf16.mxu0 0
        %1764 = vmatpush1.bf16.xpose.msra.mxu0 0
        %1765 = vmatprep.subr.bf16.mxu0 0
        %1766 = vmatpush1.bf16.xpose.msra.mxu0 0
        %1767 = vmatprep.subr.bf16.mxu0 0
        %1768 = vmatpush1.bf16.xpose.msra.mxu0 0
        %1769 = vmatprep.subr.bf16.mxu0 0
        %1770 = vmatpush1.bf16.xpose.msra.mxu0 0
        %1771 = vmatprep.subr.bf16.mxu0 0
        %1772 = vmatpush1.bf16.xpose.msra.mxu0 0
        %1773 = vmatprep.subr.bf16.mxu0 0
        %1774 = vmatpush1.bf16.xpose.msra.mxu0 0
        %1775 = vmatprep.subr.bf16.mxu0 0
        %1776 = vmatpush1.bf16.xpose.msra.mxu0 0
        %1777 = vmatprep.subr.bf16.mxu0 0
        %1778 = vmatpush1.bf16.xpose.msra.mxu0 0
        %1779 = vmatprep.mubr.bf16.mxu0 0
        %1780 = vmatmul.mubr.bf16.gmra.mrb[0].mxu0 %v1647
        %v1781 = vpop.f32.mrb[0].mxu0
        %v1782 = vadd.f32 0.0, %v1781
        %v1783 = vpop.f32.mrb[0].mxu0
        %v1784 = vpop.f32.mrb[0].mxu0
        %v1785 = vpop.f32.mrb[0].mxu0
        %1786 = vdwg.mxu0
        %1787 = vrot.lane.b32.xlu0 %v690, 80
        %v1788 = vpop.permute.xlu0 %1787
        %v1790 = vsel %vm697, %v1788, 0
        %1792 = vmatprep.subr.bf16.mxu0 0
        %1793 = vmatpush1.bf16.xpose.msra.mxu0 %v1790
        %1794 = vmatprep.subr.bf16.mxu0 0
        %1795 = vmatpush1.bf16.xpose.msra.mxu0 0
        %1796 = vmatprep.subr.bf16.mxu0 0
        %1797 = vmatpush1.bf16.xpose.msra.mxu0 0
        %1798 = vmatprep.subr.bf16.mxu0 0
        %1799 = vmatpush1.bf16.xpose.msra.mxu0 0
        %1800 = vmatprep.subr.bf16.mxu0 0
        %1801 = vmatpush1.bf16.xpose.msra.mxu0 0
        %1802 = vmatprep.subr.bf16.mxu0 0
        %1803 = vmatpush1.bf16.xpose.msra.mxu0 0
        %1804 = vmatprep.subr.bf16.mxu0 0
        %1805 = vmatpush1.bf16.xpose.msra.mxu0 0
        %1806 = vmatprep.subr.bf16.mxu0 0
        %1807 = vmatpush1.bf16.xpose.msra.mxu0 0
        %1808 = vmatprep.subr.bf16.mxu0 0
        %1809 = vmatpush1.bf16.xpose.msra.mxu0 0
        %1810 = vmatprep.subr.bf16.mxu0 0
        %1811 = vmatpush1.bf16.xpose.msra.mxu0 0
        %1812 = vmatprep.subr.bf16.mxu0 0
        %1813 = vmatpush1.bf16.xpose.msra.mxu0 0
        %1814 = vmatprep.subr.bf16.mxu0 0
        %1815 = vmatpush1.bf16.xpose.msra.mxu0 0
        %1816 = vmatprep.subr.bf16.mxu0 0
        %1817 = vmatpush1.bf16.xpose.msra.mxu0 0
        %1818 = vmatprep.subr.bf16.mxu0 0
        %1819 = vmatpush1.bf16.xpose.msra.mxu0 0
        %1820 = vmatprep.subr.bf16.mxu0 0
        %1821 = vmatpush1.bf16.xpose.msra.mxu0 0
        %1822 = vmatprep.subr.bf16.mxu0 0
        %1823 = vmatpush1.bf16.xpose.msra.mxu0 0
        %1824 = vmatprep.mubr.bf16.mxu0 0
        %1825 = vmatmul.mubr.bf16.gmra.mrb[0].mxu0 %v1697
        %v1826 = vpop.f32.mrb[0].mxu0
        %v1827 = vadd.f32 0.0, %v1826
        %v1828 = vpop.f32.mrb[0].mxu0
        %v1829 = vpop.f32.mrb[0].mxu0
        %v1830 = vpop.f32.mrb[0].mxu0
        %1831 = vdwg.mxu0
        %v1832 = vsel %vm880, %v1687, -inf
        %1833 = vmax.xlane.f32.xlu0 %v1832
        %v1834 = vpop.xlane.xlu0 %1833
        %v1835 = vsel %vm880, %v1737, -inf
        %1836 = vmax.xlane.f32.xlu0 %v1835
        %v1837 = vpop.xlane.xlu0 %1836
        %v1838 = vsel %vm697, %v1782, -inf
        %1839 = vmax.xlane.f32.xlu0 %v1838
        %v1840 = vpop.xlane.xlu0 %1839
        %v1841 = vsel %vm697, %v1827, -inf
        %1842 = vmax.xlane.f32.xlu0 %v1841
        %v1843 = vpop.xlane.xlu0 %1842
        %v1844 = vmax.f32 %v1834, %v1840
        %v1845 = vmax.f32 %v1837, %v1843
        %v1846 = vsub.f32 %v1687, %v1844
        %v1847 = vsub.f32 %v1737, %v1845
        %v1848 = vmul.f32 %v1846, 1.442695
        %v1849 = vpow.pop %v1848
        %v1850 = vmul.f32 %v1847, 1.442695
        %v1851 = vpow.pop %v1850
        %v1852 = vsub.f32 %v1782, %v1844
        %v1853 = vsub.f32 %v1827, %v1845
        %v1854 = vmul.f32 %v1852, 1.442695
        %v1855 = vpow.pop %v1854
        %v1856 = vmul.f32 %v1853, 1.442695
        %v1857 = vpow.pop %v1856
        %v1858 = vsel %vm880, %v1849, 0.0
        %1859 = vadd.xlane.f32.xlu0 %v1858
        %v1860 = vpop.xlane.xlu0 %1859
        %v1861 = vsel %vm880, %v1851, 0.0
        %1862 = vadd.xlane.f32.xlu0 %v1861
        %v1863 = vpop.xlane.xlu0 %1862
        %v1864 = vsel %vm697, %v1855, 0.0
        %1865 = vadd.xlane.f32.xlu0 %v1864
        %v1866 = vpop.xlane.xlu0 %1865
        %v1867 = vsel %vm697, %v1857, 0.0
        %1868 = vadd.xlane.f32.xlu0 %v1867
        %v1869 = vpop.xlane.xlu0 %1868
        %v1870 = vadd.f32 %v1860, %v1866
        %v1871 = vadd.f32 %v1863, %v1869
        %v1872 = vrcp.pop %v1870
        %v1873 = vrcp.pop %v1871
        %v1874 = vpack.c.bf16 %v1849, %v1849
        %v1875 = vpack.c.bf16 %v1851, %v1851
        %v1876 = vpack.c.bf16 %v1855, %v1855
        %v1877 = vpack.c.bf16 %v1857, %v1857
        %1878 = vrot.lane.b32.xlu0 %v689, 48
        %v1879 = vpop.permute.xlu0 %1878
        %v1881 = vsel %vm697, %v1876, 0
        %v1884 = vsel %vm932, %v1879, 0
        %1886 = vmatprep.subr.bf16.mxu0 0
        %1887 = vmatpush1.bf16.msra.mxu0 %v1884
        %1888 = vmatprep.subr.bf16.mxu0 0
        %1889 = vmatpush1.bf16.msra.mxu0 0
        %1890 = vmatprep.subr.bf16.mxu0 0
        %1891 = vmatpush1.bf16.msra.mxu0 0
        %1892 = vmatprep.subr.bf16.mxu0 0
        %1893 = vmatpush1.bf16.msra.mxu0 0
        %1894 = vmatprep.subr.bf16.mxu0 0
        %1895 = vmatpush1.bf16.msra.mxu0 0
        %1896 = vmatprep.subr.bf16.mxu0 0
        %1897 = vmatpush1.bf16.msra.mxu0 0
        %1898 = vmatprep.subr.bf16.mxu0 0
        %1899 = vmatpush1.bf16.msra.mxu0 0
        %1900 = vmatprep.subr.bf16.mxu0 0
        %1901 = vmatpush1.bf16.msra.mxu0 0
        %1902 = vmatprep.subr.bf16.mxu0 0
        %1903 = vmatpush1.bf16.msra.mxu0 0
        %1904 = vmatprep.subr.bf16.mxu0 0
        %1905 = vmatpush1.bf16.msra.mxu0 0
        %1906 = vmatprep.subr.bf16.mxu0 0
        %1907 = vmatpush1.bf16.msra.mxu0 0
        %1908 = vmatprep.subr.bf16.mxu0 0
        %1909 = vmatpush1.bf16.msra.mxu0 0
        %1910 = vmatprep.subr.bf16.mxu0 0
        %1911 = vmatpush1.bf16.msra.mxu0 0
        %1912 = vmatprep.subr.bf16.mxu0 0
        %1913 = vmatpush1.bf16.msra.mxu0 0
        %1914 = vmatprep.subr.bf16.mxu0 0
        %1915 = vmatpush1.bf16.msra.mxu0 0
        %1916 = vmatprep.subr.bf16.mxu0 0
        %1917 = vmatpush1.bf16.msra.mxu0 0
        %1918 = vmatprep.mubr.bf16.mxu0 0
        %1919 = vmatmul.mubr.bf16.gmra.mrb[0].mxu0 %v1881
        %v1920 = vpop.f32.mrb[0].mxu0
        %v1921 = vadd.f32 0.0, %v1920
        %v1922 = vpop.f32.mrb[0].mxu0
        %v1923 = vpop.f32.mrb[0].mxu0
        %v1924 = vpop.f32.mrb[0].mxu0
        %1925 = vdwg.mxu0
        %1926 = vrot.lane.b32.xlu0 %v690, 48
        %v1927 = vpop.permute.xlu0 %1926
        %v1929 = vsel %vm697, %v1877, 0
        %v1932 = vsel %vm932, %v1927, 0
        %1934 = vmatprep.subr.bf16.mxu0 0
        %1935 = vmatpush1.bf16.msra.mxu0 %v1932
        %1936 = vmatprep.subr.bf16.mxu0 0
        %1937 = vmatpush1.bf16.msra.mxu0 0
        %1938 = vmatprep.subr.bf16.mxu0 0
        %1939 = vmatpush1.bf16.msra.mxu0 0
        %1940 = vmatprep.subr.bf16.mxu0 0
        %1941 = vmatpush1.bf16.msra.mxu0 0
        %1942 = vmatprep.subr.bf16.mxu0 0
        %1943 = vmatpush1.bf16.msra.mxu0 0
        %1944 = vmatprep.subr.bf16.mxu0 0
        %1945 = vmatpush1.bf16.msra.mxu0 0
        %1946 = vmatprep.subr.bf16.mxu0 0
        %1947 = vmatpush1.bf16.msra.mxu0 0
        %1948 = vmatprep.subr.bf16.mxu0 0
        %1949 = vmatpush1.bf16.msra.mxu0 0
        %1950 = vmatprep.subr.bf16.mxu0 0
        %1951 = vmatpush1.bf16.msra.mxu0 0
        %1952 = vmatprep.subr.bf16.mxu0 0
        %1953 = vmatpush1.bf16.msra.mxu0 0
        %1954 = vmatprep.subr.bf16.mxu0 0
        %1955 = vmatpush1.bf16.msra.mxu0 0
        %1956 = vmatprep.subr.bf16.mxu0 0
        %1957 = vmatpush1.bf16.msra.mxu0 0
        %1958 = vmatprep.subr.bf16.mxu0 0
        %1959 = vmatpush1.bf16.msra.mxu0 0
        %1960 = vmatprep.subr.bf16.mxu0 0
        %1961 = vmatpush1.bf16.msra.mxu0 0
        %1962 = vmatprep.subr.bf16.mxu0 0
        %1963 = vmatpush1.bf16.msra.mxu0 0
        %1964 = vmatprep.subr.bf16.mxu0 0
        %1965 = vmatpush1.bf16.msra.mxu0 0
        %1966 = vmatprep.mubr.bf16.mxu0 0
        %1967 = vmatmul.mubr.bf16.gmra.mrb[0].mxu0 %v1929
        %v1968 = vpop.f32.mrb[0].mxu0
        %v1969 = vadd.f32 0.0, %v1968
        %v1970 = vpop.f32.mrb[0].mxu0
        %v1971 = vpop.f32.mrb[0].mxu0
        %v1972 = vpop.f32.mrb[0].mxu0
        %1973 = vdwg.mxu0
        %1974 = vrot.lane.b32.xlu0 %v691, 80
        %v1975 = vpop.permute.xlu0 %1974
        %v1978 = vsel %vm880, %v1874, 0
        %1980 = vmatprep.subr.bf16.mxu0 0
        %1981 = vmatpush1.bf16.msra.mxu0 %v1975
        %1982 = vmatprep.subr.bf16.mxu0 0
        %1983 = vmatpush1.bf16.msra.mxu0 0
        %1984 = vmatprep.subr.bf16.mxu0 0
        %1985 = vmatpush1.bf16.msra.mxu0 0
        %1986 = vmatprep.subr.bf16.mxu0 0
        %1987 = vmatpush1.bf16.msra.mxu0 0
        %1988 = vmatprep.subr.bf16.mxu0 0
        %1989 = vmatpush1.bf16.msra.mxu0 0
        %1990 = vmatprep.subr.bf16.mxu0 0
        %1991 = vmatpush1.bf16.msra.mxu0 0
        %1992 = vmatprep.subr.bf16.mxu0 0
        %1993 = vmatpush1.bf16.msra.mxu0 0
        %1994 = vmatprep.subr.bf16.mxu0 0
        %1995 = vmatpush1.bf16.msra.mxu0 0
        %1996 = vmatprep.subr.bf16.mxu0 0
        %1997 = vmatpush1.bf16.msra.mxu0 0
        %1998 = vmatprep.subr.bf16.mxu0 0
        %1999 = vmatpush1.bf16.msra.mxu0 0
        %2000 = vmatprep.subr.bf16.mxu0 0
        %2001 = vmatpush1.bf16.msra.mxu0 0
        %2002 = vmatprep.subr.bf16.mxu0 0
        %2003 = vmatpush1.bf16.msra.mxu0 0
        %2004 = vmatprep.subr.bf16.mxu0 0
        %2005 = vmatpush1.bf16.msra.mxu0 0
        %2006 = vmatprep.subr.bf16.mxu0 0
        %2007 = vmatpush1.bf16.msra.mxu0 0
        %2008 = vmatprep.subr.bf16.mxu0 0
        %2009 = vmatpush1.bf16.msra.mxu0 0
        %2010 = vmatprep.subr.bf16.mxu0 0
        %2011 = vmatpush1.bf16.msra.mxu0 0
        %2012 = vmatprep.mubr.bf16.mxu0 0
        %2013 = vmatmul.mubr.bf16.gmra.mrb[0].mxu0 %v1978
        %v2014 = vpop.f32.mrb[0].mxu0
        %v2015 = vadd.f32 %v1921, %v2014
        %v2016 = vpop.f32.mrb[0].mxu0
        %v2017 = vpop.f32.mrb[0].mxu0
        %v2018 = vpop.f32.mrb[0].mxu0
        %2019 = vdwg.mxu0
        %2020 = vrot.lane.b32.xlu0 %v692, 80
        %v2021 = vpop.permute.xlu0 %2020
        %v2024 = vsel %vm880, %v1875, 0
        %2026 = vmatprep.subr.bf16.mxu0 0
        %2027 = vmatpush1.bf16.msra.mxu0 %v2021
        %2028 = vmatprep.subr.bf16.mxu0 0
        %2029 = vmatpush1.bf16.msra.mxu0 0
        %2030 = vmatprep.subr.bf16.mxu0 0
        %2031 = vmatpush1.bf16.msra.mxu0 0
        %2032 = vmatprep.subr.bf16.mxu0 0
        %2033 = vmatpush1.bf16.msra.mxu0 0
        %2034 = vmatprep.subr.bf16.mxu0 0
        %2035 = vmatpush1.bf16.msra.mxu0 0
        %2036 = vmatprep.subr.bf16.mxu0 0
        %2037 = vmatpush1.bf16.msra.mxu0 0
        %2038 = vmatprep.subr.bf16.mxu0 0
        %2039 = vmatpush1.bf16.msra.mxu0 0
        %2040 = vmatprep.subr.bf16.mxu0 0
        %2041 = vmatpush1.bf16.msra.mxu0 0
        %2042 = vmatprep.subr.bf16.mxu0 0
        %2043 = vmatpush1.bf16.msra.mxu0 0
        %2044 = vmatprep.subr.bf16.mxu0 0
        %2045 = vmatpush1.bf16.msra.mxu0 0
        %2046 = vmatprep.subr.bf16.mxu0 0
        %2047 = vmatpush1.bf16.msra.mxu0 0
        %2048 = vmatprep.subr.bf16.mxu0 0
        %2049 = vmatpush1.bf16.msra.mxu0 0
        %2050 = vmatprep.subr.bf16.mxu0 0
        %2051 = vmatpush1.bf16.msra.mxu0 0
        %2052 = vmatprep.subr.bf16.mxu0 0
        %2053 = vmatpush1.bf16.msra.mxu0 0
        %2054 = vmatprep.subr.bf16.mxu0 0
        %2055 = vmatpush1.bf16.msra.mxu0 0
        %2056 = vmatprep.subr.bf16.mxu0 0
        %2057 = vmatpush1.bf16.msra.mxu0 0
        %2058 = vmatprep.mubr.bf16.mxu0 0
        %2059 = vmatmul.mubr.bf16.gmra.mrb[0].mxu0 %v2024
        %v2060 = vpop.f32.mrb[0].mxu0
        %v2061 = vadd.f32 %v1969, %v2060
        %v2062 = vpop.f32.mrb[0].mxu0
        %v2063 = vpop.f32.mrb[0].mxu0
        %v2064 = vpop.f32.mrb[0].mxu0
        %2065 = vdwg.mxu0
        %v2066 = vmul.f32 %v2015, %v1872
        %v2067 = vmul.f32 %v2061, %v1873
        %v2068 = vpack.c.bf16 %v2067, %v2066
        %v2070 = vsel %vm697, %v2068, 0
        %v2073 = vsel %vm932, %v695, 0
        %2075 = vmatprep.subr.bf16.mxu0 0
        %2076 = vmatpush1.bf16.msra.mxu0 %v2073
        %2077 = vmatprep.subr.bf16.mxu0 0
        %2078 = vmatpush1.bf16.msra.mxu0 0
        %2079 = vmatprep.subr.bf16.mxu0 0
        %2080 = vmatpush1.bf16.msra.mxu0 0
        %2081 = vmatprep.subr.bf16.mxu0 0
        %2082 = vmatpush1.bf16.msra.mxu0 0
        %2083 = vmatprep.subr.bf16.mxu0 0
        %2084 = vmatpush1.bf16.msra.mxu0 0
        %2085 = vmatprep.subr.bf16.mxu0 0
        %2086 = vmatpush1.bf16.msra.mxu0 0
        %2087 = vmatprep.subr.bf16.mxu0 0
        %2088 = vmatpush1.bf16.msra.mxu0 0
        %2089 = vmatprep.subr.bf16.mxu0 0
        %2090 = vmatpush1.bf16.msra.mxu0 0
        %2091 = vmatprep.subr.bf16.mxu0 0
        %2092 = vmatpush1.bf16.msra.mxu0 0
        %2093 = vmatprep.subr.bf16.mxu0 0
        %2094 = vmatpush1.bf16.msra.mxu0 0
        %2095 = vmatprep.subr.bf16.mxu0 0
        %2096 = vmatpush1.bf16.msra.mxu0 0
        %2097 = vmatprep.subr.bf16.mxu0 0
        %2098 = vmatpush1.bf16.msra.mxu0 0
        %2099 = vmatprep.subr.bf16.mxu0 0
        %2100 = vmatpush1.bf16.msra.mxu0 0
        %2101 = vmatprep.subr.bf16.mxu0 0
        %2102 = vmatpush1.bf16.msra.mxu0 0
        %2103 = vmatprep.subr.bf16.mxu0 0
        %2104 = vmatpush1.bf16.msra.mxu0 0
        %2105 = vmatprep.subr.bf16.mxu0 0
        %2106 = vmatpush1.bf16.msra.mxu0 0
        %2107 = vmatprep.mubr.bf16.mxu0 0
        %2108 = vmatmul.mubr.bf16.gmra.mrb[0].mxu0 %v2070
        %v2109 = vpop.f32.mrb[0].mxu0
        %v2110 = vadd.f32 0.0, %v2109
        %v2111 = vpop.f32.mrb[0].mxu0
        %v2112 = vpop.f32.mrb[0].mxu0
        %v2113 = vadd.f32 0.0, %v2112
        %v2114 = vpop.f32.mrb[0].mxu0
        %2115 = vdwg.mxu0
        %v2116 = vadd.f32 %v1636, %v2110
        %v2117 = vadd.f32 %v1639, %v2113
        %2118 = vrot.lane.b32.xlu0 %v689, 104
        %v2119 = vpop.permute.xlu0 %2118
        %2120 = vrot.lane.b32.xlu0 %v691, 104
        %v2121 = vpop.permute.xlu0 %2120
        %v2123 = vsel %vm697, %v2119, 0
        %v2126 = vsel %vm697, %v2121, 0
        %2128 = vmatprep.subr.bf16.mxu0 0
        %2129 = vmatpush1.bf16.xpose.msra.mxu0 %v2126
        %2130 = vmatprep.subr.bf16.mxu0 0
        %2131 = vmatpush1.bf16.xpose.msra.mxu0 0
        %2132 = vmatprep.subr.bf16.mxu0 0
        %2133 = vmatpush1.bf16.xpose.msra.mxu0 0
        %2134 = vmatprep.subr.bf16.mxu0 0
        %2135 = vmatpush1.bf16.xpose.msra.mxu0 0
        %2136 = vmatprep.subr.bf16.mxu0 0
        %2137 = vmatpush1.bf16.xpose.msra.mxu0 0
        %2138 = vmatprep.subr.bf16.mxu0 0
        %2139 = vmatpush1.bf16.xpose.msra.mxu0 0
        %2140 = vmatprep.subr.bf16.mxu0 0
        %2141 = vmatpush1.bf16.xpose.msra.mxu0 0
        %2142 = vmatprep.subr.bf16.mxu0 0
        %2143 = vmatpush1.bf16.xpose.msra.mxu0 0
        %2144 = vmatprep.subr.bf16.mxu0 0
        %2145 = vmatpush1.bf16.xpose.msra.mxu0 0
        %2146 = vmatprep.subr.bf16.mxu0 0
        %2147 = vmatpush1.bf16.xpose.msra.mxu0 0
        %2148 = vmatprep.subr.bf16.mxu0 0
        %2149 = vmatpush1.bf16.xpose.msra.mxu0 0
        %2150 = vmatprep.subr.bf16.mxu0 0
        %2151 = vmatpush1.bf16.xpose.msra.mxu0 0
        %2152 = vmatprep.subr.bf16.mxu0 0
        %2153 = vmatpush1.bf16.xpose.msra.mxu0 0
        %2154 = vmatprep.subr.bf16.mxu0 0
        %2155 = vmatpush1.bf16.xpose.msra.mxu0 0
        %2156 = vmatprep.subr.bf16.mxu0 0
        %2157 = vmatpush1.bf16.xpose.msra.mxu0 0
        %2158 = vmatprep.subr.bf16.mxu0 0
        %2159 = vmatpush1.bf16.xpose.msra.mxu0 0
        %2160 = vmatprep.mubr.bf16.mxu0 0
        %2161 = vmatmul.mubr.bf16.gmra.mrb[0].mxu0 %v2123
        %v2162 = vpop.f32.mrb[0].mxu0
        %v2163 = vadd.f32 0.0, %v2162
        %v2164 = vpop.f32.mrb[0].mxu0
        %v2165 = vpop.f32.mrb[0].mxu0
        %v2166 = vpop.f32.mrb[0].mxu0
        %2167 = vdwg.mxu0
        %2168 = vrot.lane.b32.xlu0 %v690, 104
        %v2169 = vpop.permute.xlu0 %2168
        %2170 = vrot.lane.b32.xlu0 %v692, 104
        %v2171 = vpop.permute.xlu0 %2170
        %v2173 = vsel %vm697, %v2169, 0
        %v2176 = vsel %vm697, %v2171, 0
        %2178 = vmatprep.subr.bf16.mxu0 0
        %2179 = vmatpush1.bf16.xpose.msra.mxu0 %v2176
        %2180 = vmatprep.subr.bf16.mxu0 0
        %2181 = vmatpush1.bf16.xpose.msra.mxu0 0
        %2182 = vmatprep.subr.bf16.mxu0 0
        %2183 = vmatpush1.bf16.xpose.msra.mxu0 0
        %2184 = vmatprep.subr.bf16.mxu0 0
        %2185 = vmatpush1.bf16.xpose.msra.mxu0 0
        %2186 = vmatprep.subr.bf16.mxu0 0
        %2187 = vmatpush1.bf16.xpose.msra.mxu0 0
        %2188 = vmatprep.subr.bf16.mxu0 0
        %2189 = vmatpush1.bf16.xpose.msra.mxu0 0
        %2190 = vmatprep.subr.bf16.mxu0 0
        %2191 = vmatpush1.bf16.xpose.msra.mxu0 0
        %2192 = vmatprep.subr.bf16.mxu0 0
        %2193 = vmatpush1.bf16.xpose.msra.mxu0 0
        %2194 = vmatprep.subr.bf16.mxu0 0
        %2195 = vmatpush1.bf16.xpose.msra.mxu0 0
        %2196 = vmatprep.subr.bf16.mxu0 0
        %2197 = vmatpush1.bf16.xpose.msra.mxu0 0
        %2198 = vmatprep.subr.bf16.mxu0 0
        %2199 = vmatpush1.bf16.xpose.msra.mxu0 0
        %2200 = vmatprep.subr.bf16.mxu0 0
        %2201 = vmatpush1.bf16.xpose.msra.mxu0 0
        %2202 = vmatprep.subr.bf16.mxu0 0
        %2203 = vmatpush1.bf16.xpose.msra.mxu0 0
        %2204 = vmatprep.subr.bf16.mxu0 0
        %2205 = vmatpush1.bf16.xpose.msra.mxu0 0
        %2206 = vmatprep.subr.bf16.mxu0 0
        %2207 = vmatpush1.bf16.xpose.msra.mxu0 0
        %2208 = vmatprep.subr.bf16.mxu0 0
        %2209 = vmatpush1.bf16.xpose.msra.mxu0 0
        %2210 = vmatprep.mubr.bf16.mxu0 0
        %2211 = vmatmul.mubr.bf16.gmra.mrb[0].mxu0 %v2173
        %v2212 = vpop.f32.mrb[0].mxu0
        %v2213 = vadd.f32 0.0, %v2212
        %v2214 = vpop.f32.mrb[0].mxu0
        %v2215 = vpop.f32.mrb[0].mxu0
        %v2216 = vpop.f32.mrb[0].mxu0
        %2217 = vdwg.mxu0
        %2218 = vrot.lane.b32.xlu0 %v689, 72
        %v2219 = vpop.permute.xlu0 %2218
        %v2221 = vsel %vm697, %v2219, 0
        %2223 = vmatprep.subr.bf16.mxu0 0
        %2224 = vmatpush1.bf16.xpose.msra.mxu0 %v2221
        %2225 = vmatprep.subr.bf16.mxu0 0
        %2226 = vmatpush1.bf16.xpose.msra.mxu0 0
        %2227 = vmatprep.subr.bf16.mxu0 0
        %2228 = vmatpush1.bf16.xpose.msra.mxu0 0
        %2229 = vmatprep.subr.bf16.mxu0 0
        %2230 = vmatpush1.bf16.xpose.msra.mxu0 0
        %2231 = vmatprep.subr.bf16.mxu0 0
        %2232 = vmatpush1.bf16.xpose.msra.mxu0 0
        %2233 = vmatprep.subr.bf16.mxu0 0
        %2234 = vmatpush1.bf16.xpose.msra.mxu0 0
        %2235 = vmatprep.subr.bf16.mxu0 0
        %2236 = vmatpush1.bf16.xpose.msra.mxu0 0
        %2237 = vmatprep.subr.bf16.mxu0 0
        %2238 = vmatpush1.bf16.xpose.msra.mxu0 0
        %2239 = vmatprep.subr.bf16.mxu0 0
        %2240 = vmatpush1.bf16.xpose.msra.mxu0 0
        %2241 = vmatprep.subr.bf16.mxu0 0
        %2242 = vmatpush1.bf16.xpose.msra.mxu0 0
        %2243 = vmatprep.subr.bf16.mxu0 0
        %2244 = vmatpush1.bf16.xpose.msra.mxu0 0
        %2245 = vmatprep.subr.bf16.mxu0 0
        %2246 = vmatpush1.bf16.xpose.msra.mxu0 0
        %2247 = vmatprep.subr.bf16.mxu0 0
        %2248 = vmatpush1.bf16.xpose.msra.mxu0 0
        %2249 = vmatprep.subr.bf16.mxu0 0
        %2250 = vmatpush1.bf16.xpose.msra.mxu0 0
        %2251 = vmatprep.subr.bf16.mxu0 0
        %2252 = vmatpush1.bf16.xpose.msra.mxu0 0
        %2253 = vmatprep.subr.bf16.mxu0 0
        %2254 = vmatpush1.bf16.xpose.msra.mxu0 0
        %2255 = vmatprep.mubr.bf16.mxu0 0
        %2256 = vmatmul.mubr.bf16.gmra.mrb[0].mxu0 %v2123
        %v2257 = vpop.f32.mrb[0].mxu0
        %v2258 = vadd.f32 0.0, %v2257
        %v2259 = vpop.f32.mrb[0].mxu0
        %v2260 = vpop.f32.mrb[0].mxu0
        %v2261 = vpop.f32.mrb[0].mxu0
        %2262 = vdwg.mxu0
        %2263 = vrot.lane.b32.xlu0 %v690, 72
        %v2264 = vpop.permute.xlu0 %2263
        %v2266 = vsel %vm697, %v2264, 0
        %2268 = vmatprep.subr.bf16.mxu0 0
        %2269 = vmatpush1.bf16.xpose.msra.mxu0 %v2266
        %2270 = vmatprep.subr.bf16.mxu0 0
        %2271 = vmatpush1.bf16.xpose.msra.mxu0 0
        %2272 = vmatprep.subr.bf16.mxu0 0
        %2273 = vmatpush1.bf16.xpose.msra.mxu0 0
        %2274 = vmatprep.subr.bf16.mxu0 0
        %2275 = vmatpush1.bf16.xpose.msra.mxu0 0
        %2276 = vmatprep.subr.bf16.mxu0 0
        %2277 = vmatpush1.bf16.xpose.msra.mxu0 0
        %2278 = vmatprep.subr.bf16.mxu0 0
        %2279 = vmatpush1.bf16.xpose.msra.mxu0 0
        %2280 = vmatprep.subr.bf16.mxu0 0
        %2281 = vmatpush1.bf16.xpose.msra.mxu0 0
        %2282 = vmatprep.subr.bf16.mxu0 0
        %2283 = vmatpush1.bf16.xpose.msra.mxu0 0
        %2284 = vmatprep.subr.bf16.mxu0 0
        %2285 = vmatpush1.bf16.xpose.msra.mxu0 0
        %2286 = vmatprep.subr.bf16.mxu0 0
        %2287 = vmatpush1.bf16.xpose.msra.mxu0 0
        %2288 = vmatprep.subr.bf16.mxu0 0
        %2289 = vmatpush1.bf16.xpose.msra.mxu0 0
        %2290 = vmatprep.subr.bf16.mxu0 0
        %2291 = vmatpush1.bf16.xpose.msra.mxu0 0
        %2292 = vmatprep.subr.bf16.mxu0 0
        %2293 = vmatpush1.bf16.xpose.msra.mxu0 0
        %2294 = vmatprep.subr.bf16.mxu0 0
        %2295 = vmatpush1.bf16.xpose.msra.mxu0 0
        %2296 = vmatprep.subr.bf16.mxu0 0
        %2297 = vmatpush1.bf16.xpose.msra.mxu0 0
        %2298 = vmatprep.subr.bf16.mxu0 0
        %2299 = vmatpush1.bf16.xpose.msra.mxu0 0
        %2300 = vmatprep.mubr.bf16.mxu0 0
        %2301 = vmatmul.mubr.bf16.gmra.mrb[0].mxu0 %v2173
        %v2302 = vpop.f32.mrb[0].mxu0
        %v2303 = vadd.f32 0.0, %v2302
        %v2304 = vpop.f32.mrb[0].mxu0
        %v2305 = vpop.f32.mrb[0].mxu0
        %v2306 = vpop.f32.mrb[0].mxu0
        %2307 = vdwg.mxu0
        %v2308 = vsel %vm880, %v2163, -inf
        %2309 = vmax.xlane.f32.xlu0 %v2308
        %v2310 = vpop.xlane.xlu0 %2309
        %v2311 = vsel %vm880, %v2213, -inf
        %2312 = vmax.xlane.f32.xlu0 %v2311
        %v2313 = vpop.xlane.xlu0 %2312
        %v2314 = vsel %vm697, %v2258, -inf
        %2315 = vmax.xlane.f32.xlu0 %v2314
        %v2316 = vpop.xlane.xlu0 %2315
        %v2317 = vsel %vm697, %v2303, -inf
        %2318 = vmax.xlane.f32.xlu0 %v2317
        %v2319 = vpop.xlane.xlu0 %2318
        %v2320 = vmax.f32 %v2310, %v2316
        %v2321 = vmax.f32 %v2313, %v2319
        %v2322 = vsub.f32 %v2163, %v2320
        %v2323 = vsub.f32 %v2213, %v2321
        %v2324 = vmul.f32 %v2322, 1.442695
        %v2325 = vpow.pop %v2324
        %v2326 = vmul.f32 %v2323, 1.442695
        %v2327 = vpow.pop %v2326
        %v2328 = vsub.f32 %v2258, %v2320
        %v2329 = vsub.f32 %v2303, %v2321
        %v2330 = vmul.f32 %v2328, 1.442695
        %v2331 = vpow.pop %v2330
        %v2332 = vmul.f32 %v2329, 1.442695
        %v2333 = vpow.pop %v2332
        %v2334 = vsel %vm880, %v2325, 0.0
        %2335 = vadd.xlane.f32.xlu0 %v2334
        %v2336 = vpop.xlane.xlu0 %2335
        %v2337 = vsel %vm880, %v2327, 0.0
        %2338 = vadd.xlane.f32.xlu0 %v2337
        %v2339 = vpop.xlane.xlu0 %2338
        %v2340 = vsel %vm697, %v2331, 0.0
        %2341 = vadd.xlane.f32.xlu0 %v2340
        %v2342 = vpop.xlane.xlu0 %2341
        %v2343 = vsel %vm697, %v2333, 0.0
        %2344 = vadd.xlane.f32.xlu0 %v2343
        %v2345 = vpop.xlane.xlu0 %2344
        %v2346 = vadd.f32 %v2336, %v2342
        %v2347 = vadd.f32 %v2339, %v2345
        %v2348 = vrcp.pop %v2346
        %v2349 = vrcp.pop %v2347
        %v2350 = vpack.c.bf16 %v2325, %v2325
        %v2351 = vpack.c.bf16 %v2327, %v2327
        %v2352 = vpack.c.bf16 %v2331, %v2331
        %v2353 = vpack.c.bf16 %v2333, %v2333
        %2354 = vrot.lane.b32.xlu0 %v689, 40
        %v2355 = vpop.permute.xlu0 %2354
        %v2357 = vsel %vm697, %v2352, 0
        %v2360 = vsel %vm932, %v2355, 0
        %2362 = vmatprep.subr.bf16.mxu0 0
        %2363 = vmatpush1.bf16.msra.mxu0 %v2360
        %2364 = vmatprep.subr.bf16.mxu0 0
        %2365 = vmatpush1.bf16.msra.mxu0 0
        %2366 = vmatprep.subr.bf16.mxu0 0
        %2367 = vmatpush1.bf16.msra.mxu0 0
        %2368 = vmatprep.subr.bf16.mxu0 0
        %2369 = vmatpush1.bf16.msra.mxu0 0
        %2370 = vmatprep.subr.bf16.mxu0 0
        %2371 = vmatpush1.bf16.msra.mxu0 0
        %2372 = vmatprep.subr.bf16.mxu0 0
        %2373 = vmatpush1.bf16.msra.mxu0 0
        %2374 = vmatprep.subr.bf16.mxu0 0
        %2375 = vmatpush1.bf16.msra.mxu0 0
        %2376 = vmatprep.subr.bf16.mxu0 0
        %2377 = vmatpush1.bf16.msra.mxu0 0
        %2378 = vmatprep.subr.bf16.mxu0 0
        %2379 = vmatpush1.bf16.msra.mxu0 0
        %2380 = vmatprep.subr.bf16.mxu0 0
        %2381 = vmatpush1.bf16.msra.mxu0 0
        %2382 = vmatprep.subr.bf16.mxu0 0
        %2383 = vmatpush1.bf16.msra.mxu0 0
        %2384 = vmatprep.subr.bf16.mxu0 0
        %2385 = vmatpush1.bf16.msra.mxu0 0
        %2386 = vmatprep.subr.bf16.mxu0 0
        %2387 = vmatpush1.bf16.msra.mxu0 0
        %2388 = vmatprep.subr.bf16.mxu0 0
        %2389 = vmatpush1.bf16.msra.mxu0 0
        %2390 = vmatprep.subr.bf16.mxu0 0
        %2391 = vmatpush1.bf16.msra.mxu0 0
        %2392 = vmatprep.subr.bf16.mxu0 0
        %2393 = vmatpush1.bf16.msra.mxu0 0
        %2394 = vmatprep.mubr.bf16.mxu0 0
        %2395 = vmatmul.mubr.bf16.gmra.mrb[0].mxu0 %v2357
        %v2396 = vpop.f32.mrb[0].mxu0
        %v2397 = vadd.f32 0.0, %v2396
        %v2398 = vpop.f32.mrb[0].mxu0
        %v2399 = vpop.f32.mrb[0].mxu0
        %v2400 = vpop.f32.mrb[0].mxu0
        %2401 = vdwg.mxu0
        %2402 = vrot.lane.b32.xlu0 %v690, 40
        %v2403 = vpop.permute.xlu0 %2402
        %v2405 = vsel %vm697, %v2353, 0
        %v2408 = vsel %vm932, %v2403, 0
        %2410 = vmatprep.subr.bf16.mxu0 0
        %2411 = vmatpush1.bf16.msra.mxu0 %v2408
        %2412 = vmatprep.subr.bf16.mxu0 0
        %2413 = vmatpush1.bf16.msra.mxu0 0
        %2414 = vmatprep.subr.bf16.mxu0 0
        %2415 = vmatpush1.bf16.msra.mxu0 0
        %2416 = vmatprep.subr.bf16.mxu0 0
        %2417 = vmatpush1.bf16.msra.mxu0 0
        %2418 = vmatprep.subr.bf16.mxu0 0
        %2419 = vmatpush1.bf16.msra.mxu0 0
        %2420 = vmatprep.subr.bf16.mxu0 0
        %2421 = vmatpush1.bf16.msra.mxu0 0
        %2422 = vmatprep.subr.bf16.mxu0 0
        %2423 = vmatpush1.bf16.msra.mxu0 0
        %2424 = vmatprep.subr.bf16.mxu0 0
        %2425 = vmatpush1.bf16.msra.mxu0 0
        %2426 = vmatprep.subr.bf16.mxu0 0
        %2427 = vmatpush1.bf16.msra.mxu0 0
        %2428 = vmatprep.subr.bf16.mxu0 0
        %2429 = vmatpush1.bf16.msra.mxu0 0
        %2430 = vmatprep.subr.bf16.mxu0 0
        %2431 = vmatpush1.bf16.msra.mxu0 0
        %2432 = vmatprep.subr.bf16.mxu0 0
        %2433 = vmatpush1.bf16.msra.mxu0 0
        %2434 = vmatprep.subr.bf16.mxu0 0
        %2435 = vmatpush1.bf16.msra.mxu0 0
        %2436 = vmatprep.subr.bf16.mxu0 0
        %2437 = vmatpush1.bf16.msra.mxu0 0
        %2438 = vmatprep.subr.bf16.mxu0 0
        %2439 = vmatpush1.bf16.msra.mxu0 0
        %2440 = vmatprep.subr.bf16.mxu0 0
        %2441 = vmatpush1.bf16.msra.mxu0 0
        %2442 = vmatprep.mubr.bf16.mxu0 0
        %2443 = vmatmul.mubr.bf16.gmra.mrb[0].mxu0 %v2405
        %v2444 = vpop.f32.mrb[0].mxu0
        %v2445 = vadd.f32 0.0, %v2444
        %v2446 = vpop.f32.mrb[0].mxu0
        %v2447 = vpop.f32.mrb[0].mxu0
        %v2448 = vpop.f32.mrb[0].mxu0
        %2449 = vdwg.mxu0
        %2450 = vrot.lane.b32.xlu0 %v691, 72
        %v2451 = vpop.permute.xlu0 %2450
        %v2454 = vsel %vm880, %v2350, 0
        %2456 = vmatprep.subr.bf16.mxu0 0
        %2457 = vmatpush1.bf16.msra.mxu0 %v2451
        %2458 = vmatprep.subr.bf16.mxu0 0
        %2459 = vmatpush1.bf16.msra.mxu0 0
        %2460 = vmatprep.subr.bf16.mxu0 0
        %2461 = vmatpush1.bf16.msra.mxu0 0
        %2462 = vmatprep.subr.bf16.mxu0 0
        %2463 = vmatpush1.bf16.msra.mxu0 0
        %2464 = vmatprep.subr.bf16.mxu0 0
        %2465 = vmatpush1.bf16.msra.mxu0 0
        %2466 = vmatprep.subr.bf16.mxu0 0
        %2467 = vmatpush1.bf16.msra.mxu0 0
        %2468 = vmatprep.subr.bf16.mxu0 0
        %2469 = vmatpush1.bf16.msra.mxu0 0
        %2470 = vmatprep.subr.bf16.mxu0 0
        %2471 = vmatpush1.bf16.msra.mxu0 0
        %2472 = vmatprep.subr.bf16.mxu0 0
        %2473 = vmatpush1.bf16.msra.mxu0 0
        %2474 = vmatprep.subr.bf16.mxu0 0
        %2475 = vmatpush1.bf16.msra.mxu0 0
        %2476 = vmatprep.subr.bf16.mxu0 0
        %2477 = vmatpush1.bf16.msra.mxu0 0
        %2478 = vmatprep.subr.bf16.mxu0 0
        %2479 = vmatpush1.bf16.msra.mxu0 0
        %2480 = vmatprep.subr.bf16.mxu0 0
        %2481 = vmatpush1.bf16.msra.mxu0 0
        %2482 = vmatprep.subr.bf16.mxu0 0
        %2483 = vmatpush1.bf16.msra.mxu0 0
        %2484 = vmatprep.subr.bf16.mxu0 0
        %2485 = vmatpush1.bf16.msra.mxu0 0
        %2486 = vmatprep.subr.bf16.mxu0 0
        %2487 = vmatpush1.bf16.msra.mxu0 0
        %2488 = vmatprep.mubr.bf16.mxu0 0
        %2489 = vmatmul.mubr.bf16.gmra.mrb[0].mxu0 %v2454
        %v2490 = vpop.f32.mrb[0].mxu0
        %v2491 = vadd.f32 %v2397, %v2490
        %v2492 = vpop.f32.mrb[0].mxu0
        %v2493 = vpop.f32.mrb[0].mxu0
        %v2494 = vpop.f32.mrb[0].mxu0
        %2495 = vdwg.mxu0
        %2496 = vrot.lane.b32.xlu0 %v692, 72
        %v2497 = vpop.permute.xlu0 %2496
        %v2500 = vsel %vm880, %v2351, 0
        %2502 = vmatprep.subr.bf16.mxu0 0
        %2503 = vmatpush1.bf16.msra.mxu0 %v2497
        %2504 = vmatprep.subr.bf16.mxu0 0
        %2505 = vmatpush1.bf16.msra.mxu0 0
        %2506 = vmatprep.subr.bf16.mxu0 0
        %2507 = vmatpush1.bf16.msra.mxu0 0
        %2508 = vmatprep.subr.bf16.mxu0 0
        %2509 = vmatpush1.bf16.msra.mxu0 0
        %2510 = vmatprep.subr.bf16.mxu0 0
        %2511 = vmatpush1.bf16.msra.mxu0 0
        %2512 = vmatprep.subr.bf16.mxu0 0
        %2513 = vmatpush1.bf16.msra.mxu0 0
        %2514 = vmatprep.subr.bf16.mxu0 0
        %2515 = vmatpush1.bf16.msra.mxu0 0
        %2516 = vmatprep.subr.bf16.mxu0 0
        %2517 = vmatpush1.bf16.msra.mxu0 0
        %2518 = vmatprep.subr.bf16.mxu0 0
        %2519 = vmatpush1.bf16.msra.mxu0 0
        %2520 = vmatprep.subr.bf16.mxu0 0
        %2521 = vmatpush1.bf16.msra.mxu0 0
        %2522 = vmatprep.subr.bf16.mxu0 0
        %2523 = vmatpush1.bf16.msra.mxu0 0
        %2524 = vmatprep.subr.bf16.mxu0 0
        %2525 = vmatpush1.bf16.msra.mxu0 0
        %2526 = vmatprep.subr.bf16.mxu0 0
        %2527 = vmatpush1.bf16.msra.mxu0 0
        %2528 = vmatprep.subr.bf16.mxu0 0
        %2529 = vmatpush1.bf16.msra.mxu0 0
        %2530 = vmatprep.subr.bf16.mxu0 0
        %2531 = vmatpush1.bf16.msra.mxu0 0
        %2532 = vmatprep.subr.bf16.mxu0 0
        %2533 = vmatpush1.bf16.msra.mxu0 0
        %2534 = vmatprep.mubr.bf16.mxu0 0
        %2535 = vmatmul.mubr.bf16.gmra.mrb[0].mxu0 %v2500
        %v2536 = vpop.f32.mrb[0].mxu0
        %v2537 = vadd.f32 %v2445, %v2536
        %v2538 = vpop.f32.mrb[0].mxu0
        %v2539 = vpop.f32.mrb[0].mxu0
        %v2540 = vpop.f32.mrb[0].mxu0
        %2541 = vdwg.mxu0
        %v2542 = vmul.f32 %v2491, %v2348
        %v2543 = vmul.f32 %v2537, %v2349
        %v2544 = vpack.c.bf16 %v2543, %v2542
        %v2546 = vsel %vm697, %v2544, 0
        %v2549 = vsel %vm932, %v696, 0
        %2551 = vmatprep.subr.bf16.mxu0 0
        %2552 = vmatpush1.bf16.msra.mxu0 %v2549
        %2553 = vmatprep.subr.bf16.mxu0 0
        %2554 = vmatpush1.bf16.msra.mxu0 0
        %2555 = vmatprep.subr.bf16.mxu0 0
        %2556 = vmatpush1.bf16.msra.mxu0 0
        %2557 = vmatprep.subr.bf16.mxu0 0
        %2558 = vmatpush1.bf16.msra.mxu0 0
        %2559 = vmatprep.subr.bf16.mxu0 0
        %2560 = vmatpush1.bf16.msra.mxu0 0
        %2561 = vmatprep.subr.bf16.mxu0 0
        %2562 = vmatpush1.bf16.msra.mxu0 0
        %2563 = vmatprep.subr.bf16.mxu0 0
        %2564 = vmatpush1.bf16.msra.mxu0 0
        %2565 = vmatprep.subr.bf16.mxu0 0
        %2566 = vmatpush1.bf16.msra.mxu0 0
        %2567 = vmatprep.subr.bf16.mxu0 0
        %2568 = vmatpush1.bf16.msra.mxu0 0
        %2569 = vmatprep.subr.bf16.mxu0 0
        %2570 = vmatpush1.bf16.msra.mxu0 0
        %2571 = vmatprep.subr.bf16.mxu0 0
        %2572 = vmatpush1.bf16.msra.mxu0 0
        %2573 = vmatprep.subr.bf16.mxu0 0
        %2574 = vmatpush1.bf16.msra.mxu0 0
        %2575 = vmatprep.subr.bf16.mxu0 0
        %2576 = vmatpush1.bf16.msra.mxu0 0
        %2577 = vmatprep.subr.bf16.mxu0 0
        %2578 = vmatpush1.bf16.msra.mxu0 0
        %2579 = vmatprep.subr.bf16.mxu0 0
        %2580 = vmatpush1.bf16.msra.mxu0 0
        %2581 = vmatprep.subr.bf16.mxu0 0
        %2582 = vmatpush1.bf16.msra.mxu0 0
        %2583 = vmatprep.mubr.bf16.mxu0 0
        %2584 = vmatmul.mubr.bf16.gmra.mrb[0].mxu0 %v2546
        %v2585 = vpop.f32.mrb[0].mxu0
        %v2586 = vadd.f32 0.0, %v2585
        %v2587 = vpop.f32.mrb[0].mxu0
        %v2588 = vpop.f32.mrb[0].mxu0
        %v2589 = vadd.f32 0.0, %v2588
        %v2590 = vpop.f32.mrb[0].mxu0
        %2591 = vdwg.mxu0
        %v2592 = vadd.f32 %v2116, %v2586
        %v2593 = vadd.f32 %v2117, %v2589
        %2594 = vst.msk [vmem:[%s420] sm:$0xff] %vm433, %v2592
        %2595 = vst.msk [vmem:[%s420 + $0x8] sm:$0xff] %vm433, %v2593
        %s2596 = sand.u32 %s237, 1
        %s2597 = scalar_lea.sflag [#allocation4], %s2596
        %s2598 = sand.u32 %s237, 1
        %s2599 = smul.addr %s2598, 16
        %s2600 = scalar_lea.vmem [#allocation10], %s2599
        // Predicated region
        $region73: #{tpu_custom_call.1} parent=55 // pred_check
          %p2601 = pneg %p247
        $region74: #{tpu_custom_call.1} parent=55 // pred_check_branch
          %2603 = sbr.rel (%p2601) target = $region76
        $region75: #{tpu_custom_call.1} parent=55 // pred_region
          %s2604 = smul.u32 2, %s30
          %s2606 = ssub.s32 256, 256
          %2607 = vsyncadd %s2597, %s2606
          %s2608 = smul.addr %s2604, 128
          %s2609 = scalar_lea.hbm %s9, %s2608
          %s2610 = sshll.u32 %s2600, 4
          %s2611 = int_to_ptr.vmem [resolvable:$true] %s2610
          %2616 = dma.vmem_to_hbm [thread:$0]  %s2611, 256, %s2609, %s2597, 128, 128, 8
        $region76: #{tpu_custom_call.1} parent=55 // pred_fallthru
          _
      $region56: #{tpu_custom_call.1} parent=5 // pred_fallthru
        _
      %p2617 = scmp.le.s32.totalorder 2, %s25
      // Predicated region
      $region77: #{tpu_custom_call.1} parent=5 // pred_check
        %p2618 = pneg %p2617
      $region78: #{tpu_custom_call.1} parent=5 // pred_check_branch
        %2620 = sbr.rel (%p2618) target = $region80
      $region79: #{tpu_custom_call.1} parent=5 // pred_region
        %s2621 = ssub.s32 %s25, 2
        // Predicated region
        $region81: #{tpu_custom_call.1} parent=79 // pred_check
          %p2622 = pneg %p253
        $region82: #{tpu_custom_call.1} parent=79 // pred_check_branch
          %2624 = sbr.rel (%p2622) target = $region84
        $region83: #{tpu_custom_call.1} parent=79 // pred_region
          %s2625 = sand.u32 %s238, 1
          %s2626 = scalar_lea.sflag [#allocation4], %s2625
          %s2627 = sand.u32 %s238, 1
          %s2628 = smul.addr %s2627, 16
          %s2629 = scalar_lea.vmem [#allocation10], %s2628
          %2630 = dma.done %s2626, 256
        $region84: #{tpu_custom_call.1} parent=79 // pred_fallthru
          _
      $region80: #{tpu_custom_call.1} parent=5 // pred_fallthru
        _
    $region6: #{tpu_custom_call.1} parent=1 // loop_footer
      %s29 = sadd.s32 1, %s25
    $region7: #{tpu_custom_call.1} parent=1 // loop_footer_branch
      %24 = sbr.rel target = $region3
    $region8: #{tpu_custom_call.1} parent=1 // loop_exit
      _
    %2631 = vsyncpa [#allocation3], 1
    %s2632 = scalar_lea.sflag [#allocation3], 1
    %2633 = vsyncpa %s2632, 1
    %2634 = vsyncpa [#allocation6], 1
    %s2635 = scalar_lea.sflag [#allocation6], 1
    %2636 = vsyncpa %s2635, 1
    %2637 = vsyncpa [#allocation9], 1
    %2638 = vsyncpa [#allocation4], 1
    %s2639 = scalar_lea.sflag [#allocation4], 1
    %2640 = vsyncpa %s2639, 1

</llo_original>
